<compile_context>
chip_gen: v6e
topology: v6e:2x2x1
jax: 0.10.0
libtpu: 0.0.40
codegen_flags: <defaults>
</compile_context>

<pallas_src>
import functools

import jax
import jax.numpy as jnp
from jax import lax
from jax.experimental import pallas as pl
from jax.experimental.pallas import tpu as pltpu

LANE = 128


def _round_up(x, m):
    return -(-x // m) * m


def _vmem_limit_bytes():
    # ~75% of physical VMEM: ~48 MiB on v7x (64 MiB/TC), ~96 MiB on v5e/v6e (128 MiB).
    try:
        return int(pltpu.get_tpu_info().vmem_capacity_bytes * 0.75)
    except Exception:
        return 48 * 1024 * 1024


# ------------------------------ fused kernel -------------------------------- #

def _fused_bottleneck_kernel(x_ref, w_red_ref, b_red_ref, w_taps_ref, b_conv_ref,
                             w_out_ref, b_out_ref, o_ref, h1pad_ref,
                             *, dilation, downsample):
    """reduce(1x1) -> dilated 3x3 conv -> increase(1x1) + shortcut + ReLU,
    everything for one strided image kept resident in VMEM (BN pre-folded)."""
    d = dilation
    _, ho, wo, cip = x_ref.shape
    chp = w_red_ref.shape[1]
    cop = o_ref.shape[-1]
    m = ho * wo

    # Activation arrives as f32; cast to bf16 inside the kernel (saves an
    # XLA-level full-tensor cast pass through HBM).
    x_f32 = x_ref[0].reshape(m, cip)
    x_bf16 = x_f32.astype(jnp.bfloat16)

    # ---- stage 1: reduce 1x1 conv (BN folded) + ReLU, written into a
    #      zero-padded VMEM scratch so stage 2 can read its dilated taps directly.
    h1 = jnp.dot(x_bf16, w_red_ref[...], preferred_element_type=jnp.float32)
    h1 = jnp.maximum(h1 + b_red_ref[...], 0.0)
    h1pad_ref[...] = jnp.zeros_like(h1pad_ref)
    h1pad_ref[d:d + ho, d:d + wo, :] = h1.reshape(ho, wo, chp)

    # ---- stage 2: dilated 3x3 conv (BN folded) + ReLU. One row-band load (and
    #      one bf16 cast) per dy; f32 register accumulation; h2 never hits HBM.
    acc = jnp.zeros((m, chp), jnp.float32)
    for dy in range(3):
        band = h1pad_ref[dy * d:dy * d + ho, :, :].astype(jnp.bfloat16)  # (ho, wo+2d, chp)
        for dx in range(3):
            patch = band[:, dx * d:dx * d + wo, :].reshape(m, chp)
            acc = acc + jnp.dot(patch, w_taps_ref[dy * 3 + dx],
                                preferred_element_type=jnp.float32)
    h2 = jnp.maximum(acc + b_conv_ref[...], 0.0).astype(jnp.bfloat16)

    # ---- stage 3: increase 1x1 conv (BN folded) + shortcut + final ReLU.
    if downsample:
        # single K = chp + cip matmul against stacked [w_inc; w_short] weight.
        operand = jnp.concatenate([h2, x_bf16], axis=1)
        y = jnp.dot(operand, w_out_ref[...], preferred_element_type=jnp.float32)
        y = y + b_out_ref[...]
    else:
        y = jnp.dot(h2, w_out_ref[...], preferred_element_type=jnp.float32)
        y = y + b_out_ref[...] + x_f32          # identity residual added in f32
    o_ref[...] = jnp.maximum(y, 0.0).reshape(1, ho, wo, cop).astype(o_ref.dtype)


# ----------------------------- pallas_call glue ------------------------------ #

def _const_spec(shape, use_buffered):
    nd = len(shape)

    def idx(i, _nd=nd):
        return (0,) * _nd

    if use_buffered:
        # constant-index operand: a single VMEM buffer is enough.
        return pl.BlockSpec(shape, idx, pipeline_mode=pl.Buffered(1))
    return pl.BlockSpec(shape, idx)


def _call_fused(xs_p, w_red, b_red, w_taps, b_conv, w_out, b_out,
                *, dilation, downsample, use_buffered):
    n, ho, wo, cip = xs_p.shape
    chp = w_red.shape[1]
    cop = w_out.shape[1]
    hp, wp = ho + 2 * dilation, wo + 2 * dilation

    # TODO(synk): for large spatial sizes (e.g. 129x129 DeepLab feature maps),
    # row-band tile each image with a dilated halo (manual double-buffered DMA)
    # instead of keeping the whole padded image + scratch resident per grid step.
    kernel = functools.partial(_fused_bottleneck_kernel,
                               dilation=dilation, downsample=downsample)
    return pl.pallas_call(
        kernel,
        out_shape=jax.ShapeDtypeStruct((n, ho, wo, cop), jnp.float32),
        grid=(n,),
        in_specs=[
            pl.BlockSpec((1, ho, wo, cip), lambda i: (i, 0, 0, 0)),
            _const_spec(w_red.shape, use_buffered),
            _const_spec(b_red.shape, use_buffered),
            _const_spec(w_taps.shape, use_buffered),
            _const_spec(b_conv.shape, use_buffered),
            _const_spec(w_out.shape, use_buffered),
            _const_spec(b_out.shape, use_buffered),
        ],
        out_specs=pl.BlockSpec((1, ho, wo, cop), lambda i: (i, 0, 0, 0)),
        scratch_shapes=[pltpu.VMEM((hp, wp, chp), jnp.float32)],
        compiler_params=pltpu.CompilerParams(
            dimension_semantics=("parallel",),
            vmem_limit_bytes=_vmem_limit_bytes()),
    )(xs_p, w_red, b_red, w_taps, b_conv, w_out, b_out)


# ------------------------------- params / glue ------------------------------- #

def _bn_fold(gamma, beta, mean, var, eps=1e-5):
    scale = gamma / jnp.sqrt(var + eps)
    return scale, beta - mean * scale


def init_bottleneck_params(key, c_in, c_out, downsample):
    """Deterministic synthetic parameters (eval-mode BN folded to scale/bias)."""
    c_hid = c_out // 4
    ks = jax.random.split(key, 4)

    def bn_params(c, idx):
        gamma = 1.0 + 0.1 * jnp.arange(c, dtype=jnp.float32)
        beta = 0.05 * jnp.arange(c, dtype=jnp.float32) - 0.1
        mean = 0.01 * (idx + 1) * jnp.arange(c, dtype=jnp.float32)
        var = 1.0 + 0.02 * jnp.arange(c, dtype=jnp.float32)
        return _bn_fold(gamma, beta, mean, var)

    p = {}
    p["w_reduce"] = 0.1 * jax.random.normal(ks[0], (c_in, c_hid), jnp.float32)
    p["s_reduce"], p["b_reduce"] = bn_params(c_hid, 0)
    p["w_conv_hwio"] = 0.1 * jax.random.normal(ks[1], (3, 3, c_hid, c_hid), jnp.float32)
    p["s_conv"], p["b_conv"] = bn_params(c_hid, 1)
    p["w_inc"] = 0.1 * jax.random.normal(ks[2], (c_hid, c_out), jnp.float32)
    p["s_inc"], p["b_inc"] = bn_params(c_out, 2)
    if downsample:
        p["w_short"] = 0.1 * jax.random.normal(ks[3], (c_in, c_out), jnp.float32)
        p["s_short"], p["b_short"] = bn_params(c_out, 3)
    return p


def bottleneck_forward(x_nchw, p, stride, dilation, downsample):
    """Pallas implementation of _Bottleneck.forward (NCHW in / NCHW out)."""
    x = jnp.transpose(x_nchw, (0, 2, 3, 1)).astype(jnp.float32)   # NHWC
    xs = x[:, ::stride, ::stride, :]                              # 1x1 stride-s sampling
    n, ho, wo, c_in = xs.shape
    c_hid = p["w_reduce"].shape[1]
    c_out = p["w_inc"].shape[1]
    if not downsample:
        assert c_in == c_out, "identity shortcut requires c_in == c_out"

    cip = _round_up(c_in, LANE)
    chp = _round_up(c_hid, LANE)
    cop = _round_up(c_out, LANE)

    # parameter prep (tiny): fold BN scale into weight columns, zero-pad channels
    # to lane multiples, cast weights to bf16 (biases stay f32).
    w_red = jnp.pad(p["w_reduce"] * p["s_reduce"][None, :],
                    ((0, cip - c_in), (0, chp - c_hid))).astype(jnp.bfloat16)
    b_red = jnp.pad(p["b_reduce"], (0, chp - c_hid)).reshape(1, chp)

    w_conv = (p["w_conv_hwio"] * p["s_conv"][None, None, None, :]).reshape(9, c_hid, c_hid)
    w_taps = jnp.pad(w_conv, ((0, 0), (0, chp - c_hid), (0, chp - c_hid))).astype(jnp.bfloat16)
    b_conv = jnp.pad(p["b_conv"], (0, chp - c_hid)).reshape(1, chp)

    w_inc = jnp.pad(p["w_inc"] * p["s_inc"][None, :],
                    ((0, chp - c_hid), (0, cop - c_out)))
    b_inc = jnp.pad(p["b_inc"], (0, cop - c_out))

    if downsample:
        w_short = jnp.pad(p["w_short"] * p["s_short"][None, :],
                          ((0, cip - c_in), (0, cop - c_out)))
        w_out = jnp.concatenate([w_inc, w_short], axis=0).astype(jnp.bfloat16)
        b_out = (b_inc + jnp.pad(p["b_short"], (0, cop - c_out))).reshape(1, cop)
    else:
        w_out = w_inc.astype(jnp.bfloat16)
        b_out = b_inc.reshape(1, cop)

    # activation: strided NHWC slice + small channel zero-pad (kept f32; the
    # bf16 cast happens inside the fused kernel).
    xs_p = jnp.pad(xs, ((0, 0), (0, 0), (0, 0), (0, cip - c_in)))

    try:
        y = _call_fused(xs_p, w_red, b_red, w_taps, b_conv, w_out, b_out,
                        dilation=dilation, downsample=downsample, use_buffered=True)
    except Exception:
        # fallback: identical kernel with default (double-buffered) weight specs.
        y = _call_fused(xs_p, w_red, b_red, w_taps, b_conv, w_out, b_out,
                        dilation=dilation, downsample=downsample, use_buffered=False)

    y = y[..., :c_out]                               # drop padded output lanes
    # TODO(synk): keep NHWC / bf16 downstream if the consumer tolerates it; this
    # transpose back to NCHW only exists to match the PyTorch interface.
    return jnp.transpose(y, (0, 3, 1, 2))


# --------------------------- pure-JAX reference ------------------------------ #

def bottleneck_reference(x_nchw, p, stride, dilation, downsample):
    x = jnp.transpose(x_nchw, (0, 2, 3, 1)).astype(jnp.float32)
    dn = ("NHWC", "HWIO", "NHWC")

    def conv_bn(inp, w_hwio, scale, bias, strides, padding, rhs_dil, relu):
        y = lax.conv_general_dilated(inp, w_hwio, strides, padding,
                                     rhs_dilation=rhs_dil, dimension_numbers=dn)
        y = y * scale + bias
        return jnp.maximum(y, 0.0) if relu else y

    c_in = x.shape[-1]
    c_hid = p["w_reduce"].shape[1]
    c_out = p["w_inc"].shape[1]

    h = conv_bn(x, p["w_reduce"].reshape(1, 1, c_in, c_hid), p["s_reduce"], p["b_reduce"],
                (stride, stride), "VALID", (1, 1), True)
    h = conv_bn(h, p["w_conv_hwio"], p["s_conv"], p["b_conv"],
                (1, 1), [(dilation, dilation)] * 2, (dilation, dilation), True)
    h = conv_bn(h, p["w_inc"].reshape(1, 1, c_hid, c_out), p["s_inc"], p["b_inc"],
                (1, 1), "VALID", (1, 1), False)
    if downsample:
        sc = conv_bn(x, p["w_short"].reshape(1, 1, c_in, c_out), p["s_short"], p["b_short"],
                     (stride, stride), "VALID", (1, 1), False)
    else:
        sc = x[:, ::stride, ::stride, :]
    y = jnp.maximum(h + sc, 0.0)
    return jnp.transpose(y, (0, 3, 1, 2))


# ----------------------------------- main ------------------------------------ #

if __name__ == "__main__":
    key = jax.random.PRNGKey(0)
    k_x, k_p, k_x2, k_p2 = jax.random.split(key, 4)

    # Config 1: _Bottleneck(c_in=8, c_out=16, stride=2, dilation=2, downsample=True)
    c_in, c_out, stride, dilation, downsample = 8, 16, 2, 2, True
    x = jax.random.normal(k_x, (2, c_in, 16, 16), jnp.float32)      # NCHW like PyTorch
    params = init_bottleneck_params(k_p, c_in, c_out, downsample)

    out = jax.block_until_ready(bottleneck_forward(x, params, stride, dilation, downsample))
    ref = jax.block_until_ready(bottleneck_reference(x, params, stride, dilation, downsample))
    assert out.shape == (2, c_out, 16 // stride, 16 // stride), out.shape
    # bf16 matmul operands / f32 accumulation -> looser tolerance vs the f32 reference
    assert jnp.allclose(out, ref, atol=3e-2, rtol=3e-2), float(jnp.max(jnp.abs(out - ref)))

    # Config 2: identity shortcut path (stride=1, dilation=1, downsample=False)
    c_in2 = c_out2 = 16
    x2 = jax.random.normal(k_x2, (2, c_in2, 8, 8), jnp.float32)
    params2 = init_bottleneck_params(k_p2, c_in2, c_out2, False)
    out2 = jax.block_until_ready(bottleneck_forward(x2, params2, 1, 1, False))
    ref2 = jax.block_until_ready(bottleneck_reference(x2, params2, 1, 1, False))
    assert out2.shape == (2, c_out2, 8, 8), out2.shape
    assert jnp.allclose(out2, ref2, atol=3e-2, rtol=3e-2), float(jnp.max(jnp.abs(out2 - ref2)))

    print("KERNEL_OK")
</pallas_src>

<mosaic_0001>
module attributes {stable_mosaic.version = 11 : i64} {
  func.func @_fused_bottleneck_kernel(%arg0: i32, %arg1: memref<1x8x8x128xf32, #tpu.memory_space<vmem>>, %arg2: memref<128x128xbf16, #tpu.memory_space<vmem>>, %arg3: memref<1x128xf32, #tpu.memory_space<vmem>>, %arg4: memref<9x128x128xbf16, #tpu.memory_space<vmem>>, %arg5: memref<1x128xf32, #tpu.memory_space<vmem>>, %arg6: memref<256x128xbf16, #tpu.memory_space<vmem>>, %arg7: memref<1x128xf32, #tpu.memory_space<vmem>>, %arg8: memref<1x8x8x128xf32, #tpu.memory_space<vmem>>, %arg9: memref<12x12x128xf32, #tpu.memory_space<vmem>>) attributes {dimension_semantics = [#tpu.dimension_semantics<parallel>], iteration_bounds = array<i64: 2>, scalar_prefetch = 0 : i64, scratch_operands = 1 : i64, tpu.core_type = #tpu.core_type<tc>, window_params = [{transform_indices = @transform_0, window_bounds = array<i64: 1, 8, 8, 128>}, {pipeline_mode = #tpu.pipeline_mode<synchronous>, transform_indices = @transform_1, window_bounds = array<i64: 128, 128>}, {pipeline_mode = #tpu.pipeline_mode<synchronous>, transform_indices = @transform_2, window_bounds = array<i64: 1, 128>}, {pipeline_mode = #tpu.pipeline_mode<synchronous>, transform_indices = @transform_3, window_bounds = array<i64: 9, 128, 128>}, {pipeline_mode = #tpu.pipeline_mode<synchronous>, transform_indices = @transform_4, window_bounds = array<i64: 1, 128>}, {pipeline_mode = #tpu.pipeline_mode<synchronous>, transform_indices = @transform_5, window_bounds = array<i64: 256, 128>}, {pipeline_mode = #tpu.pipeline_mode<synchronous>, transform_indices = @transform_6, window_bounds = array<i64: 1, 128>}, {transform_indices = @transform_7, window_bounds = array<i64: 1, 8, 8, 128>}]} {
    %c0 = arith.constant 0 : index
    %c0_0 = arith.constant 0 : index
    %c0_1 = arith.constant 0 : index
    %c0_2 = arith.constant 0 : index
    %0 = vector.load %arg1[%c0, %c0_0, %c0_1, %c0_2] : memref<1x8x8x128xf32, #tpu.memory_space<vmem>>, vector<1x8x8x128xf32>
    %1 = vector.shape_cast %0 : vector<1x8x8x128xf32> to vector<8x8x128xf32>
    %2 = vector.shape_cast %1 : vector<8x8x128xf32> to vector<64x128xf32>
    %3 = arith.truncf %2 : vector<64x128xf32> to vector<64x128xbf16>
    %c0_3 = arith.constant 0 : index
    %c0_4 = arith.constant 0 : index
    %4 = vector.load %arg2[%c0_3, %c0_4] : memref<128x128xbf16, #tpu.memory_space<vmem>>, vector<128x128xbf16>
    %cst = arith.constant dense<0.000000e+00> : vector<64x128xf32>
    %5 = tpu.matmul %3, %4, %cst {dimension_numbers = #tpu.dot_dimension_numbers<[1], [0], [0], [1], [0, 0, 1, 1], [], []>} : vector<64x128xbf16>, vector<128x128xbf16>, vector<64x128xf32> -> vector<64x128xf32>
    %c0_5 = arith.constant 0 : index
    %c0_6 = arith.constant 0 : index
    %6 = vector.load %arg3[%c0_5, %c0_6] : memref<1x128xf32, #tpu.memory_space<vmem>>, vector<1x128xf32>
    %7 = vector.broadcast %6 : vector<1x128xf32> to vector<64x128xf32>
    %8 = arith.addf %5, %7 : vector<64x128xf32>
    %cst_7 = arith.constant 0.000000e+00 : f32
    %9 = vector.broadcast %cst_7 : f32 to vector<64x128xf32>
    %10 = arith.maximumf %8, %9 : vector<64x128xf32>
    %cst_8 = arith.constant 0.000000e+00 : f32
    %11 = vector.broadcast %cst_8 : f32 to vector<12x12x128xf32>
    %c0_9 = arith.constant 0 : index
    %c0_10 = arith.constant 0 : index
    %c0_11 = arith.constant 0 : index
    %12 = vector.load %arg9[%c0_9, %c0_10, %c0_11] : memref<12x12x128xf32, #tpu.memory_space<vmem>>, vector<12x12x128xf32>
    tpu.vector_store %arg9[%c0_9, %c0_10, %c0_11], %11 {strides = array<i32>} : memref<12x12x128xf32, #tpu.memory_space<vmem>>, vector<12x12x128xf32>,
    %13 = vector.shape_cast %10 : vector<64x128xf32> to vector<8x8x128xf32>
    %c2 = arith.constant 2 : index
    %c2_12 = arith.constant 2 : index
    %c0_13 = arith.constant 0 : index
    %14 = vector.load %arg9[%c2, %c2_12, %c0_13] : memref<12x12x128xf32, #tpu.memory_space<vmem>>, vector<8x8x128xf32>
    tpu.vector_store %arg9[%c2, %c2_12, %c0_13], %13 {strides = array<i32>} : memref<12x12x128xf32, #tpu.memory_space<vmem>>, vector<8x8x128xf32>,
    %cst_14 = arith.constant 0.000000e+00 : f32
    %15 = vector.broadcast %cst_14 : f32 to vector<64x128xf32>
    %c0_15 = arith.constant 0 : index
    %c0_16 = arith.constant 0 : index
    %c0_17 = arith.constant 0 : index
    %16 = vector.load %arg9[%c0_15, %c0_16, %c0_17] : memref<12x12x128xf32, #tpu.memory_space<vmem>>, vector<8x12x128xf32>
    %17 = arith.truncf %16 : vector<8x12x128xf32> to vector<8x12x128xbf16>
    %18 = vector.extract_strided_slice %17 {offsets = [0, 0, 0], sizes = [8, 8, 128], strides = [1, 1, 1]} : vector<8x12x128xbf16> to vector<8x8x128xbf16>
    %19 = vector.shape_cast %18 : vector<8x8x128xbf16> to vector<64x128xbf16>
    %c0_18 = arith.constant 0 : index
    %c0_19 = arith.constant 0 : index
    %c0_20 = arith.constant 0 : index
    %20 = vector.load %arg4[%c0_18, %c0_19, %c0_20] : memref<9x128x128xbf16, #tpu.memory_space<vmem>>, vector<1x128x128xbf16>
    %21 = vector.shape_cast %20 : vector<1x128x128xbf16> to vector<128x128xbf16>
    %cst_21 = arith.constant dense<0.000000e+00> : vector<64x128xf32>
    %22 = tpu.matmul %19, %21, %cst_21 {dimension_numbers = #tpu.dot_dimension_numbers<[1], [0], [0], [1], [0, 0, 1, 1], [], []>} : vector<64x128xbf16>, vector<128x128xbf16>, vector<64x128xf32> -> vector<64x128xf32>
    %23 = arith.addf %15, %22 : vector<64x128xf32>
    %24 = vector.extract_strided_slice %17 {offsets = [0, 2, 0], sizes = [8, 8, 128], strides = [1, 1, 1]} : vector<8x12x128xbf16> to vector<8x8x128xbf16>
    %25 = vector.shape_cast %24 : vector<8x8x128xbf16> to vector<64x128xbf16>
    %c1 = arith.constant 1 : index
    %c0_22 = arith.constant 0 : index
    %c0_23 = arith.constant 0 : index
    %26 = vector.load %arg4[%c1, %c0_22, %c0_23] : memref<9x128x128xbf16, #tpu.memory_space<vmem>>, vector<1x128x128xbf16>
    %27 = vector.shape_cast %26 : vector<1x128x128xbf16> to vector<128x128xbf16>
    %cst_24 = arith.constant dense<0.000000e+00> : vector<64x128xf32>
    %28 = tpu.matmul %25, %27, %cst_24 {dimension_numbers = #tpu.dot_dimension_numbers<[1], [0], [0], [1], [0, 0, 1, 1], [], []>} : vector<64x128xbf16>, vector<128x128xbf16>, vector<64x128xf32> -> vector<64x128xf32>
    %29 = arith.addf %23, %28 : vector<64x128xf32>
    %30 = vector.extract_strided_slice %17 {offsets = [0, 4, 0], sizes = [8, 8, 128], strides = [1, 1, 1]} : vector<8x12x128xbf16> to vector<8x8x128xbf16>
    %31 = vector.shape_cast %30 : vector<8x8x128xbf16> to vector<64x128xbf16>
    %c2_25 = arith.constant 2 : index
    %c0_26 = arith.constant 0 : index
    %c0_27 = arith.constant 0 : index
    %32 = vector.load %arg4[%c2_25, %c0_26, %c0_27] : memref<9x128x128xbf16, #tpu.memory_space<vmem>>, vector<1x128x128xbf16>
    %33 = vector.shape_cast %32 : vector<1x128x128xbf16> to vector<128x128xbf16>
    %cst_28 = arith.constant dense<0.000000e+00> : vector<64x128xf32>
    %34 = tpu.matmul %31, %33, %cst_28 {dimension_numbers = #tpu.dot_dimension_numbers<[1], [0], [0], [1], [0, 0, 1, 1], [], []>} : vector<64x128xbf16>, vector<128x128xbf16>, vector<64x128xf32> -> vector<64x128xf32>
    %35 = arith.addf %29, %34 : vector<64x128xf32>
    %c2_29 = arith.constant 2 : index
    %c0_30 = arith.constant 0 : index
    %c0_31 = arith.constant 0 : index
    %36 = vector.load %arg9[%c2_29, %c0_30, %c0_31] : memref<12x12x128xf32, #tpu.memory_space<vmem>>, vector<8x12x128xf32>
    %37 = arith.truncf %36 : vector<8x12x128xf32> to vector<8x12x128xbf16>
    %38 = vector.extract_strided_slice %37 {offsets = [0, 0, 0], sizes = [8, 8, 128], strides = [1, 1, 1]} : vector<8x12x128xbf16> to vector<8x8x128xbf16>
    %39 = vector.shape_cast %38 : vector<8x8x128xbf16> to vector<64x128xbf16>
    %c3 = arith.constant 3 : index
    %c0_32 = arith.constant 0 : index
    %c0_33 = arith.constant 0 : index
    %40 = vector.load %arg4[%c3, %c0_32, %c0_33] : memref<9x128x128xbf16, #tpu.memory_space<vmem>>, vector<1x128x128xbf16>
    %41 = vector.shape_cast %40 : vector<1x128x128xbf16> to vector<128x128xbf16>
    %cst_34 = arith.constant dense<0.000000e+00> : vector<64x128xf32>
    %42 = tpu.matmul %39, %41, %cst_34 {dimension_numbers = #tpu.dot_dimension_numbers<[1], [0], [0], [1], [0, 0, 1, 1], [], []>} : vector<64x128xbf16>, vector<128x128xbf16>, vector<64x128xf32> -> vector<64x128xf32>
    %43 = arith.addf %35, %42 : vector<64x128xf32>
    %44 = vector.extract_strided_slice %37 {offsets = [0, 2, 0], sizes = [8, 8, 128], strides = [1, 1, 1]} : vector<8x12x128xbf16> to vector<8x8x128xbf16>
    %45 = vector.shape_cast %44 : vector<8x8x128xbf16> to vector<64x128xbf16>
    %c4 = arith.constant 4 : index
    %c0_35 = arith.constant 0 : index
    %c0_36 = arith.constant 0 : index
    %46 = vector.load %arg4[%c4, %c0_35, %c0_36] : memref<9x128x128xbf16, #tpu.memory_space<vmem>>, vector<1x128x128xbf16>
    %47 = vector.shape_cast %46 : vector<1x128x128xbf16> to vector<128x128xbf16>
    %cst_37 = arith.constant dense<0.000000e+00> : vector<64x128xf32>
    %48 = tpu.matmul %45, %47, %cst_37 {dimension_numbers = #tpu.dot_dimension_numbers<[1], [0], [0], [1], [0, 0, 1, 1], [], []>} : vector<64x128xbf16>, vector<128x128xbf16>, vector<64x128xf32> -> vector<64x128xf32>
    %49 = arith.addf %43, %48 : vector<64x128xf32>
    %50 = vector.extract_strided_slice %37 {offsets = [0, 4, 0], sizes = [8, 8, 128], strides = [1, 1, 1]} : vector<8x12x128xbf16> to vector<8x8x128xbf16>
    %51 = vector.shape_cast %50 : vector<8x8x128xbf16> to vector<64x128xbf16>
    %c5 = arith.constant 5 : index
    %c0_38 = arith.constant 0 : index
    %c0_39 = arith.constant 0 : index
    %52 = vector.load %arg4[%c5, %c0_38, %c0_39] : memref<9x128x128xbf16, #tpu.memory_space<vmem>>, vector<1x128x128xbf16>
    %53 = vector.shape_cast %52 : vector<1x128x128xbf16> to vector<128x128xbf16>
    %cst_40 = arith.constant dense<0.000000e+00> : vector<64x128xf32>
    %54 = tpu.matmul %51, %53, %cst_40 {dimension_numbers = #tpu.dot_dimension_numbers<[1], [0], [0], [1], [0, 0, 1, 1], [], []>} : vector<64x128xbf16>, vector<128x128xbf16>, vector<64x128xf32> -> vector<64x128xf32>
    %55 = arith.addf %49, %54 : vector<64x128xf32>
    %c4_41 = arith.constant 4 : index
    %c0_42 = arith.constant 0 : index
    %c0_43 = arith.constant 0 : index
    %56 = vector.load %arg9[%c4_41, %c0_42, %c0_43] : memref<12x12x128xf32, #tpu.memory_space<vmem>>, vector<8x12x128xf32>
    %57 = arith.truncf %56 : vector<8x12x128xf32> to vector<8x12x128xbf16>
    %58 = vector.extract_strided_slice %57 {offsets = [0, 0, 0], sizes = [8, 8, 128], strides = [1, 1, 1]} : vector<8x12x128xbf16> to vector<8x8x128xbf16>
    %59 = vector.shape_cast %58 : vector<8x8x128xbf16> to vector<64x128xbf16>
    %c6 = arith.constant 6 : index
    %c0_44 = arith.constant 0 : index
    %c0_45 = arith.constant 0 : index
    %60 = vector.load %arg4[%c6, %c0_44, %c0_45] : memref<9x128x128xbf16, #tpu.memory_space<vmem>>, vector<1x128x128xbf16>
    %61 = vector.shape_cast %60 : vector<1x128x128xbf16> to vector<128x128xbf16>
    %cst_46 = arith.constant dense<0.000000e+00> : vector<64x128xf32>
    %62 = tpu.matmul %59, %61, %cst_46 {dimension_numbers = #tpu.dot_dimension_numbers<[1], [0], [0], [1], [0, 0, 1, 1], [], []>} : vector<64x128xbf16>, vector<128x128xbf16>, vector<64x128xf32> -> vector<64x128xf32>
    %63 = arith.addf %55, %62 : vector<64x128xf32>
    %64 = vector.extract_strided_slice %57 {offsets = [0, 2, 0], sizes = [8, 8, 128], strides = [1, 1, 1]} : vector<8x12x128xbf16> to vector<8x8x128xbf16>
    %65 = vector.shape_cast %64 : vector<8x8x128xbf16> to vector<64x128xbf16>
    %c7 = arith.constant 7 : index
    %c0_47 = arith.constant 0 : index
    %c0_48 = arith.constant 0 : index
    %66 = vector.load %arg4[%c7, %c0_47, %c0_48] : memref<9x128x128xbf16, #tpu.memory_space<vmem>>, vector<1x128x128xbf16>
    %67 = vector.shape_cast %66 : vector<1x128x128xbf16> to vector<128x128xbf16>
    %cst_49 = arith.constant dense<0.000000e+00> : vector<64x128xf32>
    %68 = tpu.matmul %65, %67, %cst_49 {dimension_numbers = #tpu.dot_dimension_numbers<[1], [0], [0], [1], [0, 0, 1, 1], [], []>} : vector<64x128xbf16>, vector<128x128xbf16>, vector<64x128xf32> -> vector<64x128xf32>
    %69 = arith.addf %63, %68 : vector<64x128xf32>
    %70 = vector.extract_strided_slice %57 {offsets = [0, 4, 0], sizes = [8, 8, 128], strides = [1, 1, 1]} : vector<8x12x128xbf16> to vector<8x8x128xbf16>
    %71 = vector.shape_cast %70 : vector<8x8x128xbf16> to vector<64x128xbf16>
    %c8 = arith.constant 8 : index
    %c0_50 = arith.constant 0 : index
    %c0_51 = arith.constant 0 : index
    %72 = vector.load %arg4[%c8, %c0_50, %c0_51] : memref<9x128x128xbf16, #tpu.memory_space<vmem>>, vector<1x128x128xbf16>
    %73 = vector.shape_cast %72 : vector<1x128x128xbf16> to vector<128x128xbf16>
    %cst_52 = arith.constant dense<0.000000e+00> : vector<64x128xf32>
    %74 = tpu.matmul %71, %73, %cst_52 {dimension_numbers = #tpu.dot_dimension_numbers<[1], [0], [0], [1], [0, 0, 1, 1], [], []>} : vector<64x128xbf16>, vector<128x128xbf16>, vector<64x128xf32> -> vector<64x128xf32>
    %75 = arith.addf %69, %74 : vector<64x128xf32>
    %c0_53 = arith.constant 0 : index
    %c0_54 = arith.constant 0 : index
    %76 = vector.load %arg5[%c0_53, %c0_54] : memref<1x128xf32, #tpu.memory_space<vmem>>, vector<1x128xf32>
    %77 = vector.broadcast %76 : vector<1x128xf32> to vector<64x128xf32>
    %78 = arith.addf %75, %77 : vector<64x128xf32>
    %cst_55 = arith.constant 0.000000e+00 : f32
    %79 = vector.broadcast %cst_55 : f32 to vector<64x128xf32>
    %80 = arith.maximumf %78, %79 : vector<64x128xf32>
    %81 = arith.truncf %80 : vector<64x128xf32> to vector<64x128xbf16>
    %82 = tpu.concatenate %81, %3 in 1 : vector<64x128xbf16>, vector<64x128xbf16> -> vector<64x256xbf16>
    %c0_56 = arith.constant 0 : index
    %c0_57 = arith.constant 0 : index
    %83 = vector.load %arg6[%c0_56, %c0_57] : memref<256x128xbf16, #tpu.memory_space<vmem>>, vector<256x128xbf16>
    %cst_58 = arith.constant dense<0.000000e+00> : vector<64x128xf32>
    %84 = tpu.matmul %82, %83, %cst_58 {dimension_numbers = #tpu.dot_dimension_numbers<[1], [0], [0], [1], [0, 0, 1, 1], [], []>} : vector<64x256xbf16>, vector<256x128xbf16>, vector<64x128xf32> -> vector<64x128xf32>
    %c0_59 = arith.constant 0 : index
    %c0_60 = arith.constant 0 : index
    %85 = vector.load %arg7[%c0_59, %c0_60] : memref<1x128xf32, #tpu.memory_space<vmem>>, vector<1x128xf32>
    %86 = vector.broadcast %85 : vector<1x128xf32> to vector<64x128xf32>
    %87 = arith.addf %84, %86 : vector<64x128xf32>
    %cst_61 = arith.constant 0.000000e+00 : f32
    %88 = vector.broadcast %cst_61 : f32 to vector<64x128xf32>
    %89 = arith.maximumf %87, %88 : vector<64x128xf32>
    %90 = vector.shape_cast %89 : vector<64x128xf32> to vector<1x8x8x128xf32>
    %c0_62 = arith.constant 0 : index
    %c0_63 = arith.constant 0 : index
    %c0_64 = arith.constant 0 : index
    %c0_65 = arith.constant 0 : index
    %91 = vector.load %arg8[%c0_62, %c0_63, %c0_64, %c0_65] : memref<1x8x8x128xf32, #tpu.memory_space<vmem>>, vector<1x8x8x128xf32>
    tpu.vector_store %arg8[%c0_62, %c0_63, %c0_64, %c0_65], %90 {strides = array<i32>} : memref<1x8x8x128xf32, #tpu.memory_space<vmem>>, vector<1x8x8x128xf32>,
    return
  }
  func.func @transform_0(%arg0: i32) -> (i32, i32, i32, i32) {
    %c0_i32 = arith.constant 0 : i32
    %c0_i32_0 = arith.constant 0 : i32
    %c0_i32_1 = arith.constant 0 : i32
    %c0_i32_2 = arith.constant 0 : i32
    return %arg0, %c0_i32, %c0_i32_0, %c0_i32_1 : i32, i32, i32, i32
  }
  func.func @transform_1(%arg0: i32) -> (i32, i32) {
    %c0_i32 = arith.constant 0 : i32
    %c0_i32_0 = arith.constant 0 : i32
    %c0_i32_1 = arith.constant 0 : i32
    return %c0_i32, %c0_i32_0 : i32, i32
  }
  func.func @transform_2(%arg0: i32) -> (i32, i32) {
    %c0_i32 = arith.constant 0 : i32
    %c0_i32_0 = arith.constant 0 : i32
    %c0_i32_1 = arith.constant 0 : i32
    return %c0_i32, %c0_i32_0 : i32, i32
  }
  func.func @transform_3(%arg0: i32) -> (i32, i32, i32) {
    %c0_i32 = arith.constant 0 : i32
    %c0_i32_0 = arith.constant 0 : i32
    %c0_i32_1 = arith.constant 0 : i32
    %c0_i32_2 = arith.constant 0 : i32
    return %c0_i32, %c0_i32_0, %c0_i32_1 : i32, i32, i32
  }
  func.func @transform_4(%arg0: i32) -> (i32, i32) {
    %c0_i32 = arith.constant 0 : i32
    %c0_i32_0 = arith.constant 0 : i32
    %c0_i32_1 = arith.constant 0 : i32
    return %c0_i32, %c0_i32_0 : i32, i32
  }
  func.func @transform_5(%arg0: i32) -> (i32, i32) {
    %c0_i32 = arith.constant 0 : i32
    %c0_i32_0 = arith.constant 0 : i32
    %c0_i32_1 = arith.constant 0 : i32
    return %c0_i32, %c0_i32_0 : i32, i32
  }
  func.func @transform_6(%arg0: i32) -> (i32, i32) {
    %c0_i32 = arith.constant 0 : i32
    %c0_i32_0 = arith.constant 0 : i32
    %c0_i32_1 = arith.constant 0 : i32
    return %c0_i32, %c0_i32_0 : i32, i32
  }
  func.func @transform_7(%arg0: i32) -> (i32, i32, i32, i32) {
    %c0_i32 = arith.constant 0 : i32
    %c0_i32_0 = arith.constant 0 : i32
    %c0_i32_1 = arith.constant 0 : i32
    %c0_i32_2 = arith.constant 0 : i32
    return %arg0, %c0_i32, %c0_i32_0, %c0_i32_1 : i32, i32, i32, i32
  }
}

module attributes {stable_mosaic.version = 11 : i64} {
  func.func @_fused_bottleneck_kernel(%arg0: i32, %arg1: memref<1x8x8x128xf32, #tpu.memory_space<vmem>>, %arg2: memref<128x128xbf16, #tpu.memory_space<vmem>>, %arg3: memref<1x128xf32, #tpu.memory_space<vmem>>, %arg4: memref<9x128x128xbf16, #tpu.memory_space<vmem>>, %arg5: memref<1x128xf32, #tpu.memory_space<vmem>>, %arg6: memref<256x128xbf16, #tpu.memory_space<vmem>>, %arg7: memref<1x128xf32, #tpu.memory_space<vmem>>, %arg8: memref<1x8x8x128xf32, #tpu.memory_space<vmem>>, %arg9: memref<12x12x128xf32, #tpu.memory_space<vmem>>) attributes {dimension_semantics = [#tpu.dimension_semantics<parallel>], iteration_bounds = array<i64: 2>, scalar_prefetch = 0 : i64, scratch_operands = 1 : i64, tpu.core_type = #tpu.core_type<tc>, window_params = [{transform_indices = @transform_0, window_bounds = array<i64: 1, 8, 8, 128>}, {pipeline_mode = #tpu.pipeline_mode<synchronous>, transform_indices = @transform_1, window_bounds = array<i64: 128, 128>}, {pipeline_mode = #tpu.pipeline_mode<synchronous>, transform_indices = @transform_2, window_bounds = array<i64: 1, 128>}, {pipeline_mode = #tpu.pipeline_mode<synchronous>, transform_indices = @transform_3, window_bounds = array<i64: 9, 128, 128>}, {pipeline_mode = #tpu.pipeline_mode<synchronous>, transform_indices = @transform_4, window_bounds = array<i64: 1, 128>}, {pipeline_mode = #tpu.pipeline_mode<synchronous>, transform_indices = @transform_5, window_bounds = array<i64: 256, 128>}, {pipeline_mode = #tpu.pipeline_mode<synchronous>, transform_indices = @transform_6, window_bounds = array<i64: 1, 128>}, {transform_indices = @transform_7, window_bounds = array<i64: 1, 8, 8, 128>}]} {
    %c0 = arith.constant 0 : index
    %c0_0 = arith.constant 0 : index
    %c0_1 = arith.constant 0 : index
    %c0_2 = arith.constant 0 : index
    %0 = vector.load %arg1[%c0, %c0_0, %c0_1, %c0_2] : memref<1x8x8x128xf32, #tpu.memory_space<vmem>>, vector<1x8x8x128xf32>
    %1 = vector.shape_cast %0 : vector<1x8x8x128xf32> to vector<8x8x128xf32>
    %2 = vector.shape_cast %1 : vector<8x8x128xf32> to vector<64x128xf32>
    %3 = arith.truncf %2 : vector<64x128xf32> to vector<64x128xbf16>
    %c0_3 = arith.constant 0 : index
    %c0_4 = arith.constant 0 : index
    %4 = vector.load %arg2[%c0_3, %c0_4] : memref<128x128xbf16, #tpu.memory_space<vmem>>, vector<128x128xbf16>
    %cst = arith.constant dense<0.000000e+00> : vector<64x128xf32>
    %5 = tpu.matmul %3, %4, %cst {dimension_numbers = #tpu.dot_dimension_numbers<[1], [0], [0], [1], [0, 0, 1, 1], [], []>} : vector<64x128xbf16>, vector<128x128xbf16>, vector<64x128xf32> -> vector<64x128xf32>
    %c0_5 = arith.constant 0 : index
    %c0_6 = arith.constant 0 : index
    %6 = vector.load %arg3[%c0_5, %c0_6] : memref<1x128xf32, #tpu.memory_space<vmem>>, vector<1x128xf32>
    %7 = vector.broadcast %6 : vector<1x128xf32> to vector<64x128xf32>
    %8 = arith.addf %5, %7 : vector<64x128xf32>
    %cst_7 = arith.constant 0.000000e+00 : f32
    %9 = vector.broadcast %cst_7 : f32 to vector<64x128xf32>
    %10 = arith.maximumf %8, %9 : vector<64x128xf32>
    %cst_8 = arith.constant 0.000000e+00 : f32
    %11 = vector.broadcast %cst_8 : f32 to vector<12x12x128xf32>
    %c0_9 = arith.constant 0 : index
    %c0_10 = arith.constant 0 : index
    %c0_11 = arith.constant 0 : index
    %12 = vector.load %arg9[%c0_9, %c0_10, %c0_11] : memref<12x12x128xf32, #tpu.memory_space<vmem>>, vector<12x12x128xf32>
    tpu.vector_store %arg9[%c0_9, %c0_10, %c0_11], %11 {strides = array<i32>} : memref<12x12x128xf32, #tpu.memory_space<vmem>>, vector<12x12x128xf32>,
    %13 = vector.shape_cast %10 : vector<64x128xf32> to vector<8x8x128xf32>
    %c2 = arith.constant 2 : index
    %c2_12 = arith.constant 2 : index
    %c0_13 = arith.constant 0 : index
    %14 = vector.load %arg9[%c2, %c2_12, %c0_13] : memref<12x12x128xf32, #tpu.memory_space<vmem>>, vector<8x8x128xf32>
    tpu.vector_store %arg9[%c2, %c2_12, %c0_13], %13 {strides = array<i32>} : memref<12x12x128xf32, #tpu.memory_space<vmem>>, vector<8x8x128xf32>,
    %cst_14 = arith.constant 0.000000e+00 : f32
    %15 = vector.broadcast %cst_14 : f32 to vector<64x128xf32>
    %c0_15 = arith.constant 0 : index
    %c0_16 = arith.constant 0 : index
    %c0_17 = arith.constant 0 : index
    %16 = vector.load %arg9[%c0_15, %c0_16, %c0_17] : memref<12x12x128xf32, #tpu.memory_space<vmem>>, vector<8x12x128xf32>
    %17 = arith.truncf %16 : vector<8x12x128xf32> to vector<8x12x128xbf16>
    %18 = vector.extract_strided_slice %17 {offsets = [0, 0, 0], sizes = [8, 8, 128], strides = [1, 1, 1]} : vector<8x12x128xbf16> to vector<8x8x128xbf16>
    %19 = vector.shape_cast %18 : vector<8x8x128xbf16> to vector<64x128xbf16>
    %c0_18 = arith.constant 0 : index
    %c0_19 = arith.constant 0 : index
    %c0_20 = arith.constant 0 : index
    %20 = vector.load %arg4[%c0_18, %c0_19, %c0_20] : memref<9x128x128xbf16, #tpu.memory_space<vmem>>, vector<1x128x128xbf16>
    %21 = vector.shape_cast %20 : vector<1x128x128xbf16> to vector<128x128xbf16>
    %cst_21 = arith.constant dense<0.000000e+00> : vector<64x128xf32>
    %22 = tpu.matmul %19, %21, %cst_21 {dimension_numbers = #tpu.dot_dimension_numbers<[1], [0], [0], [1], [0, 0, 1, 1], [], []>} : vector<64x128xbf16>, vector<128x128xbf16>, vector<64x128xf32> -> vector<64x128xf32>
    %23 = arith.addf %15, %22 : vector<64x128xf32>
    %24 = vector.extract_strided_slice %17 {offsets = [0, 2, 0], sizes = [8, 8, 128], strides = [1, 1, 1]} : vector<8x12x128xbf16> to vector<8x8x128xbf16>
    %25 = vector.shape_cast %24 : vector<8x8x128xbf16> to vector<64x128xbf16>
    %c1 = arith.constant 1 : index
    %c0_22 = arith.constant 0 : index
    %c0_23 = arith.constant 0 : index
    %26 = vector.load %arg4[%c1, %c0_22, %c0_23] : memref<9x128x128xbf16, #tpu.memory_space<vmem>>, vector<1x128x128xbf16>
    %27 = vector.shape_cast %26 : vector<1x128x128xbf16> to vector<128x128xbf16>
    %cst_24 = arith.constant dense<0.000000e+00> : vector<64x128xf32>
    %28 = tpu.matmul %25, %27, %cst_24 {dimension_numbers = #tpu.dot_dimension_numbers<[1], [0], [0], [1], [0, 0, 1, 1], [], []>} : vector<64x128xbf16>, vector<128x128xbf16>, vector<64x128xf32> -> vector<64x128xf32>
    %29 = arith.addf %23, %28 : vector<64x128xf32>
    %30 = vector.extract_strided_slice %17 {offsets = [0, 4, 0], sizes = [8, 8, 128], strides = [1, 1, 1]} : vector<8x12x128xbf16> to vector<8x8x128xbf16>
    %31 = vector.shape_cast %30 : vector<8x8x128xbf16> to vector<64x128xbf16>
    %c2_25 = arith.constant 2 : index
    %c0_26 = arith.constant 0 : index
    %c0_27 = arith.constant 0 : index
    %32 = vector.load %arg4[%c2_25, %c0_26, %c0_27] : memref<9x128x128xbf16, #tpu.memory_space<vmem>>, vector<1x128x128xbf16>
    %33 = vector.shape_cast %32 : vector<1x128x128xbf16> to vector<128x128xbf16>
    %cst_28 = arith.constant dense<0.000000e+00> : vector<64x128xf32>
    %34 = tpu.matmul %31, %33, %cst_28 {dimension_numbers = #tpu.dot_dimension_numbers<[1], [0], [0], [1], [0, 0, 1, 1], [], []>} : vector<64x128xbf16>, vector<128x128xbf16>, vector<64x128xf32> -> vector<64x128xf32>
    %35 = arith.addf %29, %34 : vector<64x128xf32>
    %c2_29 = arith.constant 2 : index
    %c0_30 = arith.constant 0 : index
    %c0_31 = arith.constant 0 : index
    %36 = vector.load %arg9[%c2_29, %c0_30, %c0_31] : memref<12x12x128xf32, #tpu.memory_space<vmem>>, vector<8x12x128xf32>
    %37 = arith.truncf %36 : vector<8x12x128xf32> to vector<8x12x128xbf16>
    %38 = vector.extract_strided_slice %37 {offsets = [0, 0, 0], sizes = [8, 8, 128], strides = [1, 1, 1]} : vector<8x12x128xbf16> to vector<8x8x128xbf16>
    %39 = vector.shape_cast %38 : vector<8x8x128xbf16> to vector<64x128xbf16>
    %c3 = arith.constant 3 : index
    %c0_32 = arith.constant 0 : index
    %c0_33 = arith.constant 0 : index
    %40 = vector.load %arg4[%c3, %c0_32, %c0_33] : memref<9x128x128xbf16, #tpu.memory_space<vmem>>, vector<1x128x128xbf16>
    %41 = vector.shape_cast %40 : vector<1x128x128xbf16> to vector<128x128xbf16>
    %cst_34 = arith.constant dense<0.000000e+00> : vector<64x128xf32>
    %42 = tpu.matmul %39, %41, %cst_34 {dimension_numbers = #tpu.dot_dimension_numbers<[1], [0], [0], [1], [0, 0, 1, 1], [], []>} : vector<64x128xbf16>, vector<128x128xbf16>, vector<64x128xf32> -> vector<64x128xf32>
    %43 = arith.addf %35, %42 : vector<64x128xf32>
    %44 = vector.extract_strided_slice %37 {offsets = [0, 2, 0], sizes = [8, 8, 128], strides = [1, 1, 1]} : vector<8x12x128xbf16> to vector<8x8x128xbf16>
    %45 = vector.shape_cast %44 : vector<8x8x128xbf16> to vector<64x128xbf16>
    %c4 = arith.constant 4 : index
    %c0_35 = arith.constant 0 : index
    %c0_36 = arith.constant 0 : index
    %46 = vector.load %arg4[%c4, %c0_35, %c0_36] : memref<9x128x128xbf16, #tpu.memory_space<vmem>>, vector<1x128x128xbf16>
    %47 = vector.shape_cast %46 : vector<1x128x128xbf16> to vector<128x128xbf16>
    %cst_37 = arith.constant dense<0.000000e+00> : vector<64x128xf32>
    %48 = tpu.matmul %45, %47, %cst_37 {dimension_numbers = #tpu.dot_dimension_numbers<[1], [0], [0], [1], [0, 0, 1, 1], [], []>} : vector<64x128xbf16>, vector<128x128xbf16>, vector<64x128xf32> -> vector<64x128xf32>
    %49 = arith.addf %43, %48 : vector<64x128xf32>
    %50 = vector.extract_strided_slice %37 {offsets = [0, 4, 0], sizes = [8, 8, 128], strides = [1, 1, 1]} : vector<8x12x128xbf16> to vector<8x8x128xbf16>
    %51 = vector.shape_cast %50 : vector<8x8x128xbf16> to vector<64x128xbf16>
    %c5 = arith.constant 5 : index
    %c0_38 = arith.constant 0 : index
    %c0_39 = arith.constant 0 : index
    %52 = vector.load %arg4[%c5, %c0_38, %c0_39] : memref<9x128x128xbf16, #tpu.memory_space<vmem>>, vector<1x128x128xbf16>
    %53 = vector.shape_cast %52 : vector<1x128x128xbf16> to vector<128x128xbf16>
    %cst_40 = arith.constant dense<0.000000e+00> : vector<64x128xf32>
    %54 = tpu.matmul %51, %53, %cst_40 {dimension_numbers = #tpu.dot_dimension_numbers<[1], [0], [0], [1], [0, 0, 1, 1], [], []>} : vector<64x128xbf16>, vector<128x128xbf16>, vector<64x128xf32> -> vector<64x128xf32>
    %55 = arith.addf %49, %54 : vector<64x128xf32>
    %c4_41 = arith.constant 4 : index
    %c0_42 = arith.constant 0 : index
    %c0_43 = arith.constant 0 : index
    %56 = vector.load %arg9[%c4_41, %c0_42, %c0_43] : memref<12x12x128xf32, #tpu.memory_space<vmem>>, vector<8x12x128xf32>
    %57 = arith.truncf %56 : vector<8x12x128xf32> to vector<8x12x128xbf16>
    %58 = vector.extract_strided_slice %57 {offsets = [0, 0, 0], sizes = [8, 8, 128], strides = [1, 1, 1]} : vector<8x12x128xbf16> to vector<8x8x128xbf16>
    %59 = vector.shape_cast %58 : vector<8x8x128xbf16> to vector<64x128xbf16>
    %c6 = arith.constant 6 : index
    %c0_44 = arith.constant 0 : index
    %c0_45 = arith.constant 0 : index
    %60 = vector.load %arg4[%c6, %c0_44, %c0_45] : memref<9x128x128xbf16, #tpu.memory_space<vmem>>, vector<1x128x128xbf16>
    %61 = vector.shape_cast %60 : vector<1x128x128xbf16> to vector<128x128xbf16>
    %cst_46 = arith.constant dense<0.000000e+00> : vector<64x128xf32>
    %62 = tpu.matmul %59, %61, %cst_46 {dimension_numbers = #tpu.dot_dimension_numbers<[1], [0], [0], [1], [0, 0, 1, 1], [], []>} : vector<64x128xbf16>, vector<128x128xbf16>, vector<64x128xf32> -> vector<64x128xf32>
    %63 = arith.addf %55, %62 : vector<64x128xf32>
    %64 = vector.extract_strided_slice %57 {offsets = [0, 2, 0], sizes = [8, 8, 128], strides = [1, 1, 1]} : vector<8x12x128xbf16> to vector<8x8x128xbf16>
    %65 = vector.shape_cast %64 : vector<8x8x128xbf16> to vector<64x128xbf16>
    %c7 = arith.constant 7 : index
    %c0_47 = arith.constant 0 : index
    %c0_48 = arith.constant 0 : index
    %66 = vector.load %arg4[%c7, %c0_47, %c0_48] : memref<9x128x128xbf16, #tpu.memory_space<vmem>>, vector<1x128x128xbf16>
    %67 = vector.shape_cast %66 : vector<1x128x128xbf16> to vector<128x128xbf16>
    %cst_49 = arith.constant dense<0.000000e+00> : vector<64x128xf32>
    %68 = tpu.matmul %65, %67, %cst_49 {dimension_numbers = #tpu.dot_dimension_numbers<[1], [0], [0], [1], [0, 0, 1, 1], [], []>} : vector<64x128xbf16>, vector<128x128xbf16>, vector<64x128xf32> -> vector<64x128xf32>
    %69 = arith.addf %63, %68 : vector<64x128xf32>
    %70 = vector.extract_strided_slice %57 {offsets = [0, 4, 0], sizes = [8, 8, 128], strides = [1, 1, 1]} : vector<8x12x128xbf16> to vector<8x8x128xbf16>
    %71 = vector.shape_cast %70 : vector<8x8x128xbf16> to vector<64x128xbf16>
    %c8 = arith.constant 8 : index
    %c0_50 = arith.constant 0 : index
    %c0_51 = arith.constant 0 : index
    %72 = vector.load %arg4[%c8, %c0_50, %c0_51] : memref<9x128x128xbf16, #tpu.memory_space<vmem>>, vector<1x128x128xbf16>
    %73 = vector.shape_cast %72 : vector<1x128x128xbf16> to vector<128x128xbf16>
    %cst_52 = arith.constant dense<0.000000e+00> : vector<64x128xf32>
    %74 = tpu.matmul %71, %73, %cst_52 {dimension_numbers = #tpu.dot_dimension_numbers<[1], [0], [0], [1], [0, 0, 1, 1], [], []>} : vector<64x128xbf16>, vector<128x128xbf16>, vector<64x128xf32> -> vector<64x128xf32>
    %75 = arith.addf %69, %74 : vector<64x128xf32>
    %c0_53 = arith.constant 0 : index
    %c0_54 = arith.constant 0 : index
    %76 = vector.load %arg5[%c0_53, %c0_54] : memref<1x128xf32, #tpu.memory_space<vmem>>, vector<1x128xf32>
    %77 = vector.broadcast %76 : vector<1x128xf32> to vector<64x128xf32>
    %78 = arith.addf %75, %77 : vector<64x128xf32>
    %cst_55 = arith.constant 0.000000e+00 : f32
    %79 = vector.broadcast %cst_55 : f32 to vector<64x128xf32>
    %80 = arith.maximumf %78, %79 : vector<64x128xf32>
    %81 = arith.truncf %80 : vector<64x128xf32> to vector<64x128xbf16>
    %82 = tpu.concatenate %81, %3 in 1 : vector<64x128xbf16>, vector<64x128xbf16> -> vector<64x256xbf16>
    %c0_56 = arith.constant 0 : index
    %c0_57 = arith.constant 0 : index
    %83 = vector.load %arg6[%c0_56, %c0_57] : memref<256x128xbf16, #tpu.memory_space<vmem>>, vector<256x128xbf16>
    %cst_58 = arith.constant dense<0.000000e+00> : vector<64x128xf32>
    %84 = tpu.matmul %82, %83, %cst_58 {dimension_numbers = #tpu.dot_dimension_numbers<[1], [0], [0], [1], [0, 0, 1, 1], [], []>} : vector<64x256xbf16>, vector<256x128xbf16>, vector<64x128xf32> -> vector<64x128xf32>
    %c0_59 = arith.constant 0 : index
    %c0_60 = arith.constant 0 : index
    %85 = vector.load %arg7[%c0_59, %c0_60] : memref<1x128xf32, #tpu.memory_space<vmem>>, vector<1x128xf32>
    %86 = vector.broadcast %85 : vector<1x128xf32> to vector<64x128xf32>
    %87 = arith.addf %84, %86 : vector<64x128xf32>
    %cst_61 = arith.constant 0.000000e+00 : f32
    %88 = vector.broadcast %cst_61 : f32 to vector<64x128xf32>
    %89 = arith.maximumf %87, %88 : vector<64x128xf32>
    %90 = vector.shape_cast %89 : vector<64x128xf32> to vector<1x8x8x128xf32>
    %c0_62 = arith.constant 0 : index
    %c0_63 = arith.constant 0 : index
    %c0_64 = arith.constant 0 : index
    %c0_65 = arith.constant 0 : index
    %91 = vector.load %arg8[%c0_62, %c0_63, %c0_64, %c0_65] : memref<1x8x8x128xf32, #tpu.memory_space<vmem>>, vector<1x8x8x128xf32>
    tpu.vector_store %arg8[%c0_62, %c0_63, %c0_64, %c0_65], %90 {strides = array<i32>} : memref<1x8x8x128xf32, #tpu.memory_space<vmem>>, vector<1x8x8x128xf32>,
    return
  }
  func.func @transform_0(%arg0: i32) -> (i32, i32, i32, i32) {
    %c0_i32 = arith.constant 0 : i32
    %c0_i32_0 = arith.constant 0 : i32
    %c0_i32_1 = arith.constant 0 : i32
    %c0_i32_2 = arith.constant 0 : i32
    return %arg0, %c0_i32, %c0_i32_0, %c0_i32_1 : i32, i32, i32, i32
  }
  func.func @transform_1(%arg0: i32) -> (i32, i32) {
    %c0_i32 = arith.constant 0 : i32
    %c0_i32_0 = arith.constant 0 : i32
    %c0_i32_1 = arith.constant 0 : i32
    return %c0_i32, %c0_i32_0 : i32, i32
  }
  func.func @transform_2(%arg0: i32) -> (i32, i32) {
    %c0_i32 = arith.constant 0 : i32
    %c0_i32_0 = arith.constant 0 : i32
    %c0_i32_1 = arith.constant 0 : i32
    return %c0_i32, %c0_i32_0 : i32, i32
  }
  func.func @transform_3(%arg0: i32) -> (i32, i32, i32) {
    %c0_i32 = arith.constant 0 : i32
    %c0_i32_0 = arith.constant 0 : i32
    %c0_i32_1 = arith.constant 0 : i32
    %c0_i32_2 = arith.constant 0 : i32
    return %c0_i32, %c0_i32_0, %c0_i32_1 : i32, i32, i32
  }
  func.func @transform_4(%arg0: i32) -> (i32, i32) {
    %c0_i32 = arith.constant 0 : i32
    %c0_i32_0 = arith.constant 0 : i32
    %c0_i32_1 = arith.constant 0 : i32
    return %c0_i32, %c0_i32_0 : i32, i32
  }
  func.func @transform_5(%arg0: i32) -> (i32, i32) {
    %c0_i32 = arith.constant 0 : i32
    %c0_i32_0 = arith.constant 0 : i32
    %c0_i32_1 = arith.constant 0 : i32
    return %c0_i32, %c0_i32_0 : i32, i32
  }
  func.func @transform_6(%arg0: i32) -> (i32, i32) {
    %c0_i32 = arith.constant 0 : i32
    %c0_i32_0 = arith.constant 0 : i32
    %c0_i32_1 = arith.constant 0 : i32
    return %c0_i32, %c0_i32_0 : i32, i32
  }
  func.func @transform_7(%arg0: i32) -> (i32, i32, i32, i32) {
    %c0_i32 = arith.constant 0 : i32
    %c0_i32_0 = arith.constant 0 : i32
    %c0_i32_1 = arith.constant 0 : i32
    %c0_i32_2 = arith.constant 0 : i32
    return %arg0, %c0_i32, %c0_i32_0, %c0_i32_1 : i32, i32, i32, i32
  }
}

</mosaic_0001>

<llo_original>
// kernel: tpu_custom_call.1
$region0: #{tpu_custom_call.1}
  #allocation0 [shape = 'u32[]', space=smem, size = 0x4, offset = 0x4, fixed_abs, tag = 'smem constant byte address 0x4 - core index']
  #allocation1 [shape = 'u32[144,128]{1,0:T(1,128)}', space=vmem, size = 0x12000, scoped, tag = 'internal scratch']
  #allocation2 [shape = 'f32[12,12,128]{2,1,0:T(8,128)}', space=vmem, size = 0x18000, scoped, tag = 'scratch operand']
  %s0 = inlined_call_operand.hbm [shape: f32[2,8,8,128], index: 0, kind: input, shape index: {}]
  %s1 = inlined_call_operand.hbm [shape: bf16[128,128], index: 1, kind: input, shape index: {}]
  %s2 = inlined_call_operand.vmem [shape: f32[1,128], index: 2, kind: input, shape index: {}]
  %s3 = inlined_call_operand.hbm [shape: bf16[9,128,128], index: 3, kind: input, shape index: {}]
  %s4 = inlined_call_operand.vmem [shape: f32[1,128], index: 4, kind: input, shape index: {}]
  %s5 = inlined_call_operand.hbm [shape: bf16[256,128], index: 5, kind: input, shape index: {}]
  %s6 = inlined_call_operand.vmem [shape: f32[1,128], index: 6, kind: input, shape index: {}]
  %s7 = inlined_call_operand.hbm [shape: f32[2,8,8,128], index: 7, kind: output, shape index: {}]
  %s8 = sld [smem:[#allocation0]]
  $region77: #{tpu_custom_call.1} parent=0
    _
  %s10 = ssub.s32 1, %s8
  %s11 = scalar_select 0, %s10, %s8
  $region1: #{tpu_custom_call.1} parent=0
    #allocation3 [shape = 'u8[65536]{0}', space=vmem, size = 0x10000, scoped, tag = 'input window, operand 0']
    #allocation4 [shape = 's32[2]{0}', space=sflag, size = 0x8, scoped, tag = 'scoped memory for tpu_custom_call.1']
    #allocation5 [shape = 's32[2]{0}', space=sflag, size = 0x8, scoped, tag = 'scoped memory for tpu_custom_call.1']
    #allocation6 [shape = 'u8[32768]{0}', space=vmem, size = 0x8000, scoped, tag = 'input window, operand 1, single buffered']
    #allocation7 [shape = 's32[1]{0}', space=sflag, size = 0x4, scoped, tag = 'scoped memory for tpu_custom_call.1']
    #allocation8 [shape = 'u8[294912]{0}', space=vmem, size = 0x48000, scoped, tag = 'input window, operand 3, single buffered']
    #allocation9 [shape = 'u8[65536]{0}', space=vmem, size = 0x10000, scoped, tag = 'input window, operand 5, single buffered']
    #allocation10 [shape = 's32[1]{0}', space=sflag, size = 0x4, scoped, tag = 'scoped memory for tpu_custom_call.1']
    #allocation11 [shape = 'u8[65536]{0}', space=vmem, size = 0x10000, scoped, tag = 'output window, operand 0']
    %12 = vsyncpa [#allocation4], 0
    %s13 = scalar_lea.sflag [#allocation4], 1
    %14 = vsyncpa %s13, 0
    %15 = vsyncpa [#allocation7], 0
    %16 = vsyncpa [#allocation10], 0
    %17 = vsyncpa [#allocation5], 0
    %s18 = scalar_lea.sflag [#allocation5], 1
    %19 = vsyncpa %s18, 0
    loop: start=0, step=1, limit=4
    $region2: #{tpu_custom_call.1} parent=1 // loop_pre_header
      _
    $region3: #{tpu_custom_call.1} parent=1 // loop_header
      %s21 = sphi 0, %s25
      %p22 = scmp.ge.s32.totalorder %s21, 4
      %s31 = sphi 0, %s33
      %s34 = sphi 0, %s31
      %s35 = sphi 0, %s34
      %s51 = sphi 0, %s35
      %s55 = sphi 0, %s55
      %s57 = sphi 0, %s55
      %s58 = sphi 0, %s57
      %s72 = sphi 0, %s58
      %s76 = sphi 0, %s76
      %s78 = sphi 0, %s76
      %s79 = sphi 0, %s78
      %s93 = sphi 0, %s79
      %s97 = sphi 0, %s97
      %s99 = sphi 0, %s97
      %s100 = sphi 0, %s99
      %s114 = sphi 0, %s100
      %s118 = sphi 0, %s118
      %s120 = sphi 0, %s118
      %s121 = sphi 0, %s120
      %s135 = sphi 0, %s121
      %s139 = sphi 0, %s139
      %s141 = sphi 0, %s139
      %s142 = sphi 0, %s141
      %s156 = sphi 0, %s142
      %s160 = sphi 0, %s160
      %s162 = sphi 0, %s160
      %s163 = sphi 0, %s162
      %s177 = sphi 0, %s163
      %s183 = sphi 0, %s185
      %s186 = sphi 0, %s183
      %s187 = sphi 0, %s186
      %s203 = sphi 0, %s187
    $region4: #{tpu_custom_call.1} parent=1 // loop_header_branch
      %24 = sbr.rel (%p22) target = $region8
    $region5: #{tpu_custom_call.1} parent=1 // loop_body
      %s26 = ssub.s32 %s21, 1
      %s27 = ssub.s32 %s21, 2
      %s28 = sadd.s32 %s21, 1
      %s29 = ssub.s32 %s21, %s28
      %p30 = scmp.eq.s32.totalorder %s29, 0
      %s32 = sadd.s32 %s31, 1
      %s33 = scalar_select %p30, %s31, %s32
      %p36 = pneg %p30
      %p37 = scmp.eq.s32.totalorder %s21, 1
      %p38 = por %p36, %p37
      %p39 = scmp.ne.s32.totalorder %s31, %s34
      %p40 = scmp.eq.s32.totalorder %s21, 0
      %p41 = por %p39, %p40
      %p42 = scmp.ne.s32.totalorder %s31, %s34
      %p43 = scmp.eq.s32.totalorder %s26, 1
      %p44 = por %p42, %p43
      %p45 = scmp.ne.s32.totalorder %s34, %s35
      %p46 = scmp.eq.s32.totalorder %s26, 0
      %p47 = por %p45, %p46
      %p48 = scmp.ne.s32.totalorder %s34, %s35
      %p49 = scmp.eq.s32.totalorder %s27, 1
      %p50 = por %p48, %p49
      %p52 = scmp.ne.s32.totalorder %s35, %s51
      %p53 = scmp.eq.s32.totalorder %s27, 0
      %p54 = por %p52, %p53
      %s56 = sadd.s32 %s55, 1
      %p59 = scmp.eq.s32.totalorder %s21, 1
      %p60 = scmp.ne.s32.totalorder %s55, %s57
      %p61 = scmp.eq.s32.totalorder %s21, 0
      %p62 = por %p60, %p61
      %p63 = scmp.ne.s32.totalorder %s55, %s57
      %p64 = scmp.eq.s32.totalorder %s26, 1
      %p65 = por %p63, %p64
      %p66 = scmp.ne.s32.totalorder %s57, %s58
      %p67 = scmp.eq.s32.totalorder %s26, 0
      %p68 = por %p66, %p67
      %p69 = scmp.ne.s32.totalorder %s57, %s58
      %p70 = scmp.eq.s32.totalorder %s27, 1
      %p71 = por %p69, %p70
      %p73 = scmp.ne.s32.totalorder %s58, %s72
      %p74 = scmp.eq.s32.totalorder %s27, 0
      %p75 = por %p73, %p74
      %s77 = sadd.s32 %s76, 1
      %p80 = scmp.eq.s32.totalorder %s21, 1
      %p81 = scmp.ne.s32.totalorder %s76, %s78
      %p82 = scmp.eq.s32.totalorder %s21, 0
      %p83 = por %p81, %p82
      %p84 = scmp.ne.s32.totalorder %s76, %s78
      %p85 = scmp.eq.s32.totalorder %s26, 1
      %p86 = por %p84, %p85
      %p87 = scmp.ne.s32.totalorder %s78, %s79
      %p88 = scmp.eq.s32.totalorder %s26, 0
      %p89 = por %p87, %p88
      %p90 = scmp.ne.s32.totalorder %s78, %s79
      %p91 = scmp.eq.s32.totalorder %s27, 1
      %p92 = por %p90, %p91
      %p94 = scmp.ne.s32.totalorder %s79, %s93
      %p95 = scmp.eq.s32.totalorder %s27, 0
      %p96 = por %p94, %p95
      %s98 = sadd.s32 %s97, 1
      %p101 = scmp.eq.s32.totalorder %s21, 1
      %p102 = scmp.ne.s32.totalorder %s97, %s99
      %p103 = scmp.eq.s32.totalorder %s21, 0
      %p104 = por %p102, %p103
      %p105 = scmp.ne.s32.totalorder %s97, %s99
      %p106 = scmp.eq.s32.totalorder %s26, 1
      %p107 = por %p105, %p106
      %p108 = scmp.ne.s32.totalorder %s99, %s100
      %p109 = scmp.eq.s32.totalorder %s26, 0
      %p110 = por %p108, %p109
      %p111 = scmp.ne.s32.totalorder %s99, %s100
      %p112 = scmp.eq.s32.totalorder %s27, 1
      %p113 = por %p111, %p112
      %p115 = scmp.ne.s32.totalorder %s100, %s114
      %p116 = scmp.eq.s32.totalorder %s27, 0
      %p117 = por %p115, %p116
      %s119 = sadd.s32 %s118, 1
      %p122 = scmp.eq.s32.totalorder %s21, 1
      %p123 = scmp.ne.s32.totalorder %s118, %s120
      %p124 = scmp.eq.s32.totalorder %s21, 0
      %p125 = por %p123, %p124
      %p126 = scmp.ne.s32.totalorder %s118, %s120
      %p127 = scmp.eq.s32.totalorder %s26, 1
      %p128 = por %p126, %p127
      %p129 = scmp.ne.s32.totalorder %s120, %s121
      %p130 = scmp.eq.s32.totalorder %s26, 0
      %p131 = por %p129, %p130
      %p132 = scmp.ne.s32.totalorder %s120, %s121
      %p133 = scmp.eq.s32.totalorder %s27, 1
      %p134 = por %p132, %p133
      %p136 = scmp.ne.s32.totalorder %s121, %s135
      %p137 = scmp.eq.s32.totalorder %s27, 0
      %p138 = por %p136, %p137
      %s140 = sadd.s32 %s139, 1
      %p143 = scmp.eq.s32.totalorder %s21, 1
      %p144 = scmp.ne.s32.totalorder %s139, %s141
      %p145 = scmp.eq.s32.totalorder %s21, 0
      %p146 = por %p144, %p145
      %p147 = scmp.ne.s32.totalorder %s139, %s141
      %p148 = scmp.eq.s32.totalorder %s26, 1
      %p149 = por %p147, %p148
      %p150 = scmp.ne.s32.totalorder %s141, %s142
      %p151 = scmp.eq.s32.totalorder %s26, 0
      %p152 = por %p150, %p151
      %p153 = scmp.ne.s32.totalorder %s141, %s142
      %p154 = scmp.eq.s32.totalorder %s27, 1
      %p155 = por %p153, %p154
      %p157 = scmp.ne.s32.totalorder %s142, %s156
      %p158 = scmp.eq.s32.totalorder %s27, 0
      %p159 = por %p157, %p158
      %s161 = sadd.s32 %s160, 1
      %p164 = scmp.eq.s32.totalorder %s21, 1
      %p165 = scmp.ne.s32.totalorder %s160, %s162
      %p166 = scmp.eq.s32.totalorder %s21, 0
      %p167 = por %p165, %p166
      %p168 = scmp.ne.s32.totalorder %s160, %s162
      %p169 = scmp.eq.s32.totalorder %s26, 1
      %p170 = por %p168, %p169
      %p171 = scmp.ne.s32.totalorder %s162, %s163
      %p172 = scmp.eq.s32.totalorder %s26, 0
      %p173 = por %p171, %p172
      %p174 = scmp.ne.s32.totalorder %s162, %s163
      %p175 = scmp.eq.s32.totalorder %s27, 1
      %p176 = por %p174, %p175
      %p178 = scmp.ne.s32.totalorder %s163, %s177
      %p179 = scmp.eq.s32.totalorder %s27, 0
      %p180 = por %p178, %p179
      %s181 = ssub.s32 %s21, %s28
      %p182 = scmp.eq.s32.totalorder %s181, 0
      %s184 = sadd.s32 %s183, 1
      %s185 = scalar_select %p182, %s183, %s184
      %p188 = pneg %p182
      %p189 = scmp.eq.s32.totalorder %s21, 1
      %p190 = por %p188, %p189
      %p191 = scmp.ne.s32.totalorder %s183, %s186
      %p192 = scmp.eq.s32.totalorder %s21, 0
      %p193 = por %p191, %p192
      %p194 = scmp.ne.s32.totalorder %s183, %s186
      %p195 = scmp.eq.s32.totalorder %s26, 1
      %p196 = por %p194, %p195
      %p197 = scmp.ne.s32.totalorder %s186, %s187
      %p198 = scmp.eq.s32.totalorder %s26, 0
      %p199 = por %p197, %p198
      %p200 = scmp.ne.s32.totalorder %s186, %s187
      %p201 = scmp.eq.s32.totalorder %s27, 1
      %p202 = por %p200, %p201
      %p204 = scmp.ne.s32.totalorder %s187, %s203
      %p205 = scmp.eq.s32.totalorder %s27, 0
      %p206 = por %p204, %p205
      %p207 = scmp.le.s32.totalorder 1, %s21
      %p208 = scmp.lt.s32.totalorder %s21, 3
      %p209 = pnand %p207, %p208
      %p210 = pneg %p209
      // Predicated region
      $region9: #{tpu_custom_call.1} parent=5 // pred_check
        _
      $region10: #{tpu_custom_call.1} parent=5 // pred_check_branch
        %212 = sbr.rel (%p209) target = $region12
      $region11: #{tpu_custom_call.1} parent=5 // pred_region
        %s213 = ssub.s32 %s21, 1
        // Predicated region
        $region13: #{tpu_custom_call.1} parent=11 // pred_check
          %p214 = pneg %p68
        $region14: #{tpu_custom_call.1} parent=11 // pred_check_branch
          %216 = sbr.rel (%p214) target = $region16
        $region15: #{tpu_custom_call.1} parent=11 // pred_region
          %s218 = ssub.s32 1024, 1024
          %219 = vsyncadd [#allocation7], %s218
          %s220 = sshll.u32 [#allocation6], 4
          %s221 = int_to_ptr.vmem [resolvable:$true] %s220
          %226 = dma.hbm_to_vmem [thread:$0]  %s1, 1024, %s221, [#allocation7], 64, 64, 4
        $region16: #{tpu_custom_call.1} parent=11 // pred_fallthru
          _
        // Predicated region
        $region17: #{tpu_custom_call.1} parent=11 // pred_check
          %p227 = pneg %p89
        $region18: #{tpu_custom_call.1} parent=11 // pred_check_branch
          %229 = sbr.rel (%p227) target = $region20
        $region19: #{tpu_custom_call.1} parent=11 // pred_region
          _
        $region20: #{tpu_custom_call.1} parent=11 // pred_fallthru
          _
        // Predicated region
        $region21: #{tpu_custom_call.1} parent=11 // pred_check
          %p230 = pneg %p110
        $region22: #{tpu_custom_call.1} parent=11 // pred_check_branch
          %232 = sbr.rel (%p230) target = $region24
        $region23: #{tpu_custom_call.1} parent=11 // pred_region
          %s234 = ssub.s32 9216, 9216
          %235 = vsyncadd [#allocation7], %s234
          %s236 = sshll.u32 [#allocation8], 4
          %s237 = int_to_ptr.vmem [resolvable:$true] %s236
          %242 = dma.hbm_to_vmem [thread:$0]  %s3, 9216, %s237, [#allocation7], 64, 64, 4
        $region24: #{tpu_custom_call.1} parent=11 // pred_fallthru
          _
        // Predicated region
        $region25: #{tpu_custom_call.1} parent=11 // pred_check
          %p243 = pneg %p131
        $region26: #{tpu_custom_call.1} parent=11 // pred_check_branch
          %245 = sbr.rel (%p243) target = $region28
        $region27: #{tpu_custom_call.1} parent=11 // pred_region
          _
        $region28: #{tpu_custom_call.1} parent=11 // pred_fallthru
          _
        // Predicated region
        $region29: #{tpu_custom_call.1} parent=11 // pred_check
          %p246 = pneg %p152
        $region30: #{tpu_custom_call.1} parent=11 // pred_check_branch
          %248 = sbr.rel (%p246) target = $region32
        $region31: #{tpu_custom_call.1} parent=11 // pred_region
          %s250 = ssub.s32 2048, 2048
          %251 = vsyncadd [#allocation10], %s250
          %s252 = sshll.u32 [#allocation9], 4
          %s253 = int_to_ptr.vmem [resolvable:$true] %s252
          %258 = dma.hbm_to_vmem [thread:$0]  %s5, 2048, %s253, [#allocation10], 64, 64, 4
        $region32: #{tpu_custom_call.1} parent=11 // pred_fallthru
          _
        // Predicated region
        $region33: #{tpu_custom_call.1} parent=11 // pred_check
          %p259 = pneg %p173
        $region34: #{tpu_custom_call.1} parent=11 // pred_check_branch
          %261 = sbr.rel (%p259) target = $region36
        $region35: #{tpu_custom_call.1} parent=11 // pred_region
          _
        $region36: #{tpu_custom_call.1} parent=11 // pred_fallthru
          _
      $region12: #{tpu_custom_call.1} parent=5 // pred_fallthru
        _
      %p262 = scmp.lt.s32.totalorder %s21, 2
      // Predicated region
      $region37: #{tpu_custom_call.1} parent=5 // pred_check
        %p263 = pneg %p262
      $region38: #{tpu_custom_call.1} parent=5 // pred_check_branch
        %265 = sbr.rel (%p263) target = $region40
      $region39: #{tpu_custom_call.1} parent=5 // pred_region
        // Predicated region
        $region41: #{tpu_custom_call.1} parent=39 // pred_check
          %p266 = pneg %p41
        $region42: #{tpu_custom_call.1} parent=39 // pred_check_branch
          %268 = sbr.rel (%p266) target = $region44
        $region43: #{tpu_custom_call.1} parent=39 // pred_region
          %s269 = sand.u32 %s31, 1
          %s270 = scalar_lea.sflag [#allocation4], %s269
          %s271 = sand.u32 %s31, 1
          %s272 = smul.addr %s271, 64
          %s273 = scalar_lea.vmem [#allocation3], %s272
          %s275 = ssub.s32 1024, 1024
          %276 = vsyncadd %s270, %s275
          %s277 = smul.addr %s21, 8
          %s278 = smul.addr %s277, 128
          %s279 = scalar_lea.hbm %s0, %s278
          %s280 = sshll.u32 %s273, 4
          %s281 = int_to_ptr.vmem [resolvable:$true] %s280
          %286 = dma.hbm_to_vmem [thread:$0]  %s279, 1024, %s281, %s270, 128, 128, 8
        $region44: #{tpu_custom_call.1} parent=39 // pred_fallthru
          _
      $region40: #{tpu_custom_call.1} parent=5 // pred_fallthru
        _
      %p287 = scmp.le.s32.totalorder 1, %s21
      %p288 = scmp.lt.s32.totalorder %s21, 3
      %p289 = pnand %p287, %p288
      %p290 = pneg %p289
      // Predicated region
      $region45: #{tpu_custom_call.1} parent=5 // pred_check
        _
      $region46: #{tpu_custom_call.1} parent=5 // pred_check_branch
        %292 = sbr.rel (%p289) target = $region48
      $region47: #{tpu_custom_call.1} parent=5 // pred_region
        %s293 = ssub.s32 %s21, 1
        %s294 = sand.u32 %s34, 1
        %s295 = scalar_lea.sflag [#allocation4], %s294
        %s296 = sand.u32 %s34, 1
        %s297 = smul.addr %s296, 64
        %s298 = scalar_lea.vmem [#allocation3], %s297
        // Predicated region
        $region49: #{tpu_custom_call.1} parent=47 // pred_check
          %p299 = pneg %p47
        $region50: #{tpu_custom_call.1} parent=47 // pred_check_branch
          %301 = sbr.rel (%p299) target = $region52
        $region51: #{tpu_custom_call.1} parent=47 // pred_region
          %302 = dma.done %s295, 1024
        $region52: #{tpu_custom_call.1} parent=47 // pred_fallthru
          _
        // Predicated region
        $region53: #{tpu_custom_call.1} parent=47 // pred_check
          %p303 = pneg %p68
        $region54: #{tpu_custom_call.1} parent=47 // pred_check_branch
          %305 = sbr.rel (%p303) target = $region56
        $region55: #{tpu_custom_call.1} parent=47 // pred_region
          %306 = dma.done [#allocation7], 1024
        $region56: #{tpu_custom_call.1} parent=47 // pred_fallthru
          _
        // Predicated region
        $region57: #{tpu_custom_call.1} parent=47 // pred_check
          %p307 = pneg %p110
        $region58: #{tpu_custom_call.1} parent=47 // pred_check_branch
          %309 = sbr.rel (%p307) target = $region60
        $region59: #{tpu_custom_call.1} parent=47 // pred_region
          %310 = dma.done [#allocation7], 9216
        $region60: #{tpu_custom_call.1} parent=47 // pred_fallthru
          _
        // Predicated region
        $region61: #{tpu_custom_call.1} parent=47 // pred_check
          %p311 = pneg %p152
        $region62: #{tpu_custom_call.1} parent=47 // pred_check_branch
          %313 = sbr.rel (%p311) target = $region64
        $region63: #{tpu_custom_call.1} parent=47 // pred_region
          %314 = dma.done [#allocation10], 2048
        $region64: #{tpu_custom_call.1} parent=47 // pred_fallthru
          _
        %s315 = sand.u32 %s34, 1
        %s316 = scalar_lea.sflag [#allocation4], %s315
        %s317 = sand.u32 %s34, 1
        %s318 = smul.addr %s317, 64
        %s319 = scalar_lea.vmem [#allocation3], %s318
        %p320 = pneg %p47
        %p321 = pneg %p44
        %p322 = pneg %p68
        %p323 = pneg %p65
        %p324 = pneg %p89
        %p325 = pneg %p86
        %p326 = pneg %p110
        %p327 = pneg %p107
        %p328 = pneg %p131
        %p329 = pneg %p128
        %p330 = pneg %p152
        %p331 = pneg %p149
        %p332 = pneg %p173
        %p333 = pneg %p170
        %p334 = pneg %p199
        %p335 = pneg %p196
        %s336 = sand.u32 %s186, 1
        %s337 = scalar_lea.sflag [#allocation5], %s336
        %s338 = sand.u32 %s186, 1
        %s339 = smul.addr %s338, 64
        %s340 = scalar_lea.vmem [#allocation11], %s339
        %v342 = vld [vmem:[%s298] sm:$0xff]
        %v343 = vld [vmem:[%s298 + $0x8] sm:$0xff]
        %v344 = vld [vmem:[%s298 + $0x10] sm:$0xff]
        %v345 = vld [vmem:[%s298 + $0x18] sm:$0xff]
        %v346 = vld [vmem:[%s298 + $0x20] sm:$0xff]
        %v347 = vld [vmem:[%s298 + $0x28] sm:$0xff]
        %v348 = vld [vmem:[%s298 + $0x30] sm:$0xff]
        %v349 = vld [vmem:[%s298 + $0x38] sm:$0xff]
        %v350 = vpack.c.bf16 %v343, %v342
        %v351 = vpack.c.bf16 %v345, %v344
        %v352 = vpack.c.bf16 %v347, %v346
        %v353 = vpack.c.bf16 %v349, %v348
        %v354 = vld [vmem:[#allocation6] sm:$0xf]
        %v355 = vld [vmem:[#allocation6 + $0x4] sm:$0xf]
        %v356 = vld [vmem:[#allocation6 + $0x8] sm:$0xf]
        %v357 = vld [vmem:[#allocation6 + $0xc] sm:$0xf]
        %v358 = vld [vmem:[#allocation6 + $0x10] sm:$0xf]
        %v359 = vld [vmem:[#allocation6 + $0x14] sm:$0xf]
        %v360 = vld [vmem:[#allocation6 + $0x18] sm:$0xf]
        %v361 = vld [vmem:[#allocation6 + $0x1c] sm:$0xf]
        %v362 = vld [vmem:[#allocation6 + $0x20] sm:$0xf]
        %v363 = vld [vmem:[#allocation6 + $0x24] sm:$0xf]
        %v364 = vld [vmem:[#allocation6 + $0x28] sm:$0xf]
        %v365 = vld [vmem:[#allocation6 + $0x2c] sm:$0xf]
        %v366 = vld [vmem:[#allocation6 + $0x30] sm:$0xf]
        %v367 = vld [vmem:[#allocation6 + $0x34] sm:$0xf]
        %v368 = vld [vmem:[#allocation6 + $0x38] sm:$0xf]
        %v369 = vld [vmem:[#allocation6 + $0x3c] sm:$0xf]
        %v370 = vld [vmem:[%s2] sm:$0x1]
        %v372 = vlaneseq
        %v373 = vshrl.u32 %v372, 7
        %v374 = vsub.s32 0, %v373
        %v375 = vrot.slane %v370, %v374
        %v393 = vunpack.c.l.b16 %v354
        %v394 = vunpack.c.l.b16 %v355
        %v395 = vunpack.c.l.b16 %v356
        %v396 = vunpack.c.l.b16 %v357
        %v397 = vunpack.c.l.b16 %v358
        %v398 = vunpack.c.l.b16 %v359
        %v399 = vunpack.c.l.b16 %v360
        %v400 = vunpack.c.l.b16 %v361
        %v401 = vunpack.c.l.b16 %v362
        %v402 = vunpack.c.l.b16 %v363
        %v403 = vunpack.c.l.b16 %v364
        %v404 = vunpack.c.l.b16 %v365
        %v405 = vunpack.c.l.b16 %v366
        %v406 = vunpack.c.l.b16 %v367
        %v407 = vunpack.c.l.b16 %v368
        %v408 = vunpack.c.l.b16 %v369
        %v409 = vpack.c.b16 %v394, %v393
        %v410 = vpack.c.b16 %v396, %v395
        %v411 = vpack.c.b16 %v398, %v397
        %v412 = vpack.c.b16 %v400, %v399
        %v413 = vpack.c.b16 %v402, %v401
        %v414 = vpack.c.b16 %v404, %v403
        %v415 = vpack.c.b16 %v406, %v405
        %v416 = vpack.c.b16 %v408, %v407
        %425 = vmatprep.subr.bf16.mxu0 0
        %426 = vmatpush1.bf16.msra.mxu0 %v416
        %427 = vmatprep.subr.bf16.mxu0 0
        %428 = vmatpush1.bf16.msra.mxu0 %v415
        %429 = vmatprep.subr.bf16.mxu0 0
        %430 = vmatpush1.bf16.msra.mxu0 %v414
        %431 = vmatprep.subr.bf16.mxu0 0
        %432 = vmatpush1.bf16.msra.mxu0 %v413
        %433 = vmatprep.subr.bf16.mxu0 0
        %434 = vmatpush1.bf16.msra.mxu0 %v412
        %435 = vmatprep.subr.bf16.mxu0 0
        %436 = vmatpush1.bf16.msra.mxu0 %v411
        %437 = vmatprep.subr.bf16.mxu0 0
        %438 = vmatpush1.bf16.msra.mxu0 %v410
        %439 = vmatprep.subr.bf16.mxu0 0
        %440 = vmatpush1.bf16.msra.mxu0 %v409
        %441 = vmatprep.subr.bf16.mxu0 0
        %442 = vmatpush2.bf16.msra.mxu0 0
        %443 = vmatprep.subr.bf16.mxu0 0
        %444 = vmatpush2.bf16.msra.mxu0 0
        %445 = vmatprep.subr.bf16.mxu0 0
        %446 = vmatpush2.bf16.msra.mxu0 0
        %447 = vmatprep.subr.bf16.mxu0 0
        %448 = vmatpush2.bf16.msra.mxu0 0
        %449 = vmatprep.subr.bf16.mxu0 0
        %450 = vmatpush2.bf16.msra.mxu0 0
        %451 = vmatprep.subr.bf16.mxu0 0
        %452 = vmatpush2.bf16.msra.mxu0 0
        %453 = vmatprep.subr.bf16.mxu0 0
        %454 = vmatpush2.bf16.msra.mxu0 0
        %455 = vmatprep.subr.bf16.mxu0 0
        %456 = vmatpush2.bf16.msra.mxu0 0
        %457 = vmatprep.mubr.bf16.mxu0 0
        %458 = vmatmul.mubr.bf16.gmra.mxu0 %v350
        %v459 = vpop.f32.mrf.mxu0
        %v460 = vadd.f32 %v375, %v459
        %v461 = vpop.f32.mrf.mxu0
        %v462 = vpop.f32.mrf.mxu0
        %v463 = vadd.f32 %v375, %v462
        %v464 = vpop.f32.mrf.mxu0
        %465 = vmatprep.mubr.bf16.mxu0 0
        %466 = vmatmul.mubr.bf16.gmra.mxu0 %v351
        %v467 = vpop.f32.mrf.mxu0
        %v468 = vadd.f32 %v375, %v467
        %v469 = vpop.f32.mrf.mxu0
        %v470 = vpop.f32.mrf.mxu0
        %v471 = vadd.f32 %v375, %v470
        %v472 = vpop.f32.mrf.mxu0
        %473 = vmatprep.mubr.bf16.mxu0 0
        %474 = vmatmul.mubr.bf16.gmra.mxu0 %v352
        %v475 = vpop.f32.mrf.mxu0
        %v476 = vadd.f32 %v375, %v475
        %v477 = vpop.f32.mrf.mxu0
        %v478 = vpop.f32.mrf.mxu0
        %v479 = vadd.f32 %v375, %v478
        %v480 = vpop.f32.mrf.mxu0
        %481 = vmatprep.mubr.bf16.mxu0 0
        %482 = vmatmul.mubr.bf16.gmra.mxu0 %v353
        %v483 = vpop.f32.mrf.mxu0
        %v484 = vadd.f32 %v375, %v483
        %v485 = vpop.f32.mrf.mxu0
        %v486 = vpop.f32.mrf.mxu0
        %v487 = vadd.f32 %v375, %v486
        %v488 = vpop.f32.mrf.mxu0
        %489 = vdwg.mxu0
        %v490 = vmax.f32 %v460, 0.0
        %v491 = vmax.f32 %v463, 0.0
        %v492 = vmax.f32 %v468, 0.0
        %v493 = vmax.f32 %v471, 0.0
        %v494 = vmax.f32 %v476, 0.0
        %v495 = vmax.f32 %v479, 0.0
        %v496 = vmax.f32 %v484, 0.0
        %v497 = vmax.f32 %v487, 0.0
        %498 = vst [vmem:[#allocation2] sm:$0xff] 0.0
        %499 = vst [vmem:[#allocation2 + $0x8] sm:$0xf] 0.0
        %500 = vst [vmem:[#allocation2 + $0x10] sm:$0xff] 0.0
        %501 = vst [vmem:[#allocation2 + $0x18] sm:$0xf] 0.0
        %502 = vst [vmem:[#allocation2 + $0x20] sm:$0xff] 0.0
        %503 = vst [vmem:[#allocation2 + $0x28] sm:$0xf] 0.0
        %504 = vst [vmem:[#allocation2 + $0x30] sm:$0xff] 0.0
        %505 = vst [vmem:[#allocation2 + $0x38] sm:$0xf] 0.0
        %506 = vst [vmem:[#allocation2 + $0x40] sm:$0xff] 0.0
        %507 = vst [vmem:[#allocation2 + $0x48] sm:$0xf] 0.0
        %508 = vst [vmem:[#allocation2 + $0x50] sm:$0xff] 0.0
        %509 = vst [vmem:[#allocation2 + $0x58] sm:$0xf] 0.0
        %510 = vst [vmem:[#allocation2 + $0x60] sm:$0xff] 0.0
        %511 = vst [vmem:[#allocation2 + $0x68] sm:$0xf] 0.0
        %512 = vst [vmem:[#allocation2 + $0x70] sm:$0xff] 0.0
        %513 = vst [vmem:[#allocation2 + $0x78] sm:$0xf] 0.0
        %514 = vst [vmem:[#allocation2 + $0x80] sm:$0xff] 0.0
        %515 = vst [vmem:[#allocation2 + $0x88] sm:$0xf] 0.0
        %516 = vst [vmem:[#allocation2 + $0x90] sm:$0xff] 0.0
        %517 = vst [vmem:[#allocation2 + $0x98] sm:$0xf] 0.0
        %518 = vst [vmem:[#allocation2 + $0xa0] sm:$0xff] 0.0
        %519 = vst [vmem:[#allocation2 + $0xa8] sm:$0xf] 0.0
        %520 = vst [vmem:[#allocation2 + $0xb0] sm:$0xff] 0.0
        %521 = vst [vmem:[#allocation2 + $0xb8] sm:$0xf] 0.0
        %s522 = scalar_lea.vmem [#allocation2], 32
        %523 = vst [vmem:[%s522 + $0x2] sm:$0xff] %v490
        %524 = vst [vmem:[%s522 + $0x12] sm:$0xff] %v491
        %525 = vst [vmem:[%s522 + $0x22] sm:$0xff] %v492
        %526 = vst [vmem:[%s522 + $0x32] sm:$0xff] %v493
        %527 = vst [vmem:[%s522 + $0x42] sm:$0xff] %v494
        %528 = vst [vmem:[%s522 + $0x52] sm:$0xff] %v495
        %529 = vst [vmem:[%s522 + $0x62] sm:$0xff] %v496
        %530 = vst [vmem:[%s522 + $0x72] sm:$0xff] %v497
        %v531 = vld [vmem:[#allocation2] sm:$0xff]
        %v532 = vld [vmem:[#allocation2 + $0x8] sm:$0xf]
        %v533 = vld [vmem:[#allocation2 + $0x10] sm:$0xff]
        %v534 = vld [vmem:[#allocation2 + $0x18] sm:$0xf]
        %v535 = vld [vmem:[#allocation2 + $0x20] sm:$0xff]
        %v536 = vld [vmem:[#allocation2 + $0x28] sm:$0xf]
        %v537 = vld [vmem:[#allocation2 + $0x30] sm:$0xff]
        %v538 = vld [vmem:[#allocation2 + $0x38] sm:$0xf]
        %v539 = vld [vmem:[#allocation2 + $0x40] sm:$0xff]
        %v540 = vld [vmem:[#allocation2 + $0x48] sm:$0xf]
        %v541 = vld [vmem:[#allocation2 + $0x50] sm:$0xff]
        %v542 = vld [vmem:[#allocation2 + $0x58] sm:$0xf]
        %v543 = vld [vmem:[#allocation2 + $0x60] sm:$0xff]
        %v544 = vld [vmem:[#allocation2 + $0x68] sm:$0xf]
        %v545 = vld [vmem:[#allocation2 + $0x70] sm:$0xff]
        %v546 = vld [vmem:[#allocation2 + $0x78] sm:$0xf]
        %v547 = vpack.c.bf16 %v532, %v531
        %v548 = vpack.c.bf16 %v534, %v533
        %v549 = vpack.c.bf16 %v536, %v535
        %v550 = vpack.c.bf16 %v538, %v537
        %v551 = vpack.c.bf16 %v540, %v539
        %v552 = vpack.c.bf16 %v542, %v541
        %v553 = vpack.c.bf16 %v544, %v543
        %v554 = vpack.c.bf16 %v546, %v545
        %v555 = vld [vmem:[#allocation8] sm:$0xf]
        %v556 = vld [vmem:[#allocation8 + $0x4] sm:$0xf]
        %v557 = vld [vmem:[#allocation8 + $0x8] sm:$0xf]
        %v558 = vld [vmem:[#allocation8 + $0xc] sm:$0xf]
        %v559 = vld [vmem:[#allocation8 + $0x10] sm:$0xf]
        %v560 = vld [vmem:[#allocation8 + $0x14] sm:$0xf]
        %v561 = vld [vmem:[#allocation8 + $0x18] sm:$0xf]
        %v562 = vld [vmem:[#allocation8 + $0x1c] sm:$0xf]
        %v563 = vld [vmem:[#allocation8 + $0x20] sm:$0xf]
        %v564 = vld [vmem:[#allocation8 + $0x24] sm:$0xf]
        %v565 = vld [vmem:[#allocation8 + $0x28] sm:$0xf]
        %v566 = vld [vmem:[#allocation8 + $0x2c] sm:$0xf]
        %v567 = vld [vmem:[#allocation8 + $0x30] sm:$0xf]
        %v568 = vld [vmem:[#allocation8 + $0x34] sm:$0xf]
        %v569 = vld [vmem:[#allocation8 + $0x38] sm:$0xf]
        %v570 = vld [vmem:[#allocation8 + $0x3c] sm:$0xf]
        %v579 = vunpack.c.l.b16 %v547
        %v580 = vunpack.c.h.b16 %v547
        %v581 = vunpack.c.l.b16 %v548
        %v582 = vunpack.c.h.b16 %v548
        %v583 = vunpack.c.l.b16 %v549
        %v584 = vunpack.c.h.b16 %v549
        %v585 = vunpack.c.l.b16 %v550
        %v586 = vunpack.c.h.b16 %v550
        %v587 = vunpack.c.l.b16 %v551
        %v588 = vunpack.c.h.b16 %v551
        %v589 = vunpack.c.l.b16 %v552
        %v590 = vunpack.c.h.b16 %v552
        %v591 = vunpack.c.l.b16 %v553
        %v592 = vunpack.c.h.b16 %v553
        %v593 = vunpack.c.l.b16 %v554
        %v594 = vunpack.c.h.b16 %v554
        %v595 = vpack.c.b16 %v579, %v579
        %v596 = vpack.c.b16 %v580, %v580
        %v597 = vpack.c.b16 %v581, %v581
        %v598 = vpack.c.b16 %v582, %v582
        %v599 = vpack.c.b16 %v583, %v583
        %v600 = vpack.c.b16 %v584, %v584
        %v601 = vpack.c.b16 %v585, %v585
        %v602 = vpack.c.b16 %v586, %v586
        %v603 = vpack.c.b16 %v587, %v587
        %v604 = vpack.c.b16 %v588, %v588
        %v605 = vpack.c.b16 %v589, %v589
        %v606 = vpack.c.b16 %v590, %v590
        %v607 = vpack.c.b16 %v591, %v591
        %v608 = vpack.c.b16 %v592, %v592
        %v609 = vpack.c.b16 %v593, %v593
        %v610 = vpack.c.b16 %v594, %v594
        %vm611 = vcmask 1042432
        %vm612 = vcmask 1046532
        %vm613 = vmor %vm611, %vm612
        %v614 = vrot.slane %v595, 5
        %v615 = vrot.slane %v614, 4
        %v616 = vrot.slane %v596, 5
        %v617 = vsel %vm613, %v615, %v616
        %v618 = vrot.slane %v597, 5
        %v619 = vrot.slane %v618, 4
        %v620 = vrot.slane %v598, 5
        %v621 = vsel %vm613, %v619, %v620
        %v622 = vrot.slane %v599, 5
        %v623 = vrot.slane %v622, 4
        %v624 = vrot.slane %v600, 5
        %v625 = vsel %vm613, %v623, %v624
        %v626 = vrot.slane %v601, 5
        %v627 = vrot.slane %v626, 4
        %v628 = vrot.slane %v602, 5
        %v629 = vsel %vm613, %v627, %v628
        %v630 = vrot.slane %v603, 5
        %v631 = vrot.slane %v630, 4
        %v632 = vrot.slane %v604, 5
        %v633 = vsel %vm613, %v631, %v632
        %v634 = vrot.slane %v605, 5
        %v635 = vrot.slane %v634, 4
        %v636 = vrot.slane %v606, 5
        %v637 = vsel %vm613, %v635, %v636
        %v638 = vrot.slane %v607, 5
        %v639 = vrot.slane %v638, 4
        %v640 = vrot.slane %v608, 5
        %v641 = vsel %vm613, %v639, %v640
        %v642 = vrot.slane %v609, 5
        %v643 = vrot.slane %v642, 4
        %v644 = vrot.slane %v610, 5
        %v645 = vsel %vm613, %v643, %v644
        %s646 = scalar_lea.vmem [#allocation8], 64
        %v647 = vld [vmem:[%s646] sm:$0xf]
        %v648 = vld [vmem:[%s646 + $0x4] sm:$0xf]
        %v649 = vld [vmem:[%s646 + $0x8] sm:$0xf]
        %v650 = vld [vmem:[%s646 + $0xc] sm:$0xf]
        %v651 = vld [vmem:[%s646 + $0x10] sm:$0xf]
        %v652 = vld [vmem:[%s646 + $0x14] sm:$0xf]
        %v653 = vld [vmem:[%s646 + $0x18] sm:$0xf]
        %v654 = vld [vmem:[%s646 + $0x1c] sm:$0xf]
        %v655 = vld [vmem:[%s646 + $0x20] sm:$0xf]
        %v656 = vld [vmem:[%s646 + $0x24] sm:$0xf]
        %v657 = vld [vmem:[%s646 + $0x28] sm:$0xf]
        %v658 = vld [vmem:[%s646 + $0x2c] sm:$0xf]
        %v659 = vld [vmem:[%s646 + $0x30] sm:$0xf]
        %v660 = vld [vmem:[%s646 + $0x34] sm:$0xf]
        %v661 = vld [vmem:[%s646 + $0x38] sm:$0xf]
        %v662 = vld [vmem:[%s646 + $0x3c] sm:$0xf]
        %v663 = vunpack.c.l.b16 %v617
        %v664 = vunpack.c.l.b16 %v621
        %v665 = vunpack.c.l.b16 %v625
        %v666 = vunpack.c.l.b16 %v629
        %v667 = vunpack.c.l.b16 %v633
        %v668 = vunpack.c.l.b16 %v637
        %v669 = vunpack.c.l.b16 %v641
        %v670 = vunpack.c.l.b16 %v645
        %v671 = vpack.c.b16 %v664, %v663
        %v672 = vpack.c.b16 %v666, %v665
        %v673 = vpack.c.b16 %v668, %v667
        %v674 = vpack.c.b16 %v670, %v669
        %v695 = vunpack.c.l.b16 %v647
        %v696 = vunpack.c.l.b16 %v648
        %v697 = vunpack.c.l.b16 %v649
        %v698 = vunpack.c.l.b16 %v650
        %v699 = vunpack.c.l.b16 %v651
        %v700 = vunpack.c.l.b16 %v652
        %v701 = vunpack.c.l.b16 %v653
        %v702 = vunpack.c.l.b16 %v654
        %v703 = vunpack.c.l.b16 %v655
        %v704 = vunpack.c.l.b16 %v656
        %v705 = vunpack.c.l.b16 %v657
        %v706 = vunpack.c.l.b16 %v658
        %v707 = vunpack.c.l.b16 %v659
        %v708 = vunpack.c.l.b16 %v660
        %v709 = vunpack.c.l.b16 %v661
        %v710 = vunpack.c.l.b16 %v662
        %v711 = vpack.c.b16 %v696, %v695
        %v712 = vpack.c.b16 %v698, %v697
        %v713 = vpack.c.b16 %v700, %v699
        %v714 = vpack.c.b16 %v702, %v701
        %v715 = vpack.c.b16 %v704, %v703
        %v716 = vpack.c.b16 %v706, %v705
        %v717 = vpack.c.b16 %v708, %v707
        %v718 = vpack.c.b16 %v710, %v709
        %727 = vmatprep.subr.bf16.mxu0 0
        %728 = vmatpush1.bf16.msra.mxu0 %v718
        %729 = vmatprep.subr.bf16.mxu0 0
        %730 = vmatpush1.bf16.msra.mxu0 %v717
        %731 = vmatprep.subr.bf16.mxu0 0
        %732 = vmatpush1.bf16.msra.mxu0 %v716
        %733 = vmatprep.subr.bf16.mxu0 0
        %734 = vmatpush1.bf16.msra.mxu0 %v715
        %735 = vmatprep.subr.bf16.mxu0 0
        %736 = vmatpush1.bf16.msra.mxu0 %v714
        %737 = vmatprep.subr.bf16.mxu0 0
        %738 = vmatpush1.bf16.msra.mxu0 %v713
        %739 = vmatprep.subr.bf16.mxu0 0
        %740 = vmatpush1.bf16.msra.mxu0 %v712
        %741 = vmatprep.subr.bf16.mxu0 0
        %742 = vmatpush1.bf16.msra.mxu0 %v711
        %743 = vmatprep.subr.bf16.mxu0 0
        %744 = vmatpush2.bf16.msra.mxu0 0
        %745 = vmatprep.subr.bf16.mxu0 0
        %746 = vmatpush2.bf16.msra.mxu0 0
        %747 = vmatprep.subr.bf16.mxu0 0
        %748 = vmatpush2.bf16.msra.mxu0 0
        %749 = vmatprep.subr.bf16.mxu0 0
        %750 = vmatpush2.bf16.msra.mxu0 0
        %751 = vmatprep.subr.bf16.mxu0 0
        %752 = vmatpush2.bf16.msra.mxu0 0
        %753 = vmatprep.subr.bf16.mxu0 0
        %754 = vmatpush2.bf16.msra.mxu0 0
        %755 = vmatprep.subr.bf16.mxu0 0
        %756 = vmatpush2.bf16.msra.mxu0 0
        %757 = vmatprep.subr.bf16.mxu0 0
        %758 = vmatpush2.bf16.msra.mxu0 0
        %759 = vmatprep.mubr.bf16.mxu0 0
        %760 = vmatmul.mubr.bf16.gmra.mxu0 %v671
        %v761 = vpop.f32.mrf.mxu0
        %v762 = vadd.f32 0.0, %v761
        %v763 = vpop.f32.mrf.mxu0
        %v764 = vpop.f32.mrf.mxu0
        %v765 = vadd.f32 0.0, %v764
        %v766 = vpop.f32.mrf.mxu0
        %767 = vmatprep.mubr.bf16.mxu0 0
        %768 = vmatmul.mubr.bf16.gmra.mxu0 %v672
        %v769 = vpop.f32.mrf.mxu0
        %v770 = vadd.f32 0.0, %v769
        %v771 = vpop.f32.mrf.mxu0
        %v772 = vpop.f32.mrf.mxu0
        %v773 = vadd.f32 0.0, %v772
        %v774 = vpop.f32.mrf.mxu0
        %775 = vmatprep.mubr.bf16.mxu0 0
        %776 = vmatmul.mubr.bf16.gmra.mxu0 %v673
        %v777 = vpop.f32.mrf.mxu0
        %v778 = vadd.f32 0.0, %v777
        %v779 = vpop.f32.mrf.mxu0
        %v780 = vpop.f32.mrf.mxu0
        %v781 = vadd.f32 0.0, %v780
        %v782 = vpop.f32.mrf.mxu0
        %783 = vmatprep.mubr.bf16.mxu0 0
        %784 = vmatmul.mubr.bf16.gmra.mxu0 %v674
        %v785 = vpop.f32.mrf.mxu0
        %v786 = vadd.f32 0.0, %v785
        %v787 = vpop.f32.mrf.mxu0
        %v788 = vpop.f32.mrf.mxu0
        %v789 = vadd.f32 0.0, %v788
        %v790 = vpop.f32.mrf.mxu0
        %791 = vdwg.mxu0
        %v792 = vpack.c.b16 %v581, %v579
        %v793 = vpack.c.b16 %v585, %v583
        %v794 = vpack.c.b16 %v589, %v587
        %v795 = vpack.c.b16 %v593, %v591
        %v816 = vunpack.c.l.b16 %v555
        %v817 = vunpack.c.l.b16 %v556
        %v818 = vunpack.c.l.b16 %v557
        %v819 = vunpack.c.l.b16 %v558
        %v820 = vunpack.c.l.b16 %v559
        %v821 = vunpack.c.l.b16 %v560
        %v822 = vunpack.c.l.b16 %v561
        %v823 = vunpack.c.l.b16 %v562
        %v824 = vunpack.c.l.b16 %v563
        %v825 = vunpack.c.l.b16 %v564
        %v826 = vunpack.c.l.b16 %v565
        %v827 = vunpack.c.l.b16 %v566
        %v828 = vunpack.c.l.b16 %v567
        %v829 = vunpack.c.l.b16 %v568
        %v830 = vunpack.c.l.b16 %v569
        %v831 = vunpack.c.l.b16 %v570
        %v832 = vpack.c.b16 %v817, %v816
        %v833 = vpack.c.b16 %v819, %v818
        %v834 = vpack.c.b16 %v821, %v820
        %v835 = vpack.c.b16 %v823, %v822
        %v836 = vpack.c.b16 %v825, %v824
        %v837 = vpack.c.b16 %v827, %v826
        %v838 = vpack.c.b16 %v829, %v828
        %v839 = vpack.c.b16 %v831, %v830
        %848 = vmatprep.subr.bf16.mxu0 0
        %849 = vmatpush1.bf16.msra.mxu0 %v839
        %850 = vmatprep.subr.bf16.mxu0 0
        %851 = vmatpush1.bf16.msra.mxu0 %v838
        %852 = vmatprep.subr.bf16.mxu0 0
        %853 = vmatpush1.bf16.msra.mxu0 %v837
        %854 = vmatprep.subr.bf16.mxu0 0
        %855 = vmatpush1.bf16.msra.mxu0 %v836
        %856 = vmatprep.subr.bf16.mxu0 0
        %857 = vmatpush1.bf16.msra.mxu0 %v835
        %858 = vmatprep.subr.bf16.mxu0 0
        %859 = vmatpush1.bf16.msra.mxu0 %v834
        %860 = vmatprep.subr.bf16.mxu0 0
        %861 = vmatpush1.bf16.msra.mxu0 %v833
        %862 = vmatprep.subr.bf16.mxu0 0
        %863 = vmatpush1.bf16.msra.mxu0 %v832
        %864 = vmatprep.subr.bf16.mxu0 0
        %865 = vmatpush2.bf16.msra.mxu0 0
        %866 = vmatprep.subr.bf16.mxu0 0
        %867 = vmatpush2.bf16.msra.mxu0 0
        %868 = vmatprep.subr.bf16.mxu0 0
        %869 = vmatpush2.bf16.msra.mxu0 0
        %870 = vmatprep.subr.bf16.mxu0 0
        %871 = vmatpush2.bf16.msra.mxu0 0
        %872 = vmatprep.subr.bf16.mxu0 0
        %873 = vmatpush2.bf16.msra.mxu0 0
        %874 = vmatprep.subr.bf16.mxu0 0
        %875 = vmatpush2.bf16.msra.mxu0 0
        %876 = vmatprep.subr.bf16.mxu0 0
        %877 = vmatpush2.bf16.msra.mxu0 0
        %878 = vmatprep.subr.bf16.mxu0 0
        %879 = vmatpush2.bf16.msra.mxu0 0
        %880 = vmatprep.mubr.bf16.mxu0 0
        %881 = vmatmul.mubr.bf16.gmra.mxu0 %v792
        %v882 = vpop.f32.mrf.mxu0
        %v883 = vadd.f32 %v762, %v882
        %v884 = vpop.f32.mrf.mxu0
        %v885 = vpop.f32.mrf.mxu0
        %v886 = vadd.f32 %v765, %v885
        %v887 = vpop.f32.mrf.mxu0
        %888 = vmatprep.mubr.bf16.mxu0 0
        %889 = vmatmul.mubr.bf16.gmra.mxu0 %v793
        %v890 = vpop.f32.mrf.mxu0
        %v891 = vadd.f32 %v770, %v890
        %v892 = vpop.f32.mrf.mxu0
        %v893 = vpop.f32.mrf.mxu0
        %v894 = vadd.f32 %v773, %v893
        %v895 = vpop.f32.mrf.mxu0
        %896 = vmatprep.mubr.bf16.mxu0 0
        %897 = vmatmul.mubr.bf16.gmra.mxu0 %v794
        %v898 = vpop.f32.mrf.mxu0
        %v899 = vadd.f32 %v778, %v898
        %v900 = vpop.f32.mrf.mxu0
        %v901 = vpop.f32.mrf.mxu0
        %v902 = vadd.f32 %v781, %v901
        %v903 = vpop.f32.mrf.mxu0
        %904 = vmatprep.mubr.bf16.mxu0 0
        %905 = vmatmul.mubr.bf16.gmra.mxu0 %v795
        %v906 = vpop.f32.mrf.mxu0
        %v907 = vadd.f32 %v786, %v906
        %v908 = vpop.f32.mrf.mxu0
        %v909 = vpop.f32.mrf.mxu0
        %v910 = vadd.f32 %v789, %v909
        %v911 = vpop.f32.mrf.mxu0
        %912 = vdwg.mxu0
        %vm913 = vcmask 1041408
        %vm914 = vcmask 1045508
        %vm915 = vmor %vm913, %vm914
        %v916 = vrot.slane %v595, 6
        %v917 = vrot.slane %v916, 4
        %v918 = vrot.slane %v596, 6
        %v919 = vsel %vm915, %v917, %v918
        %v920 = vrot.slane %v597, 6
        %v921 = vrot.slane %v920, 4
        %v922 = vrot.slane %v598, 6
        %v923 = vsel %vm915, %v921, %v922
        %v924 = vrot.slane %v599, 6
        %v925 = vrot.slane %v924, 4
        %v926 = vrot.slane %v600, 6
        %v927 = vsel %vm915, %v925, %v926
        %v928 = vrot.slane %v601, 6
        %v929 = vrot.slane %v928, 4
        %v930 = vrot.slane %v602, 6
        %v931 = vsel %vm915, %v929, %v930
        %v932 = vrot.slane %v603, 6
        %v933 = vrot.slane %v932, 4
        %v934 = vrot.slane %v604, 6
        %v935 = vsel %vm915, %v933, %v934
        %v936 = vrot.slane %v605, 6
        %v937 = vrot.slane %v936, 4
        %v938 = vrot.slane %v606, 6
        %v939 = vsel %vm915, %v937, %v938
        %v940 = vrot.slane %v607, 6
        %v941 = vrot.slane %v940, 4
        %v942 = vrot.slane %v608, 6
        %v943 = vsel %vm915, %v941, %v942
        %v944 = vrot.slane %v609, 6
        %v945 = vrot.slane %v944, 4
        %v946 = vrot.slane %v610, 6
        %v947 = vsel %vm915, %v945, %v946
        %s948 = scalar_lea.vmem [#allocation8], 128
        %v949 = vld [vmem:[%s948] sm:$0xf]
        %v950 = vld [vmem:[%s948 + $0x4] sm:$0xf]
        %v951 = vld [vmem:[%s948 + $0x8] sm:$0xf]
        %v952 = vld [vmem:[%s948 + $0xc] sm:$0xf]
        %v953 = vld [vmem:[%s948 + $0x10] sm:$0xf]
        %v954 = vld [vmem:[%s948 + $0x14] sm:$0xf]
        %v955 = vld [vmem:[%s948 + $0x18] sm:$0xf]
        %v956 = vld [vmem:[%s948 + $0x1c] sm:$0xf]
        %v957 = vld [vmem:[%s948 + $0x20] sm:$0xf]
        %v958 = vld [vmem:[%s948 + $0x24] sm:$0xf]
        %v959 = vld [vmem:[%s948 + $0x28] sm:$0xf]
        %v960 = vld [vmem:[%s948 + $0x2c] sm:$0xf]
        %v961 = vld [vmem:[%s948 + $0x30] sm:$0xf]
        %v962 = vld [vmem:[%s948 + $0x34] sm:$0xf]
        %v963 = vld [vmem:[%s948 + $0x38] sm:$0xf]
        %v964 = vld [vmem:[%s948 + $0x3c] sm:$0xf]
        %v965 = vunpack.c.l.b16 %v919
        %v966 = vunpack.c.l.b16 %v923
        %v967 = vunpack.c.l.b16 %v927
        %v968 = vunpack.c.l.b16 %v931
        %v969 = vunpack.c.l.b16 %v935
        %v970 = vunpack.c.l.b16 %v939
        %v971 = vunpack.c.l.b16 %v943
        %v972 = vunpack.c.l.b16 %v947
        %v973 = vpack.c.b16 %v966, %v965
        %v974 = vpack.c.b16 %v968, %v967
        %v975 = vpack.c.b16 %v970, %v969
        %v976 = vpack.c.b16 %v972, %v971
        %v997 = vunpack.c.l.b16 %v949
        %v998 = vunpack.c.l.b16 %v950
        %v999 = vunpack.c.l.b16 %v951
        %v1000 = vunpack.c.l.b16 %v952
        %v1001 = vunpack.c.l.b16 %v953
        %v1002 = vunpack.c.l.b16 %v954
        %v1003 = vunpack.c.l.b16 %v955
        %v1004 = vunpack.c.l.b16 %v956
        %v1005 = vunpack.c.l.b16 %v957
        %v1006 = vunpack.c.l.b16 %v958
        %v1007 = vunpack.c.l.b16 %v959
        %v1008 = vunpack.c.l.b16 %v960
        %v1009 = vunpack.c.l.b16 %v961
        %v1010 = vunpack.c.l.b16 %v962
        %v1011 = vunpack.c.l.b16 %v963
        %v1012 = vunpack.c.l.b16 %v964
        %v1013 = vpack.c.b16 %v998, %v997
        %v1014 = vpack.c.b16 %v1000, %v999
        %v1015 = vpack.c.b16 %v1002, %v1001
        %v1016 = vpack.c.b16 %v1004, %v1003
        %v1017 = vpack.c.b16 %v1006, %v1005
        %v1018 = vpack.c.b16 %v1008, %v1007
        %v1019 = vpack.c.b16 %v1010, %v1009
        %v1020 = vpack.c.b16 %v1012, %v1011
        %1029 = vmatprep.subr.bf16.mxu0 0
        %1030 = vmatpush1.bf16.msra.mxu0 %v1020
        %1031 = vmatprep.subr.bf16.mxu0 0
        %1032 = vmatpush1.bf16.msra.mxu0 %v1019
        %1033 = vmatprep.subr.bf16.mxu0 0
        %1034 = vmatpush1.bf16.msra.mxu0 %v1018
        %1035 = vmatprep.subr.bf16.mxu0 0
        %1036 = vmatpush1.bf16.msra.mxu0 %v1017
        %1037 = vmatprep.subr.bf16.mxu0 0
        %1038 = vmatpush1.bf16.msra.mxu0 %v1016
        %1039 = vmatprep.subr.bf16.mxu0 0
        %1040 = vmatpush1.bf16.msra.mxu0 %v1015
        %1041 = vmatprep.subr.bf16.mxu0 0
        %1042 = vmatpush1.bf16.msra.mxu0 %v1014
        %1043 = vmatprep.subr.bf16.mxu0 0
        %1044 = vmatpush1.bf16.msra.mxu0 %v1013
        %1045 = vmatprep.subr.bf16.mxu0 0
        %1046 = vmatpush2.bf16.msra.mxu0 0
        %1047 = vmatprep.subr.bf16.mxu0 0
        %1048 = vmatpush2.bf16.msra.mxu0 0
        %1049 = vmatprep.subr.bf16.mxu0 0
        %1050 = vmatpush2.bf16.msra.mxu0 0
        %1051 = vmatprep.subr.bf16.mxu0 0
        %1052 = vmatpush2.bf16.msra.mxu0 0
        %1053 = vmatprep.subr.bf16.mxu0 0
        %1054 = vmatpush2.bf16.msra.mxu0 0
        %1055 = vmatprep.subr.bf16.mxu0 0
        %1056 = vmatpush2.bf16.msra.mxu0 0
        %1057 = vmatprep.subr.bf16.mxu0 0
        %1058 = vmatpush2.bf16.msra.mxu0 0
        %1059 = vmatprep.subr.bf16.mxu0 0
        %1060 = vmatpush2.bf16.msra.mxu0 0
        %1061 = vmatprep.mubr.bf16.mxu0 0
        %1062 = vmatmul.mubr.bf16.gmra.mxu0 %v973
        %v1063 = vpop.f32.mrf.mxu0
        %v1064 = vadd.f32 0.0, %v1063
        %v1065 = vpop.f32.mrf.mxu0
        %v1066 = vpop.f32.mrf.mxu0
        %v1067 = vadd.f32 0.0, %v1066
        %v1068 = vpop.f32.mrf.mxu0
        %1069 = vmatprep.mubr.bf16.mxu0 0
        %1070 = vmatmul.mubr.bf16.gmra.mxu0 %v974
        %v1071 = vpop.f32.mrf.mxu0
        %v1072 = vadd.f32 0.0, %v1071
        %v1073 = vpop.f32.mrf.mxu0
        %v1074 = vpop.f32.mrf.mxu0
        %v1075 = vadd.f32 0.0, %v1074
        %v1076 = vpop.f32.mrf.mxu0
        %1077 = vmatprep.mubr.bf16.mxu0 0
        %1078 = vmatmul.mubr.bf16.gmra.mxu0 %v975
        %v1079 = vpop.f32.mrf.mxu0
        %v1080 = vadd.f32 0.0, %v1079
        %v1081 = vpop.f32.mrf.mxu0
        %v1082 = vpop.f32.mrf.mxu0
        %v1083 = vadd.f32 0.0, %v1082
        %v1084 = vpop.f32.mrf.mxu0
        %1085 = vmatprep.mubr.bf16.mxu0 0
        %1086 = vmatmul.mubr.bf16.gmra.mxu0 %v976
        %v1087 = vpop.f32.mrf.mxu0
        %v1088 = vadd.f32 0.0, %v1087
        %v1089 = vpop.f32.mrf.mxu0
        %v1090 = vpop.f32.mrf.mxu0
        %v1091 = vadd.f32 0.0, %v1090
        %v1092 = vpop.f32.mrf.mxu0
        %1093 = vdwg.mxu0
        %v1094 = vadd.f32 %v883, %v1064
        %v1095 = vadd.f32 %v886, %v1067
        %v1096 = vadd.f32 %v891, %v1072
        %v1097 = vadd.f32 %v894, %v1075
        %v1098 = vadd.f32 %v899, %v1080
        %v1099 = vadd.f32 %v902, %v1083
        %v1100 = vadd.f32 %v907, %v1088
        %v1101 = vadd.f32 %v910, %v1091
        %v1102 = vld [vmem:[%s522] sm:$0xff]
        %v1103 = vld [vmem:[%s522 + $0x8] sm:$0xf]
        %v1104 = vld [vmem:[%s522 + $0x10] sm:$0xff]
        %v1105 = vld [vmem:[%s522 + $0x18] sm:$0xf]
        %v1106 = vld [vmem:[%s522 + $0x20] sm:$0xff]
        %v1107 = vld [vmem:[%s522 + $0x28] sm:$0xf]
        %v1108 = vld [vmem:[%s522 + $0x30] sm:$0xff]
        %v1109 = vld [vmem:[%s522 + $0x38] sm:$0xf]
        %v1110 = vld [vmem:[%s522 + $0x40] sm:$0xff]
        %v1111 = vld [vmem:[%s522 + $0x48] sm:$0xf]
        %v1112 = vld [vmem:[%s522 + $0x50] sm:$0xff]
        %v1113 = vld [vmem:[%s522 + $0x58] sm:$0xf]
        %v1114 = vld [vmem:[%s522 + $0x60] sm:$0xff]
        %v1115 = vld [vmem:[%s522 + $0x68] sm:$0xf]
        %v1116 = vld [vmem:[%s522 + $0x70] sm:$0xff]
        %v1117 = vld [vmem:[%s522 + $0x78] sm:$0xf]
        %v1118 = vpack.c.bf16 %v1103, %v1102
        %v1119 = vpack.c.bf16 %v1105, %v1104
        %v1120 = vpack.c.bf16 %v1107, %v1106
        %v1121 = vpack.c.bf16 %v1109, %v1108
        %v1122 = vpack.c.bf16 %v1111, %v1110
        %v1123 = vpack.c.bf16 %v1113, %v1112
        %v1124 = vpack.c.bf16 %v1115, %v1114
        %v1125 = vpack.c.bf16 %v1117, %v1116
        %s1126 = scalar_lea.vmem [#allocation8], 192
        %v1127 = vld [vmem:[%s1126] sm:$0xf]
        %v1128 = vld [vmem:[%s1126 + $0x4] sm:$0xf]
        %v1129 = vld [vmem:[%s1126 + $0x8] sm:$0xf]
        %v1130 = vld [vmem:[%s1126 + $0xc] sm:$0xf]
        %v1131 = vld [vmem:[%s1126 + $0x10] sm:$0xf]
        %v1132 = vld [vmem:[%s1126 + $0x14] sm:$0xf]
        %v1133 = vld [vmem:[%s1126 + $0x18] sm:$0xf]
        %v1134 = vld [vmem:[%s1126 + $0x1c] sm:$0xf]
        %v1135 = vld [vmem:[%s1126 + $0x20] sm:$0xf]
        %v1136 = vld [vmem:[%s1126 + $0x24] sm:$0xf]
        %v1137 = vld [vmem:[%s1126 + $0x28] sm:$0xf]
        %v1138 = vld [vmem:[%s1126 + $0x2c] sm:$0xf]
        %v1139 = vld [vmem:[%s1126 + $0x30] sm:$0xf]
        %v1140 = vld [vmem:[%s1126 + $0x34] sm:$0xf]
        %v1141 = vld [vmem:[%s1126 + $0x38] sm:$0xf]
        %v1142 = vld [vmem:[%s1126 + $0x3c] sm:$0xf]
        %v1151 = vunpack.c.l.b16 %v1118
        %v1152 = vunpack.c.l.b16 %v1119
        %v1153 = vunpack.c.l.b16 %v1120
        %v1154 = vunpack.c.l.b16 %v1121
        %v1155 = vunpack.c.l.b16 %v1122
        %v1156 = vunpack.c.l.b16 %v1123
        %v1157 = vunpack.c.l.b16 %v1124
        %v1158 = vunpack.c.l.b16 %v1125
        %v1159 = vpack.c.b16 %v1152, %v1151
        %v1160 = vpack.c.b16 %v1154, %v1153
        %v1161 = vpack.c.b16 %v1156, %v1155
        %v1162 = vpack.c.b16 %v1158, %v1157
        %v1183 = vunpack.c.l.b16 %v1127
        %v1184 = vunpack.c.l.b16 %v1128
        %v1185 = vunpack.c.l.b16 %v1129
        %v1186 = vunpack.c.l.b16 %v1130
        %v1187 = vunpack.c.l.b16 %v1131
        %v1188 = vunpack.c.l.b16 %v1132
        %v1189 = vunpack.c.l.b16 %v1133
        %v1190 = vunpack.c.l.b16 %v1134
        %v1191 = vunpack.c.l.b16 %v1135
        %v1192 = vunpack.c.l.b16 %v1136
        %v1193 = vunpack.c.l.b16 %v1137
        %v1194 = vunpack.c.l.b16 %v1138
        %v1195 = vunpack.c.l.b16 %v1139
        %v1196 = vunpack.c.l.b16 %v1140
        %v1197 = vunpack.c.l.b16 %v1141
        %v1198 = vunpack.c.l.b16 %v1142
        %v1199 = vpack.c.b16 %v1184, %v1183
        %v1200 = vpack.c.b16 %v1186, %v1185
        %v1201 = vpack.c.b16 %v1188, %v1187
        %v1202 = vpack.c.b16 %v1190, %v1189
        %v1203 = vpack.c.b16 %v1192, %v1191
        %v1204 = vpack.c.b16 %v1194, %v1193
        %v1205 = vpack.c.b16 %v1196, %v1195
        %v1206 = vpack.c.b16 %v1198, %v1197
        %1215 = vmatprep.subr.bf16.mxu0 0
        %1216 = vmatpush1.bf16.msra.mxu0 %v1206
        %1217 = vmatprep.subr.bf16.mxu0 0
        %1218 = vmatpush1.bf16.msra.mxu0 %v1205
        %1219 = vmatprep.subr.bf16.mxu0 0
        %1220 = vmatpush1.bf16.msra.mxu0 %v1204
        %1221 = vmatprep.subr.bf16.mxu0 0
        %1222 = vmatpush1.bf16.msra.mxu0 %v1203
        %1223 = vmatprep.subr.bf16.mxu0 0
        %1224 = vmatpush1.bf16.msra.mxu0 %v1202
        %1225 = vmatprep.subr.bf16.mxu0 0
        %1226 = vmatpush1.bf16.msra.mxu0 %v1201
        %1227 = vmatprep.subr.bf16.mxu0 0
        %1228 = vmatpush1.bf16.msra.mxu0 %v1200
        %1229 = vmatprep.subr.bf16.mxu0 0
        %1230 = vmatpush1.bf16.msra.mxu0 %v1199
        %1231 = vmatprep.subr.bf16.mxu0 0
        %1232 = vmatpush2.bf16.msra.mxu0 0
        %1233 = vmatprep.subr.bf16.mxu0 0
        %1234 = vmatpush2.bf16.msra.mxu0 0
        %1235 = vmatprep.subr.bf16.mxu0 0
        %1236 = vmatpush2.bf16.msra.mxu0 0
        %1237 = vmatprep.subr.bf16.mxu0 0
        %1238 = vmatpush2.bf16.msra.mxu0 0
        %1239 = vmatprep.subr.bf16.mxu0 0
        %1240 = vmatpush2.bf16.msra.mxu0 0
        %1241 = vmatprep.subr.bf16.mxu0 0
        %1242 = vmatpush2.bf16.msra.mxu0 0
        %1243 = vmatprep.subr.bf16.mxu0 0
        %1244 = vmatpush2.bf16.msra.mxu0 0
        %1245 = vmatprep.subr.bf16.mxu0 0
        %1246 = vmatpush2.bf16.msra.mxu0 0
        %1247 = vmatprep.mubr.bf16.mxu0 0
        %1248 = vmatmul.mubr.bf16.gmra.mxu0 %v1159
        %v1249 = vpop.f32.mrf.mxu0
        %v1250 = vadd.f32 0.0, %v1249
        %v1251 = vpop.f32.mrf.mxu0
        %v1252 = vpop.f32.mrf.mxu0
        %v1253 = vadd.f32 0.0, %v1252
        %v1254 = vpop.f32.mrf.mxu0
        %1255 = vmatprep.mubr.bf16.mxu0 0
        %1256 = vmatmul.mubr.bf16.gmra.mxu0 %v1160
        %v1257 = vpop.f32.mrf.mxu0
        %v1258 = vadd.f32 0.0, %v1257
        %v1259 = vpop.f32.mrf.mxu0
        %v1260 = vpop.f32.mrf.mxu0
        %v1261 = vadd.f32 0.0, %v1260
        %v1262 = vpop.f32.mrf.mxu0
        %1263 = vmatprep.mubr.bf16.mxu0 0
        %1264 = vmatmul.mubr.bf16.gmra.mxu0 %v1161
        %v1265 = vpop.f32.mrf.mxu0
        %v1266 = vadd.f32 0.0, %v1265
        %v1267 = vpop.f32.mrf.mxu0
        %v1268 = vpop.f32.mrf.mxu0
        %v1269 = vadd.f32 0.0, %v1268
        %v1270 = vpop.f32.mrf.mxu0
        %1271 = vmatprep.mubr.bf16.mxu0 0
        %1272 = vmatmul.mubr.bf16.gmra.mxu0 %v1162
        %v1273 = vpop.f32.mrf.mxu0
        %v1274 = vadd.f32 0.0, %v1273
        %v1275 = vpop.f32.mrf.mxu0
        %v1276 = vpop.f32.mrf.mxu0
        %v1277 = vadd.f32 0.0, %v1276
        %v1278 = vpop.f32.mrf.mxu0
        %1279 = vdwg.mxu0
        %v1280 = vadd.f32 %v1094, %v1250
        %v1281 = vadd.f32 %v1095, %v1253
        %v1282 = vadd.f32 %v1096, %v1258
        %v1283 = vadd.f32 %v1097, %v1261
        %v1284 = vadd.f32 %v1098, %v1266
        %v1285 = vadd.f32 %v1099, %v1269
        %v1286 = vadd.f32 %v1100, %v1274
        %v1287 = vadd.f32 %v1101, %v1277
        %v1288 = vunpack.c.h.b16 %v1118
        %v1289 = vunpack.c.h.b16 %v1119
        %v1290 = vunpack.c.h.b16 %v1120
        %v1291 = vunpack.c.h.b16 %v1121
        %v1292 = vunpack.c.h.b16 %v1122
        %v1293 = vunpack.c.h.b16 %v1123
        %v1294 = vunpack.c.h.b16 %v1124
        %v1295 = vunpack.c.h.b16 %v1125
        %v1296 = vpack.c.b16 %v1151, %v1151
        %v1297 = vpack.c.b16 %v1288, %v1288
        %v1298 = vpack.c.b16 %v1152, %v1152
        %v1299 = vpack.c.b16 %v1289, %v1289
        %v1300 = vpack.c.b16 %v1153, %v1153
        %v1301 = vpack.c.b16 %v1290, %v1290
        %v1302 = vpack.c.b16 %v1154, %v1154
        %v1303 = vpack.c.b16 %v1291, %v1291
        %v1304 = vpack.c.b16 %v1155, %v1155
        %v1305 = vpack.c.b16 %v1292, %v1292
        %v1306 = vpack.c.b16 %v1156, %v1156
        %v1307 = vpack.c.b16 %v1293, %v1293
        %v1308 = vpack.c.b16 %v1157, %v1157
        %v1309 = vpack.c.b16 %v1294, %v1294
        %v1310 = vpack.c.b16 %v1158, %v1158
        %v1311 = vpack.c.b16 %v1295, %v1295
        %v1312 = vrot.slane %v1296, 5
        %v1313 = vrot.slane %v1312, 4
        %v1314 = vrot.slane %v1297, 5
        %v1315 = vsel %vm613, %v1313, %v1314
        %v1316 = vrot.slane %v1298, 5
        %v1317 = vrot.slane %v1316, 4
        %v1318 = vrot.slane %v1299, 5
        %v1319 = vsel %vm613, %v1317, %v1318
        %v1320 = vrot.slane %v1300, 5
        %v1321 = vrot.slane %v1320, 4
        %v1322 = vrot.slane %v1301, 5
        %v1323 = vsel %vm613, %v1321, %v1322
        %v1324 = vrot.slane %v1302, 5
        %v1325 = vrot.slane %v1324, 4
        %v1326 = vrot.slane %v1303, 5
        %v1327 = vsel %vm613, %v1325, %v1326
        %v1328 = vrot.slane %v1304, 5
        %v1329 = vrot.slane %v1328, 4
        %v1330 = vrot.slane %v1305, 5
        %v1331 = vsel %vm613, %v1329, %v1330
        %v1332 = vrot.slane %v1306, 5
        %v1333 = vrot.slane %v1332, 4
        %v1334 = vrot.slane %v1307, 5
        %v1335 = vsel %vm613, %v1333, %v1334
        %v1336 = vrot.slane %v1308, 5
        %v1337 = vrot.slane %v1336, 4
        %v1338 = vrot.slane %v1309, 5
        %v1339 = vsel %vm613, %v1337, %v1338
        %v1340 = vrot.slane %v1310, 5
        %v1341 = vrot.slane %v1340, 4
        %v1342 = vrot.slane %v1311, 5
        %v1343 = vsel %vm613, %v1341, %v1342
        %s1344 = scalar_lea.vmem [#allocation8], 256
        %v1345 = vld [vmem:[%s1344] sm:$0xf]
        %v1346 = vld [vmem:[%s1344 + $0x4] sm:$0xf]
        %v1347 = vld [vmem:[%s1344 + $0x8] sm:$0xf]
        %v1348 = vld [vmem:[%s1344 + $0xc] sm:$0xf]
        %v1349 = vld [vmem:[%s1344 + $0x10] sm:$0xf]
        %v1350 = vld [vmem:[%s1344 + $0x14] sm:$0xf]
        %v1351 = vld [vmem:[%s1344 + $0x18] sm:$0xf]
        %v1352 = vld [vmem:[%s1344 + $0x1c] sm:$0xf]
        %v1353 = vld [vmem:[%s1344 + $0x20] sm:$0xf]
        %v1354 = vld [vmem:[%s1344 + $0x24] sm:$0xf]
        %v1355 = vld [vmem:[%s1344 + $0x28] sm:$0xf]
        %v1356 = vld [vmem:[%s1344 + $0x2c] sm:$0xf]
        %v1357 = vld [vmem:[%s1344 + $0x30] sm:$0xf]
        %v1358 = vld [vmem:[%s1344 + $0x34] sm:$0xf]
        %v1359 = vld [vmem:[%s1344 + $0x38] sm:$0xf]
        %v1360 = vld [vmem:[%s1344 + $0x3c] sm:$0xf]
        %v1361 = vunpack.c.l.b16 %v1315
        %v1362 = vunpack.c.l.b16 %v1319
        %v1363 = vunpack.c.l.b16 %v1323
        %v1364 = vunpack.c.l.b16 %v1327
        %v1365 = vunpack.c.l.b16 %v1331
        %v1366 = vunpack.c.l.b16 %v1335
        %v1367 = vunpack.c.l.b16 %v1339
        %v1368 = vunpack.c.l.b16 %v1343
        %v1369 = vpack.c.b16 %v1362, %v1361
        %v1370 = vpack.c.b16 %v1364, %v1363
        %v1371 = vpack.c.b16 %v1366, %v1365
        %v1372 = vpack.c.b16 %v1368, %v1367
        %v1393 = vunpack.c.l.b16 %v1345
        %v1394 = vunpack.c.l.b16 %v1346
        %v1395 = vunpack.c.l.b16 %v1347
        %v1396 = vunpack.c.l.b16 %v1348
        %v1397 = vunpack.c.l.b16 %v1349
        %v1398 = vunpack.c.l.b16 %v1350
        %v1399 = vunpack.c.l.b16 %v1351
        %v1400 = vunpack.c.l.b16 %v1352
        %v1401 = vunpack.c.l.b16 %v1353
        %v1402 = vunpack.c.l.b16 %v1354
        %v1403 = vunpack.c.l.b16 %v1355
        %v1404 = vunpack.c.l.b16 %v1356
        %v1405 = vunpack.c.l.b16 %v1357
        %v1406 = vunpack.c.l.b16 %v1358
        %v1407 = vunpack.c.l.b16 %v1359
        %v1408 = vunpack.c.l.b16 %v1360
        %v1409 = vpack.c.b16 %v1394, %v1393
        %v1410 = vpack.c.b16 %v1396, %v1395
        %v1411 = vpack.c.b16 %v1398, %v1397
        %v1412 = vpack.c.b16 %v1400, %v1399
        %v1413 = vpack.c.b16 %v1402, %v1401
        %v1414 = vpack.c.b16 %v1404, %v1403
        %v1415 = vpack.c.b16 %v1406, %v1405
        %v1416 = vpack.c.b16 %v1408, %v1407
        %1425 = vmatprep.subr.bf16.mxu0 0
        %1426 = vmatpush1.bf16.msra.mxu0 %v1416
        %1427 = vmatprep.subr.bf16.mxu0 0
        %1428 = vmatpush1.bf16.msra.mxu0 %v1415
        %1429 = vmatprep.subr.bf16.mxu0 0
        %1430 = vmatpush1.bf16.msra.mxu0 %v1414
        %1431 = vmatprep.subr.bf16.mxu0 0
        %1432 = vmatpush1.bf16.msra.mxu0 %v1413
        %1433 = vmatprep.subr.bf16.mxu0 0
        %1434 = vmatpush1.bf16.msra.mxu0 %v1412
        %1435 = vmatprep.subr.bf16.mxu0 0
        %1436 = vmatpush1.bf16.msra.mxu0 %v1411
        %1437 = vmatprep.subr.bf16.mxu0 0
        %1438 = vmatpush1.bf16.msra.mxu0 %v1410
        %1439 = vmatprep.subr.bf16.mxu0 0
        %1440 = vmatpush1.bf16.msra.mxu0 %v1409
        %1441 = vmatprep.subr.bf16.mxu0 0
        %1442 = vmatpush2.bf16.msra.mxu0 0
        %1443 = vmatprep.subr.bf16.mxu0 0
        %1444 = vmatpush2.bf16.msra.mxu0 0
        %1445 = vmatprep.subr.bf16.mxu0 0
        %1446 = vmatpush2.bf16.msra.mxu0 0
        %1447 = vmatprep.subr.bf16.mxu0 0
        %1448 = vmatpush2.bf16.msra.mxu0 0
        %1449 = vmatprep.subr.bf16.mxu0 0
        %1450 = vmatpush2.bf16.msra.mxu0 0
        %1451 = vmatprep.subr.bf16.mxu0 0
        %1452 = vmatpush2.bf16.msra.mxu0 0
        %1453 = vmatprep.subr.bf16.mxu0 0
        %1454 = vmatpush2.bf16.msra.mxu0 0
        %1455 = vmatprep.subr.bf16.mxu0 0
        %1456 = vmatpush2.bf16.msra.mxu0 0
        %1457 = vmatprep.mubr.bf16.mxu0 0
        %1458 = vmatmul.mubr.bf16.gmra.mxu0 %v1369
        %v1459 = vpop.f32.mrf.mxu0
        %v1460 = vadd.f32 0.0, %v1459
        %v1461 = vpop.f32.mrf.mxu0
        %v1462 = vpop.f32.mrf.mxu0
        %v1463 = vadd.f32 0.0, %v1462
        %v1464 = vpop.f32.mrf.mxu0
        %1465 = vmatprep.mubr.bf16.mxu0 0
        %1466 = vmatmul.mubr.bf16.gmra.mxu0 %v1370
        %v1467 = vpop.f32.mrf.mxu0
        %v1468 = vadd.f32 0.0, %v1467
        %v1469 = vpop.f32.mrf.mxu0
        %v1470 = vpop.f32.mrf.mxu0
        %v1471 = vadd.f32 0.0, %v1470
        %v1472 = vpop.f32.mrf.mxu0
        %1473 = vmatprep.mubr.bf16.mxu0 0
        %1474 = vmatmul.mubr.bf16.gmra.mxu0 %v1371
        %v1475 = vpop.f32.mrf.mxu0
        %v1476 = vadd.f32 0.0, %v1475
        %v1477 = vpop.f32.mrf.mxu0
        %v1478 = vpop.f32.mrf.mxu0
        %v1479 = vadd.f32 0.0, %v1478
        %v1480 = vpop.f32.mrf.mxu0
        %1481 = vmatprep.mubr.bf16.mxu0 0
        %1482 = vmatmul.mubr.bf16.gmra.mxu0 %v1372
        %v1483 = vpop.f32.mrf.mxu0
        %v1484 = vadd.f32 0.0, %v1483
        %v1485 = vpop.f32.mrf.mxu0
        %v1486 = vpop.f32.mrf.mxu0
        %v1487 = vadd.f32 0.0, %v1486
        %v1488 = vpop.f32.mrf.mxu0
        %1489 = vdwg.mxu0
        %v1490 = vadd.f32 %v1280, %v1460
        %v1491 = vadd.f32 %v1281, %v1463
        %v1492 = vadd.f32 %v1282, %v1468
        %v1493 = vadd.f32 %v1283, %v1471
        %v1494 = vadd.f32 %v1284, %v1476
        %v1495 = vadd.f32 %v1285, %v1479
        %v1496 = vadd.f32 %v1286, %v1484
        %v1497 = vadd.f32 %v1287, %v1487
        %v1498 = vrot.slane %v1296, 6
        %v1499 = vrot.slane %v1498, 4
        %v1500 = vrot.slane %v1297, 6
        %v1501 = vsel %vm915, %v1499, %v1500
        %v1502 = vrot.slane %v1298, 6
        %v1503 = vrot.slane %v1502, 4
        %v1504 = vrot.slane %v1299, 6
        %v1505 = vsel %vm915, %v1503, %v1504
        %v1506 = vrot.slane %v1300, 6
        %v1507 = vrot.slane %v1506, 4
        %v1508 = vrot.slane %v1301, 6
        %v1509 = vsel %vm915, %v1507, %v1508
        %v1510 = vrot.slane %v1302, 6
        %v1511 = vrot.slane %v1510, 4
        %v1512 = vrot.slane %v1303, 6
        %v1513 = vsel %vm915, %v1511, %v1512
        %v1514 = vrot.slane %v1304, 6
        %v1515 = vrot.slane %v1514, 4
        %v1516 = vrot.slane %v1305, 6
        %v1517 = vsel %vm915, %v1515, %v1516
        %v1518 = vrot.slane %v1306, 6
        %v1519 = vrot.slane %v1518, 4
        %v1520 = vrot.slane %v1307, 6
        %v1521 = vsel %vm915, %v1519, %v1520
        %v1522 = vrot.slane %v1308, 6
        %v1523 = vrot.slane %v1522, 4
        %v1524 = vrot.slane %v1309, 6
        %v1525 = vsel %vm915, %v1523, %v1524
        %v1526 = vrot.slane %v1310, 6
        %v1527 = vrot.slane %v1526, 4
        %v1528 = vrot.slane %v1311, 6
        %v1529 = vsel %vm915, %v1527, %v1528
        %s1530 = scalar_lea.vmem [#allocation8], 320
        %v1531 = vld [vmem:[%s1530] sm:$0xf]
        %v1532 = vld [vmem:[%s1530 + $0x4] sm:$0xf]
        %v1533 = vld [vmem:[%s1530 + $0x8] sm:$0xf]
        %v1534 = vld [vmem:[%s1530 + $0xc] sm:$0xf]
        %v1535 = vld [vmem:[%s1530 + $0x10] sm:$0xf]
        %v1536 = vld [vmem:[%s1530 + $0x14] sm:$0xf]
        %v1537 = vld [vmem:[%s1530 + $0x18] sm:$0xf]
        %v1538 = vld [vmem:[%s1530 + $0x1c] sm:$0xf]
        %v1539 = vld [vmem:[%s1530 + $0x20] sm:$0xf]
        %v1540 = vld [vmem:[%s1530 + $0x24] sm:$0xf]
        %v1541 = vld [vmem:[%s1530 + $0x28] sm:$0xf]
        %v1542 = vld [vmem:[%s1530 + $0x2c] sm:$0xf]
        %v1543 = vld [vmem:[%s1530 + $0x30] sm:$0xf]
        %v1544 = vld [vmem:[%s1530 + $0x34] sm:$0xf]
        %v1545 = vld [vmem:[%s1530 + $0x38] sm:$0xf]
        %v1546 = vld [vmem:[%s1530 + $0x3c] sm:$0xf]
        %v1547 = vunpack.c.l.b16 %v1501
        %v1548 = vunpack.c.l.b16 %v1505
        %v1549 = vunpack.c.l.b16 %v1509
        %v1550 = vunpack.c.l.b16 %v1513
        %v1551 = vunpack.c.l.b16 %v1517
        %v1552 = vunpack.c.l.b16 %v1521
        %v1553 = vunpack.c.l.b16 %v1525
        %v1554 = vunpack.c.l.b16 %v1529
        %v1555 = vpack.c.b16 %v1548, %v1547
        %v1556 = vpack.c.b16 %v1550, %v1549
        %v1557 = vpack.c.b16 %v1552, %v1551
        %v1558 = vpack.c.b16 %v1554, %v1553
        %v1579 = vunpack.c.l.b16 %v1531
        %v1580 = vunpack.c.l.b16 %v1532
        %v1581 = vunpack.c.l.b16 %v1533
        %v1582 = vunpack.c.l.b16 %v1534
        %v1583 = vunpack.c.l.b16 %v1535
        %v1584 = vunpack.c.l.b16 %v1536
        %v1585 = vunpack.c.l.b16 %v1537
        %v1586 = vunpack.c.l.b16 %v1538
        %v1587 = vunpack.c.l.b16 %v1539
        %v1588 = vunpack.c.l.b16 %v1540
        %v1589 = vunpack.c.l.b16 %v1541
        %v1590 = vunpack.c.l.b16 %v1542
        %v1591 = vunpack.c.l.b16 %v1543
        %v1592 = vunpack.c.l.b16 %v1544
        %v1593 = vunpack.c.l.b16 %v1545
        %v1594 = vunpack.c.l.b16 %v1546
        %v1595 = vpack.c.b16 %v1580, %v1579
        %v1596 = vpack.c.b16 %v1582, %v1581
        %v1597 = vpack.c.b16 %v1584, %v1583
        %v1598 = vpack.c.b16 %v1586, %v1585
        %v1599 = vpack.c.b16 %v1588, %v1587
        %v1600 = vpack.c.b16 %v1590, %v1589
        %v1601 = vpack.c.b16 %v1592, %v1591
        %v1602 = vpack.c.b16 %v1594, %v1593
        %1611 = vmatprep.subr.bf16.mxu0 0
        %1612 = vmatpush1.bf16.msra.mxu0 %v1602
        %1613 = vmatprep.subr.bf16.mxu0 0
        %1614 = vmatpush1.bf16.msra.mxu0 %v1601
        %1615 = vmatprep.subr.bf16.mxu0 0
        %1616 = vmatpush1.bf16.msra.mxu0 %v1600
        %1617 = vmatprep.subr.bf16.mxu0 0
        %1618 = vmatpush1.bf16.msra.mxu0 %v1599
        %1619 = vmatprep.subr.bf16.mxu0 0
        %1620 = vmatpush1.bf16.msra.mxu0 %v1598
        %1621 = vmatprep.subr.bf16.mxu0 0
        %1622 = vmatpush1.bf16.msra.mxu0 %v1597
        %1623 = vmatprep.subr.bf16.mxu0 0
        %1624 = vmatpush1.bf16.msra.mxu0 %v1596
        %1625 = vmatprep.subr.bf16.mxu0 0
        %1626 = vmatpush1.bf16.msra.mxu0 %v1595
        %1627 = vmatprep.subr.bf16.mxu0 0
        %1628 = vmatpush2.bf16.msra.mxu0 0
        %1629 = vmatprep.subr.bf16.mxu0 0
        %1630 = vmatpush2.bf16.msra.mxu0 0
        %1631 = vmatprep.subr.bf16.mxu0 0
        %1632 = vmatpush2.bf16.msra.mxu0 0
        %1633 = vmatprep.subr.bf16.mxu0 0
        %1634 = vmatpush2.bf16.msra.mxu0 0
        %1635 = vmatprep.subr.bf16.mxu0 0
        %1636 = vmatpush2.bf16.msra.mxu0 0
        %1637 = vmatprep.subr.bf16.mxu0 0
        %1638 = vmatpush2.bf16.msra.mxu0 0
        %1639 = vmatprep.subr.bf16.mxu0 0
        %1640 = vmatpush2.bf16.msra.mxu0 0
        %1641 = vmatprep.subr.bf16.mxu0 0
        %1642 = vmatpush2.bf16.msra.mxu0 0
        %1643 = vmatprep.mubr.bf16.mxu0 0
        %1644 = vmatmul.mubr.bf16.gmra.mxu0 %v1555
        %v1645 = vpop.f32.mrf.mxu0
        %v1646 = vadd.f32 0.0, %v1645
        %v1647 = vpop.f32.mrf.mxu0
        %v1648 = vpop.f32.mrf.mxu0
        %v1649 = vadd.f32 0.0, %v1648
        %v1650 = vpop.f32.mrf.mxu0
        %1651 = vmatprep.mubr.bf16.mxu0 0
        %1652 = vmatmul.mubr.bf16.gmra.mxu0 %v1556
        %v1653 = vpop.f32.mrf.mxu0
        %v1654 = vadd.f32 0.0, %v1653
        %v1655 = vpop.f32.mrf.mxu0
        %v1656 = vpop.f32.mrf.mxu0
        %v1657 = vadd.f32 0.0, %v1656
        %v1658 = vpop.f32.mrf.mxu0
        %1659 = vmatprep.mubr.bf16.mxu0 0
        %1660 = vmatmul.mubr.bf16.gmra.mxu0 %v1557
        %v1661 = vpop.f32.mrf.mxu0
        %v1662 = vadd.f32 0.0, %v1661
        %v1663 = vpop.f32.mrf.mxu0
        %v1664 = vpop.f32.mrf.mxu0
        %v1665 = vadd.f32 0.0, %v1664
        %v1666 = vpop.f32.mrf.mxu0
        %1667 = vmatprep.mubr.bf16.mxu0 0
        %1668 = vmatmul.mubr.bf16.gmra.mxu0 %v1558
        %v1669 = vpop.f32.mrf.mxu0
        %v1670 = vadd.f32 0.0, %v1669
        %v1671 = vpop.f32.mrf.mxu0
        %v1672 = vpop.f32.mrf.mxu0
        %v1673 = vadd.f32 0.0, %v1672
        %v1674 = vpop.f32.mrf.mxu0
        %1675 = vdwg.mxu0
        %v1676 = vadd.f32 %v1490, %v1646
        %v1677 = vadd.f32 %v1491, %v1649
        %v1678 = vadd.f32 %v1492, %v1654
        %v1679 = vadd.f32 %v1493, %v1657
        %v1680 = vadd.f32 %v1494, %v1662
        %v1681 = vadd.f32 %v1495, %v1665
        %v1682 = vadd.f32 %v1496, %v1670
        %v1683 = vadd.f32 %v1497, %v1673
        %s1684 = scalar_lea.vmem [#allocation2], 64
        %v1685 = vld [vmem:[%s1684] sm:$0xff]
        %v1686 = vld [vmem:[%s1684 + $0x8] sm:$0xf]
        %v1687 = vld [vmem:[%s1684 + $0x10] sm:$0xff]
        %v1688 = vld [vmem:[%s1684 + $0x18] sm:$0xf]
        %v1689 = vld [vmem:[%s1684 + $0x20] sm:$0xff]
        %v1690 = vld [vmem:[%s1684 + $0x28] sm:$0xf]
        %v1691 = vld [vmem:[%s1684 + $0x30] sm:$0xff]
        %v1692 = vld [vmem:[%s1684 + $0x38] sm:$0xf]
        %v1693 = vld [vmem:[%s1684 + $0x40] sm:$0xff]
        %v1694 = vld [vmem:[%s1684 + $0x48] sm:$0xf]
        %v1695 = vld [vmem:[%s1684 + $0x50] sm:$0xff]
        %v1696 = vld [vmem:[%s1684 + $0x58] sm:$0xf]
        %v1697 = vld [vmem:[%s1684 + $0x60] sm:$0xff]
        %v1698 = vld [vmem:[%s1684 + $0x68] sm:$0xf]
        %v1699 = vld [vmem:[%s1684 + $0x70] sm:$0xff]
        %v1700 = vld [vmem:[%s1684 + $0x78] sm:$0xf]
        %v1701 = vpack.c.bf16 %v1686, %v1685
        %v1702 = vpack.c.bf16 %v1688, %v1687
        %v1703 = vpack.c.bf16 %v1690, %v1689
        %v1704 = vpack.c.bf16 %v1692, %v1691
        %v1705 = vpack.c.bf16 %v1694, %v1693
        %v1706 = vpack.c.bf16 %v1696, %v1695
        %v1707 = vpack.c.bf16 %v1698, %v1697
        %v1708 = vpack.c.bf16 %v1700, %v1699
        %s1709 = scalar_lea.vmem [#allocation8], 384
        %v1710 = vld [vmem:[%s1709] sm:$0xf]
        %v1711 = vld [vmem:[%s1709 + $0x4] sm:$0xf]
        %v1712 = vld [vmem:[%s1709 + $0x8] sm:$0xf]
        %v1713 = vld [vmem:[%s1709 + $0xc] sm:$0xf]
        %v1714 = vld [vmem:[%s1709 + $0x10] sm:$0xf]
        %v1715 = vld [vmem:[%s1709 + $0x14] sm:$0xf]
        %v1716 = vld [vmem:[%s1709 + $0x18] sm:$0xf]
        %v1717 = vld [vmem:[%s1709 + $0x1c] sm:$0xf]
        %v1718 = vld [vmem:[%s1709 + $0x20] sm:$0xf]
        %v1719 = vld [vmem:[%s1709 + $0x24] sm:$0xf]
        %v1720 = vld [vmem:[%s1709 + $0x28] sm:$0xf]
        %v1721 = vld [vmem:[%s1709 + $0x2c] sm:$0xf]
        %v1722 = vld [vmem:[%s1709 + $0x30] sm:$0xf]
        %v1723 = vld [vmem:[%s1709 + $0x34] sm:$0xf]
        %v1724 = vld [vmem:[%s1709 + $0x38] sm:$0xf]
        %v1725 = vld [vmem:[%s1709 + $0x3c] sm:$0xf]
        %v1734 = vunpack.c.l.b16 %v1701
        %v1735 = vunpack.c.l.b16 %v1702
        %v1736 = vunpack.c.l.b16 %v1703
        %v1737 = vunpack.c.l.b16 %v1704
        %v1738 = vunpack.c.l.b16 %v1705
        %v1739 = vunpack.c.l.b16 %v1706
        %v1740 = vunpack.c.l.b16 %v1707
        %v1741 = vunpack.c.l.b16 %v1708
        %v1742 = vpack.c.b16 %v1735, %v1734
        %v1743 = vpack.c.b16 %v1737, %v1736
        %v1744 = vpack.c.b16 %v1739, %v1738
        %v1745 = vpack.c.b16 %v1741, %v1740
        %v1766 = vunpack.c.l.b16 %v1710
        %v1767 = vunpack.c.l.b16 %v1711
        %v1768 = vunpack.c.l.b16 %v1712
        %v1769 = vunpack.c.l.b16 %v1713
        %v1770 = vunpack.c.l.b16 %v1714
        %v1771 = vunpack.c.l.b16 %v1715
        %v1772 = vunpack.c.l.b16 %v1716
        %v1773 = vunpack.c.l.b16 %v1717
        %v1774 = vunpack.c.l.b16 %v1718
        %v1775 = vunpack.c.l.b16 %v1719
        %v1776 = vunpack.c.l.b16 %v1720
        %v1777 = vunpack.c.l.b16 %v1721
        %v1778 = vunpack.c.l.b16 %v1722
        %v1779 = vunpack.c.l.b16 %v1723
        %v1780 = vunpack.c.l.b16 %v1724
        %v1781 = vunpack.c.l.b16 %v1725
        %v1782 = vpack.c.b16 %v1767, %v1766
        %v1783 = vpack.c.b16 %v1769, %v1768
        %v1784 = vpack.c.b16 %v1771, %v1770
        %v1785 = vpack.c.b16 %v1773, %v1772
        %v1786 = vpack.c.b16 %v1775, %v1774
        %v1787 = vpack.c.b16 %v1777, %v1776
        %v1788 = vpack.c.b16 %v1779, %v1778
        %v1789 = vpack.c.b16 %v1781, %v1780
        %1798 = vmatprep.subr.bf16.mxu0 0
        %1799 = vmatpush1.bf16.msra.mxu0 %v1789
        %1800 = vmatprep.subr.bf16.mxu0 0
        %1801 = vmatpush1.bf16.msra.mxu0 %v1788
        %1802 = vmatprep.subr.bf16.mxu0 0
        %1803 = vmatpush1.bf16.msra.mxu0 %v1787
        %1804 = vmatprep.subr.bf16.mxu0 0
        %1805 = vmatpush1.bf16.msra.mxu0 %v1786
        %1806 = vmatprep.subr.bf16.mxu0 0
        %1807 = vmatpush1.bf16.msra.mxu0 %v1785
        %1808 = vmatprep.subr.bf16.mxu0 0
        %1809 = vmatpush1.bf16.msra.mxu0 %v1784
        %1810 = vmatprep.subr.bf16.mxu0 0
        %1811 = vmatpush1.bf16.msra.mxu0 %v1783
        %1812 = vmatprep.subr.bf16.mxu0 0
        %1813 = vmatpush1.bf16.msra.mxu0 %v1782
        %1814 = vmatprep.subr.bf16.mxu0 0
        %1815 = vmatpush2.bf16.msra.mxu0 0
        %1816 = vmatprep.subr.bf16.mxu0 0
        %1817 = vmatpush2.bf16.msra.mxu0 0
        %1818 = vmatprep.subr.bf16.mxu0 0
        %1819 = vmatpush2.bf16.msra.mxu0 0
        %1820 = vmatprep.subr.bf16.mxu0 0
        %1821 = vmatpush2.bf16.msra.mxu0 0
        %1822 = vmatprep.subr.bf16.mxu0 0
        %1823 = vmatpush2.bf16.msra.mxu0 0
        %1824 = vmatprep.subr.bf16.mxu0 0
        %1825 = vmatpush2.bf16.msra.mxu0 0
        %1826 = vmatprep.subr.bf16.mxu0 0
        %1827 = vmatpush2.bf16.msra.mxu0 0
        %1828 = vmatprep.subr.bf16.mxu0 0
        %1829 = vmatpush2.bf16.msra.mxu0 0
        %1830 = vmatprep.mubr.bf16.mxu0 0
        %1831 = vmatmul.mubr.bf16.gmra.mxu0 %v1742
        %v1832 = vpop.f32.mrf.mxu0
        %v1833 = vadd.f32 0.0, %v1832
        %v1834 = vpop.f32.mrf.mxu0
        %v1835 = vpop.f32.mrf.mxu0
        %v1836 = vadd.f32 0.0, %v1835
        %v1837 = vpop.f32.mrf.mxu0
        %1838 = vmatprep.mubr.bf16.mxu0 0
        %1839 = vmatmul.mubr.bf16.gmra.mxu0 %v1743
        %v1840 = vpop.f32.mrf.mxu0
        %v1841 = vadd.f32 0.0, %v1840
        %v1842 = vpop.f32.mrf.mxu0
        %v1843 = vpop.f32.mrf.mxu0
        %v1844 = vadd.f32 0.0, %v1843
        %v1845 = vpop.f32.mrf.mxu0
        %1846 = vmatprep.mubr.bf16.mxu0 0
        %1847 = vmatmul.mubr.bf16.gmra.mxu0 %v1744
        %v1848 = vpop.f32.mrf.mxu0
        %v1849 = vadd.f32 0.0, %v1848
        %v1850 = vpop.f32.mrf.mxu0
        %v1851 = vpop.f32.mrf.mxu0
        %v1852 = vadd.f32 0.0, %v1851
        %v1853 = vpop.f32.mrf.mxu0
        %1854 = vmatprep.mubr.bf16.mxu0 0
        %1855 = vmatmul.mubr.bf16.gmra.mxu0 %v1745
        %v1856 = vpop.f32.mrf.mxu0
        %v1857 = vadd.f32 0.0, %v1856
        %v1858 = vpop.f32.mrf.mxu0
        %v1859 = vpop.f32.mrf.mxu0
        %v1860 = vadd.f32 0.0, %v1859
        %v1861 = vpop.f32.mrf.mxu0
        %1862 = vdwg.mxu0
        %v1863 = vadd.f32 %v1676, %v1833
        %v1864 = vadd.f32 %v1677, %v1836
        %v1865 = vadd.f32 %v1678, %v1841
        %v1866 = vadd.f32 %v1679, %v1844
        %v1867 = vadd.f32 %v1680, %v1849
        %v1868 = vadd.f32 %v1681, %v1852
        %v1869 = vadd.f32 %v1682, %v1857
        %v1870 = vadd.f32 %v1683, %v1860
        %v1871 = vunpack.c.h.b16 %v1701
        %v1872 = vunpack.c.h.b16 %v1702
        %v1873 = vunpack.c.h.b16 %v1703
        %v1874 = vunpack.c.h.b16 %v1704
        %v1875 = vunpack.c.h.b16 %v1705
        %v1876 = vunpack.c.h.b16 %v1706
        %v1877 = vunpack.c.h.b16 %v1707
        %v1878 = vunpack.c.h.b16 %v1708
        %v1879 = vpack.c.b16 %v1734, %v1734
        %v1880 = vpack.c.b16 %v1871, %v1871
        %v1881 = vpack.c.b16 %v1735, %v1735
        %v1882 = vpack.c.b16 %v1872, %v1872
        %v1883 = vpack.c.b16 %v1736, %v1736
        %v1884 = vpack.c.b16 %v1873, %v1873
        %v1885 = vpack.c.b16 %v1737, %v1737
        %v1886 = vpack.c.b16 %v1874, %v1874
        %v1887 = vpack.c.b16 %v1738, %v1738
        %v1888 = vpack.c.b16 %v1875, %v1875
        %v1889 = vpack.c.b16 %v1739, %v1739
        %v1890 = vpack.c.b16 %v1876, %v1876
        %v1891 = vpack.c.b16 %v1740, %v1740
        %v1892 = vpack.c.b16 %v1877, %v1877
        %v1893 = vpack.c.b16 %v1741, %v1741
        %v1894 = vpack.c.b16 %v1878, %v1878
        %v1895 = vrot.slane %v1879, 5
        %v1896 = vrot.slane %v1895, 4
        %v1897 = vrot.slane %v1880, 5
        %v1898 = vsel %vm613, %v1896, %v1897
        %v1899 = vrot.slane %v1881, 5
        %v1900 = vrot.slane %v1899, 4
        %v1901 = vrot.slane %v1882, 5
        %v1902 = vsel %vm613, %v1900, %v1901
        %v1903 = vrot.slane %v1883, 5
        %v1904 = vrot.slane %v1903, 4
        %v1905 = vrot.slane %v1884, 5
        %v1906 = vsel %vm613, %v1904, %v1905
        %v1907 = vrot.slane %v1885, 5
        %v1908 = vrot.slane %v1907, 4
        %v1909 = vrot.slane %v1886, 5
        %v1910 = vsel %vm613, %v1908, %v1909
        %v1911 = vrot.slane %v1887, 5
        %v1912 = vrot.slane %v1911, 4
        %v1913 = vrot.slane %v1888, 5
        %v1914 = vsel %vm613, %v1912, %v1913
        %v1915 = vrot.slane %v1889, 5
        %v1916 = vrot.slane %v1915, 4
        %v1917 = vrot.slane %v1890, 5
        %v1918 = vsel %vm613, %v1916, %v1917
        %v1919 = vrot.slane %v1891, 5
        %v1920 = vrot.slane %v1919, 4
        %v1921 = vrot.slane %v1892, 5
        %v1922 = vsel %vm613, %v1920, %v1921
        %v1923 = vrot.slane %v1893, 5
        %v1924 = vrot.slane %v1923, 4
        %v1925 = vrot.slane %v1894, 5
        %v1926 = vsel %vm613, %v1924, %v1925
        %s1927 = scalar_lea.vmem [#allocation8], 448
        %v1928 = vld [vmem:[%s1927] sm:$0xf]
        %v1929 = vld [vmem:[%s1927 + $0x4] sm:$0xf]
        %v1930 = vld [vmem:[%s1927 + $0x8] sm:$0xf]
        %v1931 = vld [vmem:[%s1927 + $0xc] sm:$0xf]
        %v1932 = vld [vmem:[%s1927 + $0x10] sm:$0xf]
        %v1933 = vld [vmem:[%s1927 + $0x14] sm:$0xf]
        %v1934 = vld [vmem:[%s1927 + $0x18] sm:$0xf]
        %v1935 = vld [vmem:[%s1927 + $0x1c] sm:$0xf]
        %v1936 = vld [vmem:[%s1927 + $0x20] sm:$0xf]
        %v1937 = vld [vmem:[%s1927 + $0x24] sm:$0xf]
        %v1938 = vld [vmem:[%s1927 + $0x28] sm:$0xf]
        %v1939 = vld [vmem:[%s1927 + $0x2c] sm:$0xf]
        %v1940 = vld [vmem:[%s1927 + $0x30] sm:$0xf]
        %v1941 = vld [vmem:[%s1927 + $0x34] sm:$0xf]
        %v1942 = vld [vmem:[%s1927 + $0x38] sm:$0xf]
        %v1943 = vld [vmem:[%s1927 + $0x3c] sm:$0xf]
        %v1944 = vunpack.c.l.b16 %v1898
        %v1945 = vunpack.c.l.b16 %v1902
        %v1946 = vunpack.c.l.b16 %v1906
        %v1947 = vunpack.c.l.b16 %v1910
        %v1948 = vunpack.c.l.b16 %v1914
        %v1949 = vunpack.c.l.b16 %v1918
        %v1950 = vunpack.c.l.b16 %v1922
        %v1951 = vunpack.c.l.b16 %v1926
        %v1952 = vpack.c.b16 %v1945, %v1944
        %v1953 = vpack.c.b16 %v1947, %v1946
        %v1954 = vpack.c.b16 %v1949, %v1948
        %v1955 = vpack.c.b16 %v1951, %v1950
        %v1976 = vunpack.c.l.b16 %v1928
        %v1977 = vunpack.c.l.b16 %v1929
        %v1978 = vunpack.c.l.b16 %v1930
        %v1979 = vunpack.c.l.b16 %v1931
        %v1980 = vunpack.c.l.b16 %v1932
        %v1981 = vunpack.c.l.b16 %v1933
        %v1982 = vunpack.c.l.b16 %v1934
        %v1983 = vunpack.c.l.b16 %v1935
        %v1984 = vunpack.c.l.b16 %v1936
        %v1985 = vunpack.c.l.b16 %v1937
        %v1986 = vunpack.c.l.b16 %v1938
        %v1987 = vunpack.c.l.b16 %v1939
        %v1988 = vunpack.c.l.b16 %v1940
        %v1989 = vunpack.c.l.b16 %v1941
        %v1990 = vunpack.c.l.b16 %v1942
        %v1991 = vunpack.c.l.b16 %v1943
        %v1992 = vpack.c.b16 %v1977, %v1976
        %v1993 = vpack.c.b16 %v1979, %v1978
        %v1994 = vpack.c.b16 %v1981, %v1980
        %v1995 = vpack.c.b16 %v1983, %v1982
        %v1996 = vpack.c.b16 %v1985, %v1984
        %v1997 = vpack.c.b16 %v1987, %v1986
        %v1998 = vpack.c.b16 %v1989, %v1988
        %v1999 = vpack.c.b16 %v1991, %v1990
        %2008 = vmatprep.subr.bf16.mxu0 0
        %2009 = vmatpush1.bf16.msra.mxu0 %v1999
        %2010 = vmatprep.subr.bf16.mxu0 0
        %2011 = vmatpush1.bf16.msra.mxu0 %v1998
        %2012 = vmatprep.subr.bf16.mxu0 0
        %2013 = vmatpush1.bf16.msra.mxu0 %v1997
        %2014 = vmatprep.subr.bf16.mxu0 0
        %2015 = vmatpush1.bf16.msra.mxu0 %v1996
        %2016 = vmatprep.subr.bf16.mxu0 0
        %2017 = vmatpush1.bf16.msra.mxu0 %v1995
        %2018 = vmatprep.subr.bf16.mxu0 0
        %2019 = vmatpush1.bf16.msra.mxu0 %v1994
        %2020 = vmatprep.subr.bf16.mxu0 0
        %2021 = vmatpush1.bf16.msra.mxu0 %v1993
        %2022 = vmatprep.subr.bf16.mxu0 0
        %2023 = vmatpush1.bf16.msra.mxu0 %v1992
        %2024 = vmatprep.subr.bf16.mxu0 0
        %2025 = vmatpush2.bf16.msra.mxu0 0
        %2026 = vmatprep.subr.bf16.mxu0 0
        %2027 = vmatpush2.bf16.msra.mxu0 0
        %2028 = vmatprep.subr.bf16.mxu0 0
        %2029 = vmatpush2.bf16.msra.mxu0 0
        %2030 = vmatprep.subr.bf16.mxu0 0
        %2031 = vmatpush2.bf16.msra.mxu0 0
        %2032 = vmatprep.subr.bf16.mxu0 0
        %2033 = vmatpush2.bf16.msra.mxu0 0
        %2034 = vmatprep.subr.bf16.mxu0 0
        %2035 = vmatpush2.bf16.msra.mxu0 0
        %2036 = vmatprep.subr.bf16.mxu0 0
        %2037 = vmatpush2.bf16.msra.mxu0 0
        %2038 = vmatprep.subr.bf16.mxu0 0
        %2039 = vmatpush2.bf16.msra.mxu0 0
        %2040 = vmatprep.mubr.bf16.mxu0 0
        %2041 = vmatmul.mubr.bf16.gmra.mxu0 %v1952
        %v2042 = vpop.f32.mrf.mxu0
        %v2043 = vadd.f32 0.0, %v2042
        %v2044 = vpop.f32.mrf.mxu0
        %v2045 = vpop.f32.mrf.mxu0
        %v2046 = vadd.f32 0.0, %v2045
        %v2047 = vpop.f32.mrf.mxu0
        %2048 = vmatprep.mubr.bf16.mxu0 0
        %2049 = vmatmul.mubr.bf16.gmra.mxu0 %v1953
        %v2050 = vpop.f32.mrf.mxu0
        %v2051 = vadd.f32 0.0, %v2050
        %v2052 = vpop.f32.mrf.mxu0
        %v2053 = vpop.f32.mrf.mxu0
        %v2054 = vadd.f32 0.0, %v2053
        %v2055 = vpop.f32.mrf.mxu0
        %2056 = vmatprep.mubr.bf16.mxu0 0
        %2057 = vmatmul.mubr.bf16.gmra.mxu0 %v1954
        %v2058 = vpop.f32.mrf.mxu0
        %v2059 = vadd.f32 0.0, %v2058
        %v2060 = vpop.f32.mrf.mxu0
        %v2061 = vpop.f32.mrf.mxu0
        %v2062 = vadd.f32 0.0, %v2061
        %v2063 = vpop.f32.mrf.mxu0
        %2064 = vmatprep.mubr.bf16.mxu0 0
        %2065 = vmatmul.mubr.bf16.gmra.mxu0 %v1955
        %v2066 = vpop.f32.mrf.mxu0
        %v2067 = vadd.f32 0.0, %v2066
        %v2068 = vpop.f32.mrf.mxu0
        %v2069 = vpop.f32.mrf.mxu0
        %v2070 = vadd.f32 0.0, %v2069
        %v2071 = vpop.f32.mrf.mxu0
        %2072 = vdwg.mxu0
        %v2073 = vadd.f32 %v1863, %v2043
        %v2074 = vadd.f32 %v1864, %v2046
        %v2075 = vadd.f32 %v1865, %v2051
        %v2076 = vadd.f32 %v1866, %v2054
        %v2077 = vadd.f32 %v1867, %v2059
        %v2078 = vadd.f32 %v1868, %v2062
        %v2079 = vadd.f32 %v1869, %v2067
        %v2080 = vadd.f32 %v1870, %v2070
        %v2081 = vrot.slane %v1879, 6
        %v2082 = vrot.slane %v2081, 4
        %v2083 = vrot.slane %v1880, 6
        %v2084 = vsel %vm915, %v2082, %v2083
        %v2085 = vrot.slane %v1881, 6
        %v2086 = vrot.slane %v2085, 4
        %v2087 = vrot.slane %v1882, 6
        %v2088 = vsel %vm915, %v2086, %v2087
        %v2089 = vrot.slane %v1883, 6
        %v2090 = vrot.slane %v2089, 4
        %v2091 = vrot.slane %v1884, 6
        %v2092 = vsel %vm915, %v2090, %v2091
        %v2093 = vrot.slane %v1885, 6
        %v2094 = vrot.slane %v2093, 4
        %v2095 = vrot.slane %v1886, 6
        %v2096 = vsel %vm915, %v2094, %v2095
        %v2097 = vrot.slane %v1887, 6
        %v2098 = vrot.slane %v2097, 4
        %v2099 = vrot.slane %v1888, 6
        %v2100 = vsel %vm915, %v2098, %v2099
        %v2101 = vrot.slane %v1889, 6
        %v2102 = vrot.slane %v2101, 4
        %v2103 = vrot.slane %v1890, 6
        %v2104 = vsel %vm915, %v2102, %v2103
        %v2105 = vrot.slane %v1891, 6
        %v2106 = vrot.slane %v2105, 4
        %v2107 = vrot.slane %v1892, 6
        %v2108 = vsel %vm915, %v2106, %v2107
        %v2109 = vrot.slane %v1893, 6
        %v2110 = vrot.slane %v2109, 4
        %v2111 = vrot.slane %v1894, 6
        %v2112 = vsel %vm915, %v2110, %v2111
        %s2113 = scalar_lea.vmem [#allocation8], 512
        %v2114 = vld [vmem:[%s2113] sm:$0xf]
        %v2115 = vld [vmem:[%s2113 + $0x4] sm:$0xf]
        %v2116 = vld [vmem:[%s2113 + $0x8] sm:$0xf]
        %v2117 = vld [vmem:[%s2113 + $0xc] sm:$0xf]
        %v2118 = vld [vmem:[%s2113 + $0x10] sm:$0xf]
        %v2119 = vld [vmem:[%s2113 + $0x14] sm:$0xf]
        %v2120 = vld [vmem:[%s2113 + $0x18] sm:$0xf]
        %v2121 = vld [vmem:[%s2113 + $0x1c] sm:$0xf]
        %v2122 = vld [vmem:[%s2113 + $0x20] sm:$0xf]
        %v2123 = vld [vmem:[%s2113 + $0x24] sm:$0xf]
        %v2124 = vld [vmem:[%s2113 + $0x28] sm:$0xf]
        %v2125 = vld [vmem:[%s2113 + $0x2c] sm:$0xf]
        %v2126 = vld [vmem:[%s2113 + $0x30] sm:$0xf]
        %v2127 = vld [vmem:[%s2113 + $0x34] sm:$0xf]
        %v2128 = vld [vmem:[%s2113 + $0x38] sm:$0xf]
        %v2129 = vld [vmem:[%s2113 + $0x3c] sm:$0xf]
        %v2130 = vunpack.c.l.b16 %v2084
        %v2131 = vunpack.c.l.b16 %v2088
        %v2132 = vunpack.c.l.b16 %v2092
        %v2133 = vunpack.c.l.b16 %v2096
        %v2134 = vunpack.c.l.b16 %v2100
        %v2135 = vunpack.c.l.b16 %v2104
        %v2136 = vunpack.c.l.b16 %v2108
        %v2137 = vunpack.c.l.b16 %v2112
        %v2138 = vpack.c.b16 %v2131, %v2130
        %v2139 = vpack.c.b16 %v2133, %v2132
        %v2140 = vpack.c.b16 %v2135, %v2134
        %v2141 = vpack.c.b16 %v2137, %v2136
        %v2162 = vunpack.c.l.b16 %v2114
        %v2163 = vunpack.c.l.b16 %v2115
        %v2164 = vunpack.c.l.b16 %v2116
        %v2165 = vunpack.c.l.b16 %v2117
        %v2166 = vunpack.c.l.b16 %v2118
        %v2167 = vunpack.c.l.b16 %v2119
        %v2168 = vunpack.c.l.b16 %v2120
        %v2169 = vunpack.c.l.b16 %v2121
        %v2170 = vunpack.c.l.b16 %v2122
        %v2171 = vunpack.c.l.b16 %v2123
        %v2172 = vunpack.c.l.b16 %v2124
        %v2173 = vunpack.c.l.b16 %v2125
        %v2174 = vunpack.c.l.b16 %v2126
        %v2175 = vunpack.c.l.b16 %v2127
        %v2176 = vunpack.c.l.b16 %v2128
        %v2177 = vunpack.c.l.b16 %v2129
        %v2178 = vpack.c.b16 %v2163, %v2162
        %v2179 = vpack.c.b16 %v2165, %v2164
        %v2180 = vpack.c.b16 %v2167, %v2166
        %v2181 = vpack.c.b16 %v2169, %v2168
        %v2182 = vpack.c.b16 %v2171, %v2170
        %v2183 = vpack.c.b16 %v2173, %v2172
        %v2184 = vpack.c.b16 %v2175, %v2174
        %v2185 = vpack.c.b16 %v2177, %v2176
        %2194 = vmatprep.subr.bf16.mxu0 0
        %2195 = vmatpush1.bf16.msra.mxu0 %v2185
        %2196 = vmatprep.subr.bf16.mxu0 0
        %2197 = vmatpush1.bf16.msra.mxu0 %v2184
        %2198 = vmatprep.subr.bf16.mxu0 0
        %2199 = vmatpush1.bf16.msra.mxu0 %v2183
        %2200 = vmatprep.subr.bf16.mxu0 0
        %2201 = vmatpush1.bf16.msra.mxu0 %v2182
        %2202 = vmatprep.subr.bf16.mxu0 0
        %2203 = vmatpush1.bf16.msra.mxu0 %v2181
        %2204 = vmatprep.subr.bf16.mxu0 0
        %2205 = vmatpush1.bf16.msra.mxu0 %v2180
        %2206 = vmatprep.subr.bf16.mxu0 0
        %2207 = vmatpush1.bf16.msra.mxu0 %v2179
        %2208 = vmatprep.subr.bf16.mxu0 0
        %2209 = vmatpush1.bf16.msra.mxu0 %v2178
        %2210 = vmatprep.subr.bf16.mxu0 0
        %2211 = vmatpush2.bf16.msra.mxu0 0
        %2212 = vmatprep.subr.bf16.mxu0 0
        %2213 = vmatpush2.bf16.msra.mxu0 0
        %2214 = vmatprep.subr.bf16.mxu0 0
        %2215 = vmatpush2.bf16.msra.mxu0 0
        %2216 = vmatprep.subr.bf16.mxu0 0
        %2217 = vmatpush2.bf16.msra.mxu0 0
        %2218 = vmatprep.subr.bf16.mxu0 0
        %2219 = vmatpush2.bf16.msra.mxu0 0
        %2220 = vmatprep.subr.bf16.mxu0 0
        %2221 = vmatpush2.bf16.msra.mxu0 0
        %2222 = vmatprep.subr.bf16.mxu0 0
        %2223 = vmatpush2.bf16.msra.mxu0 0
        %2224 = vmatprep.subr.bf16.mxu0 0
        %2225 = vmatpush2.bf16.msra.mxu0 0
        %2226 = vmatprep.mubr.bf16.mxu0 0
        %2227 = vmatmul.mubr.bf16.gmra.mxu0 %v2138
        %v2228 = vpop.f32.mrf.mxu0
        %v2229 = vadd.f32 0.0, %v2228
        %v2230 = vpop.f32.mrf.mxu0
        %v2231 = vpop.f32.mrf.mxu0
        %v2232 = vadd.f32 0.0, %v2231
        %v2233 = vpop.f32.mrf.mxu0
        %2234 = vmatprep.mubr.bf16.mxu0 0
        %2235 = vmatmul.mubr.bf16.gmra.mxu0 %v2139
        %v2236 = vpop.f32.mrf.mxu0
        %v2237 = vadd.f32 0.0, %v2236
        %v2238 = vpop.f32.mrf.mxu0
        %v2239 = vpop.f32.mrf.mxu0
        %v2240 = vadd.f32 0.0, %v2239
        %v2241 = vpop.f32.mrf.mxu0
        %2242 = vmatprep.mubr.bf16.mxu0 0
        %2243 = vmatmul.mubr.bf16.gmra.mxu0 %v2140
        %v2244 = vpop.f32.mrf.mxu0
        %v2245 = vadd.f32 0.0, %v2244
        %v2246 = vpop.f32.mrf.mxu0
        %v2247 = vpop.f32.mrf.mxu0
        %v2248 = vadd.f32 0.0, %v2247
        %v2249 = vpop.f32.mrf.mxu0
        %2250 = vmatprep.mubr.bf16.mxu0 0
        %2251 = vmatmul.mubr.bf16.gmra.mxu0 %v2141
        %v2252 = vpop.f32.mrf.mxu0
        %v2253 = vadd.f32 0.0, %v2252
        %v2254 = vpop.f32.mrf.mxu0
        %v2255 = vpop.f32.mrf.mxu0
        %v2256 = vadd.f32 0.0, %v2255
        %v2257 = vpop.f32.mrf.mxu0
        %2258 = vdwg.mxu0
        %v2259 = vadd.f32 %v2073, %v2229
        %v2260 = vadd.f32 %v2074, %v2232
        %v2261 = vadd.f32 %v2075, %v2237
        %v2262 = vadd.f32 %v2076, %v2240
        %v2263 = vadd.f32 %v2077, %v2245
        %v2264 = vadd.f32 %v2078, %v2248
        %v2265 = vadd.f32 %v2079, %v2253
        %v2266 = vadd.f32 %v2080, %v2256
        %v2267 = vld [vmem:[%s4] sm:$0x1]
        %v2269 = vlaneseq
        %v2270 = vshrl.u32 %v2269, 7
        %v2271 = vsub.s32 0, %v2270
        %v2272 = vrot.slane %v2267, %v2271
        %v2274 = vadd.f32 %v2259, %v2272
        %v2275 = vadd.f32 %v2260, %v2272
        %v2276 = vadd.f32 %v2261, %v2272
        %v2277 = vadd.f32 %v2262, %v2272
        %v2278 = vadd.f32 %v2263, %v2272
        %v2279 = vadd.f32 %v2264, %v2272
        %v2280 = vadd.f32 %v2265, %v2272
        %v2281 = vadd.f32 %v2266, %v2272
        %v2282 = vmax.f32 %v2274, 0.0
        %v2283 = vmax.f32 %v2275, 0.0
        %v2284 = vmax.f32 %v2276, 0.0
        %v2285 = vmax.f32 %v2277, 0.0
        %v2286 = vmax.f32 %v2278, 0.0
        %v2287 = vmax.f32 %v2279, 0.0
        %v2288 = vmax.f32 %v2280, 0.0
        %v2289 = vmax.f32 %v2281, 0.0
        %v2290 = vpack.c.bf16 %v2283, %v2282
        %v2291 = vpack.c.bf16 %v2285, %v2284
        %v2292 = vpack.c.bf16 %v2287, %v2286
        %v2293 = vpack.c.bf16 %v2289, %v2288
        %v2294 = vld [vmem:[#allocation9] sm:$0xf]
        %v2295 = vld [vmem:[#allocation9 + $0x4] sm:$0xf]
        %v2296 = vld [vmem:[#allocation9 + $0x8] sm:$0xf]
        %v2297 = vld [vmem:[#allocation9 + $0xc] sm:$0xf]
        %v2298 = vld [vmem:[#allocation9 + $0x10] sm:$0xf]
        %v2299 = vld [vmem:[#allocation9 + $0x14] sm:$0xf]
        %v2300 = vld [vmem:[#allocation9 + $0x18] sm:$0xf]
        %v2301 = vld [vmem:[#allocation9 + $0x1c] sm:$0xf]
        %v2302 = vld [vmem:[#allocation9 + $0x20] sm:$0xf]
        %v2303 = vld [vmem:[#allocation9 + $0x24] sm:$0xf]
        %v2304 = vld [vmem:[#allocation9 + $0x28] sm:$0xf]
        %v2305 = vld [vmem:[#allocation9 + $0x2c] sm:$0xf]
        %v2306 = vld [vmem:[#allocation9 + $0x30] sm:$0xf]
        %v2307 = vld [vmem:[#allocation9 + $0x34] sm:$0xf]
        %v2308 = vld [vmem:[#allocation9 + $0x38] sm:$0xf]
        %v2309 = vld [vmem:[#allocation9 + $0x3c] sm:$0xf]
        %v2310 = vld [vmem:[#allocation9 + $0x40] sm:$0xf]
        %v2311 = vld [vmem:[#allocation9 + $0x44] sm:$0xf]
        %v2312 = vld [vmem:[#allocation9 + $0x48] sm:$0xf]
        %v2313 = vld [vmem:[#allocation9 + $0x4c] sm:$0xf]
        %v2314 = vld [vmem:[#allocation9 + $0x50] sm:$0xf]
        %v2315 = vld [vmem:[#allocation9 + $0x54] sm:$0xf]
        %v2316 = vld [vmem:[#allocation9 + $0x58] sm:$0xf]
        %v2317 = vld [vmem:[#allocation9 + $0x5c] sm:$0xf]
        %v2318 = vld [vmem:[#allocation9 + $0x60] sm:$0xf]
        %v2319 = vld [vmem:[#allocation9 + $0x64] sm:$0xf]
        %v2320 = vld [vmem:[#allocation9 + $0x68] sm:$0xf]
        %v2321 = vld [vmem:[#allocation9 + $0x6c] sm:$0xf]
        %v2322 = vld [vmem:[#allocation9 + $0x70] sm:$0xf]
        %v2323 = vld [vmem:[#allocation9 + $0x74] sm:$0xf]
        %v2324 = vld [vmem:[#allocation9 + $0x78] sm:$0xf]
        %v2325 = vld [vmem:[#allocation9 + $0x7c] sm:$0xf]
        %v2326 = vld [vmem:[%s6] sm:$0x1]
        %v2328 = vlaneseq
        %v2329 = vshrl.u32 %v2328, 7
        %v2330 = vsub.s32 0, %v2329
        %v2331 = vrot.slane %v2326, %v2330
        %v2365 = vunpack.c.l.b16 %v2294
        %v2366 = vunpack.c.l.b16 %v2295
        %v2367 = vunpack.c.l.b16 %v2296
        %v2368 = vunpack.c.l.b16 %v2297
        %v2369 = vunpack.c.l.b16 %v2298
        %v2370 = vunpack.c.l.b16 %v2299
        %v2371 = vunpack.c.l.b16 %v2300
        %v2372 = vunpack.c.l.b16 %v2301
        %v2373 = vunpack.c.l.b16 %v2302
        %v2374 = vunpack.c.l.b16 %v2303
        %v2375 = vunpack.c.l.b16 %v2304
        %v2376 = vunpack.c.l.b16 %v2305
        %v2377 = vunpack.c.l.b16 %v2306
        %v2378 = vunpack.c.l.b16 %v2307
        %v2379 = vunpack.c.l.b16 %v2308
        %v2380 = vunpack.c.l.b16 %v2309
        %v2381 = vunpack.c.l.b16 %v2310
        %v2382 = vunpack.c.l.b16 %v2311
        %v2383 = vunpack.c.l.b16 %v2312
        %v2384 = vunpack.c.l.b16 %v2313
        %v2385 = vunpack.c.l.b16 %v2314
        %v2386 = vunpack.c.l.b16 %v2315
        %v2387 = vunpack.c.l.b16 %v2316
        %v2388 = vunpack.c.l.b16 %v2317
        %v2389 = vunpack.c.l.b16 %v2318
        %v2390 = vunpack.c.l.b16 %v2319
        %v2391 = vunpack.c.l.b16 %v2320
        %v2392 = vunpack.c.l.b16 %v2321
        %v2393 = vunpack.c.l.b16 %v2322
        %v2394 = vunpack.c.l.b16 %v2323
        %v2395 = vunpack.c.l.b16 %v2324
        %v2396 = vunpack.c.l.b16 %v2325
        %v2397 = vpack.c.b16 %v2366, %v2365
        %v2398 = vpack.c.b16 %v2368, %v2367
        %v2399 = vpack.c.b16 %v2370, %v2369
        %v2400 = vpack.c.b16 %v2372, %v2371
        %v2401 = vpack.c.b16 %v2374, %v2373
        %v2402 = vpack.c.b16 %v2376, %v2375
        %v2403 = vpack.c.b16 %v2378, %v2377
        %v2404 = vpack.c.b16 %v2380, %v2379
        %v2405 = vpack.c.b16 %v2382, %v2381
        %v2406 = vpack.c.b16 %v2384, %v2383
        %v2407 = vpack.c.b16 %v2386, %v2385
        %v2408 = vpack.c.b16 %v2388, %v2387
        %v2409 = vpack.c.b16 %v2390, %v2389
        %v2410 = vpack.c.b16 %v2392, %v2391
        %v2411 = vpack.c.b16 %v2394, %v2393
        %v2412 = vpack.c.b16 %v2396, %v2395
        %2429 = vmatprep.subr.bf16.mxu0 0
        %2430 = vmatpush1.bf16.msra.mxu0 %v2404
        %2431 = vmatprep.subr.bf16.mxu0 0
        %2432 = vmatpush1.bf16.msra.mxu0 %v2403
        %2433 = vmatprep.subr.bf16.mxu0 0
        %2434 = vmatpush1.bf16.msra.mxu0 %v2402
        %2435 = vmatprep.subr.bf16.mxu0 0
        %2436 = vmatpush1.bf16.msra.mxu0 %v2401
        %2437 = vmatprep.subr.bf16.mxu0 0
        %2438 = vmatpush1.bf16.msra.mxu0 %v2400
        %2439 = vmatprep.subr.bf16.mxu0 0
        %2440 = vmatpush1.bf16.msra.mxu0 %v2399
        %2441 = vmatprep.subr.bf16.mxu0 0
        %2442 = vmatpush1.bf16.msra.mxu0 %v2398
        %2443 = vmatprep.subr.bf16.mxu0 0
        %2444 = vmatpush1.bf16.msra.mxu0 %v2397
        %2445 = vmatprep.subr.bf16.mxu0 0
        %2446 = vmatpush2.bf16.msra.mxu0 %v2412
        %2447 = vmatprep.subr.bf16.mxu0 0
        %2448 = vmatpush2.bf16.msra.mxu0 %v2411
        %2449 = vmatprep.subr.bf16.mxu0 0
        %2450 = vmatpush2.bf16.msra.mxu0 %v2410
        %2451 = vmatprep.subr.bf16.mxu0 0
        %2452 = vmatpush2.bf16.msra.mxu0 %v2409
        %2453 = vmatprep.subr.bf16.mxu0 0
        %2454 = vmatpush2.bf16.msra.mxu0 %v2408
        %2455 = vmatprep.subr.bf16.mxu0 0
        %2456 = vmatpush2.bf16.msra.mxu0 %v2407
        %2457 = vmatprep.subr.bf16.mxu0 0
        %2458 = vmatpush2.bf16.msra.mxu0 %v2406
        %2459 = vmatprep.subr.bf16.mxu0 0
        %2460 = vmatpush2.bf16.msra.mxu0 %v2405
        %2461 = vmatprep.mubr.bf16.mxu0 %v350
        %2462 = vmatmul.mubr.bf16.gmra.mxu0 %v2290
        %v2463 = vpop.f32.mrf.mxu0
        %v2464 = vadd.f32 %v2331, %v2463
        %v2465 = vpop.f32.mrf.mxu0
        %v2466 = vpop.f32.mrf.mxu0
        %v2467 = vadd.f32 %v2331, %v2466
        %v2468 = vpop.f32.mrf.mxu0
        %2469 = vmatprep.mubr.bf16.mxu0 %v351
        %2470 = vmatmul.mubr.bf16.gmra.mxu0 %v2291
        %v2471 = vpop.f32.mrf.mxu0
        %v2472 = vadd.f32 %v2331, %v2471
        %v2473 = vpop.f32.mrf.mxu0
        %v2474 = vpop.f32.mrf.mxu0
        %v2475 = vadd.f32 %v2331, %v2474
        %v2476 = vpop.f32.mrf.mxu0
        %2477 = vmatprep.mubr.bf16.mxu0 %v352
        %2478 = vmatmul.mubr.bf16.gmra.mxu0 %v2292
        %v2479 = vpop.f32.mrf.mxu0
        %v2480 = vadd.f32 %v2331, %v2479
        %v2481 = vpop.f32.mrf.mxu0
        %v2482 = vpop.f32.mrf.mxu0
        %v2483 = vadd.f32 %v2331, %v2482
        %v2484 = vpop.f32.mrf.mxu0
        %2485 = vmatprep.mubr.bf16.mxu0 %v353
        %2486 = vmatmul.mubr.bf16.gmra.mxu0 %v2293
        %v2487 = vpop.f32.mrf.mxu0
        %v2488 = vadd.f32 %v2331, %v2487
        %v2489 = vpop.f32.mrf.mxu0
        %v2490 = vpop.f32.mrf.mxu0
        %v2491 = vadd.f32 %v2331, %v2490
        %v2492 = vpop.f32.mrf.mxu0
        %2493 = vdwg.mxu0
        %v2494 = vmax.f32 %v2464, 0.0
        %v2495 = vmax.f32 %v2467, 0.0
        %v2496 = vmax.f32 %v2472, 0.0
        %v2497 = vmax.f32 %v2475, 0.0
        %v2498 = vmax.f32 %v2480, 0.0
        %v2499 = vmax.f32 %v2483, 0.0
        %v2500 = vmax.f32 %v2488, 0.0
        %v2501 = vmax.f32 %v2491, 0.0
        %2502 = vst [vmem:[%s340] sm:$0xff] %v2494
        %2503 = vst [vmem:[%s340 + $0x8] sm:$0xff] %v2495
        %2504 = vst [vmem:[%s340 + $0x10] sm:$0xff] %v2496
        %2505 = vst [vmem:[%s340 + $0x18] sm:$0xff] %v2497
        %2506 = vst [vmem:[%s340 + $0x20] sm:$0xff] %v2498
        %2507 = vst [vmem:[%s340 + $0x28] sm:$0xff] %v2499
        %2508 = vst [vmem:[%s340 + $0x30] sm:$0xff] %v2500
        %2509 = vst [vmem:[%s340 + $0x38] sm:$0xff] %v2501
        %s2510 = sand.u32 %s186, 1
        %s2511 = scalar_lea.sflag [#allocation5], %s2510
        %s2512 = sand.u32 %s186, 1
        %s2513 = smul.addr %s2512, 64
        %s2514 = scalar_lea.vmem [#allocation11], %s2513
        // Predicated region
        $region65: #{tpu_custom_call.1} parent=47 // pred_check
          %p2515 = pneg %p196
        $region66: #{tpu_custom_call.1} parent=47 // pred_check_branch
          %2517 = sbr.rel (%p2515) target = $region68
        $region67: #{tpu_custom_call.1} parent=47 // pred_region
          %s2519 = ssub.s32 1024, 1024
          %2520 = vsyncadd %s2511, %s2519
          %s2521 = smul.addr %s26, 8
          %s2522 = smul.addr %s2521, 128
          %s2523 = scalar_lea.hbm %s7, %s2522
          %s2524 = sshll.u32 %s2514, 4
          %s2525 = int_to_ptr.vmem [resolvable:$true] %s2524
          %2530 = dma.vmem_to_hbm [thread:$0]  %s2525, 1024, %s2523, %s2511, 128, 128, 8
        $region68: #{tpu_custom_call.1} parent=47 // pred_fallthru
          _
      $region48: #{tpu_custom_call.1} parent=5 // pred_fallthru
        _
      %p2531 = scmp.le.s32.totalorder 2, %s21
      // Predicated region
      $region69: #{tpu_custom_call.1} parent=5 // pred_check
        %p2532 = pneg %p2531
      $region70: #{tpu_custom_call.1} parent=5 // pred_check_branch
        %2534 = sbr.rel (%p2532) target = $region72
      $region71: #{tpu_custom_call.1} parent=5 // pred_region
        %s2535 = ssub.s32 %s21, 2
        // Predicated region
        $region73: #{tpu_custom_call.1} parent=71 // pred_check
          %p2536 = pneg %p202
        $region74: #{tpu_custom_call.1} parent=71 // pred_check_branch
          %2538 = sbr.rel (%p2536) target = $region76
        $region75: #{tpu_custom_call.1} parent=71 // pred_region
          %s2539 = sand.u32 %s187, 1
          %s2540 = scalar_lea.sflag [#allocation5], %s2539
          %s2541 = sand.u32 %s187, 1
          %s2542 = smul.addr %s2541, 64
          %s2543 = scalar_lea.vmem [#allocation11], %s2542
          %2544 = dma.done %s2540, 1024
        $region76: #{tpu_custom_call.1} parent=71 // pred_fallthru
          _
      $region72: #{tpu_custom_call.1} parent=5 // pred_fallthru
        _
    $region6: #{tpu_custom_call.1} parent=1 // loop_footer
      %s25 = sadd.s32 1, %s21
    $region7: #{tpu_custom_call.1} parent=1 // loop_footer_branch
      %20 = sbr.rel target = $region3
    $region8: #{tpu_custom_call.1} parent=1 // loop_exit
      _
    %2545 = vsyncpa [#allocation4], 1
    %s2546 = scalar_lea.sflag [#allocation4], 1
    %2547 = vsyncpa %s2546, 1
    %2548 = vsyncpa [#allocation7], 1
    %2549 = vsyncpa [#allocation10], 1
    %2550 = vsyncpa [#allocation5], 1
    %s2551 = scalar_lea.sflag [#allocation5], 1
    %2552 = vsyncpa %s2551, 1

// kernel: tpu_custom_call.1
$region0: #{tpu_custom_call.1}
  #allocation0 [shape = 'u32[]', space=smem, size = 0x4, offset = 0x4, fixed_abs, tag = 'smem constant byte address 0x4 - core index']
  #allocation1 [shape = 'u32[144,128]{1,0:T(1,128)}', space=vmem, size = 0x12000, scoped, tag = 'internal scratch']
  #allocation2 [shape = 'f32[12,12,128]{2,1,0:T(8,128)}', space=vmem, size = 0x18000, scoped, tag = 'scratch operand']
  %s0 = inlined_call_operand.hbm [shape: f32[2,8,8,128], index: 0, kind: input, shape index: {}]
  %s1 = inlined_call_operand.hbm [shape: bf16[128,128], index: 1, kind: input, shape index: {}]
  %s2 = inlined_call_operand.vmem [shape: f32[1,128], index: 2, kind: input, shape index: {}]
  %s3 = inlined_call_operand.hbm [shape: bf16[9,128,128], index: 3, kind: input, shape index: {}]
  %s4 = inlined_call_operand.vmem [shape: f32[1,128], index: 4, kind: input, shape index: {}]
  %s5 = inlined_call_operand.hbm [shape: bf16[256,128], index: 5, kind: input, shape index: {}]
  %s6 = inlined_call_operand.vmem [shape: f32[1,128], index: 6, kind: input, shape index: {}]
  %s7 = inlined_call_operand.hbm [shape: f32[2,8,8,128], index: 7, kind: output, shape index: {}]
  %s8 = sld [smem:[#allocation0]]
  $region77: #{tpu_custom_call.1} parent=0
    _
  %s10 = ssub.s32 1, %s8
  %s11 = scalar_select 0, %s10, %s8
  $region1: #{tpu_custom_call.1} parent=0
    #allocation3 [shape = 'u8[65536]{0}', space=vmem, size = 0x10000, scoped, tag = 'input window, operand 0']
    #allocation4 [shape = 's32[2]{0}', space=sflag, size = 0x8, scoped, tag = 'scoped memory for tpu_custom_call.1']
    #allocation5 [shape = 's32[2]{0}', space=sflag, size = 0x8, scoped, tag = 'scoped memory for tpu_custom_call.1']
    #allocation6 [shape = 'u8[32768]{0}', space=vmem, size = 0x8000, scoped, tag = 'input window, operand 1, single buffered']
    #allocation7 [shape = 's32[1]{0}', space=sflag, size = 0x4, scoped, tag = 'scoped memory for tpu_custom_call.1']
    #allocation8 [shape = 'u8[294912]{0}', space=vmem, size = 0x48000, scoped, tag = 'input window, operand 3, single buffered']
    #allocation9 [shape = 'u8[65536]{0}', space=vmem, size = 0x10000, scoped, tag = 'input window, operand 5, single buffered']
    #allocation10 [shape = 's32[1]{0}', space=sflag, size = 0x4, scoped, tag = 'scoped memory for tpu_custom_call.1']
    #allocation11 [shape = 'u8[65536]{0}', space=vmem, size = 0x10000, scoped, tag = 'output window, operand 0']
    %12 = vsyncpa [#allocation4], 0
    %s13 = scalar_lea.sflag [#allocation4], 1
    %14 = vsyncpa %s13, 0
    %15 = vsyncpa [#allocation7], 0
    %16 = vsyncpa [#allocation10], 0
    %17 = vsyncpa [#allocation5], 0
    %s18 = scalar_lea.sflag [#allocation5], 1
    %19 = vsyncpa %s18, 0
    loop: start=0, step=1, limit=4
    $region2: #{tpu_custom_call.1} parent=1 // loop_pre_header
      _
    $region3: #{tpu_custom_call.1} parent=1 // loop_header
      %s21 = sphi 0, %s25
      %p22 = scmp.ge.s32.totalorder %s21, 4
      %s31 = sphi 0, %s33
      %s34 = sphi 0, %s31
      %s35 = sphi 0, %s34
      %s51 = sphi 0, %s35
      %s55 = sphi 0, %s55
      %s57 = sphi 0, %s55
      %s58 = sphi 0, %s57
      %s72 = sphi 0, %s58
      %s76 = sphi 0, %s76
      %s78 = sphi 0, %s76
      %s79 = sphi 0, %s78
      %s93 = sphi 0, %s79
      %s97 = sphi 0, %s97
      %s99 = sphi 0, %s97
      %s100 = sphi 0, %s99
      %s114 = sphi 0, %s100
      %s118 = sphi 0, %s118
      %s120 = sphi 0, %s118
      %s121 = sphi 0, %s120
      %s135 = sphi 0, %s121
      %s139 = sphi 0, %s139
      %s141 = sphi 0, %s139
      %s142 = sphi 0, %s141
      %s156 = sphi 0, %s142
      %s160 = sphi 0, %s160
      %s162 = sphi 0, %s160
      %s163 = sphi 0, %s162
      %s177 = sphi 0, %s163
      %s183 = sphi 0, %s185
      %s186 = sphi 0, %s183
      %s187 = sphi 0, %s186
      %s203 = sphi 0, %s187
    $region4: #{tpu_custom_call.1} parent=1 // loop_header_branch
      %24 = sbr.rel (%p22) target = $region8
    $region5: #{tpu_custom_call.1} parent=1 // loop_body
      %s26 = ssub.s32 %s21, 1
      %s27 = ssub.s32 %s21, 2
      %s28 = sadd.s32 %s21, 1
      %s29 = ssub.s32 %s21, %s28
      %p30 = scmp.eq.s32.totalorder %s29, 0
      %s32 = sadd.s32 %s31, 1
      %s33 = scalar_select %p30, %s31, %s32
      %p36 = pneg %p30
      %p37 = scmp.eq.s32.totalorder %s21, 1
      %p38 = por %p36, %p37
      %p39 = scmp.ne.s32.totalorder %s31, %s34
      %p40 = scmp.eq.s32.totalorder %s21, 0
      %p41 = por %p39, %p40
      %p42 = scmp.ne.s32.totalorder %s31, %s34
      %p43 = scmp.eq.s32.totalorder %s26, 1
      %p44 = por %p42, %p43
      %p45 = scmp.ne.s32.totalorder %s34, %s35
      %p46 = scmp.eq.s32.totalorder %s26, 0
      %p47 = por %p45, %p46
      %p48 = scmp.ne.s32.totalorder %s34, %s35
      %p49 = scmp.eq.s32.totalorder %s27, 1
      %p50 = por %p48, %p49
      %p52 = scmp.ne.s32.totalorder %s35, %s51
      %p53 = scmp.eq.s32.totalorder %s27, 0
      %p54 = por %p52, %p53
      %s56 = sadd.s32 %s55, 1
      %p59 = scmp.eq.s32.totalorder %s21, 1
      %p60 = scmp.ne.s32.totalorder %s55, %s57
      %p61 = scmp.eq.s32.totalorder %s21, 0
      %p62 = por %p60, %p61
      %p63 = scmp.ne.s32.totalorder %s55, %s57
      %p64 = scmp.eq.s32.totalorder %s26, 1
      %p65 = por %p63, %p64
      %p66 = scmp.ne.s32.totalorder %s57, %s58
      %p67 = scmp.eq.s32.totalorder %s26, 0
      %p68 = por %p66, %p67
      %p69 = scmp.ne.s32.totalorder %s57, %s58
      %p70 = scmp.eq.s32.totalorder %s27, 1
      %p71 = por %p69, %p70
      %p73 = scmp.ne.s32.totalorder %s58, %s72
      %p74 = scmp.eq.s32.totalorder %s27, 0
      %p75 = por %p73, %p74
      %s77 = sadd.s32 %s76, 1
      %p80 = scmp.eq.s32.totalorder %s21, 1
      %p81 = scmp.ne.s32.totalorder %s76, %s78
      %p82 = scmp.eq.s32.totalorder %s21, 0
      %p83 = por %p81, %p82
      %p84 = scmp.ne.s32.totalorder %s76, %s78
      %p85 = scmp.eq.s32.totalorder %s26, 1
      %p86 = por %p84, %p85
      %p87 = scmp.ne.s32.totalorder %s78, %s79
      %p88 = scmp.eq.s32.totalorder %s26, 0
      %p89 = por %p87, %p88
      %p90 = scmp.ne.s32.totalorder %s78, %s79
      %p91 = scmp.eq.s32.totalorder %s27, 1
      %p92 = por %p90, %p91
      %p94 = scmp.ne.s32.totalorder %s79, %s93
      %p95 = scmp.eq.s32.totalorder %s27, 0
      %p96 = por %p94, %p95
      %s98 = sadd.s32 %s97, 1
      %p101 = scmp.eq.s32.totalorder %s21, 1
      %p102 = scmp.ne.s32.totalorder %s97, %s99
      %p103 = scmp.eq.s32.totalorder %s21, 0
      %p104 = por %p102, %p103
      %p105 = scmp.ne.s32.totalorder %s97, %s99
      %p106 = scmp.eq.s32.totalorder %s26, 1
      %p107 = por %p105, %p106
      %p108 = scmp.ne.s32.totalorder %s99, %s100
      %p109 = scmp.eq.s32.totalorder %s26, 0
      %p110 = por %p108, %p109
      %p111 = scmp.ne.s32.totalorder %s99, %s100
      %p112 = scmp.eq.s32.totalorder %s27, 1
      %p113 = por %p111, %p112
      %p115 = scmp.ne.s32.totalorder %s100, %s114
      %p116 = scmp.eq.s32.totalorder %s27, 0
      %p117 = por %p115, %p116
      %s119 = sadd.s32 %s118, 1
      %p122 = scmp.eq.s32.totalorder %s21, 1
      %p123 = scmp.ne.s32.totalorder %s118, %s120
      %p124 = scmp.eq.s32.totalorder %s21, 0
      %p125 = por %p123, %p124
      %p126 = scmp.ne.s32.totalorder %s118, %s120
      %p127 = scmp.eq.s32.totalorder %s26, 1
      %p128 = por %p126, %p127
      %p129 = scmp.ne.s32.totalorder %s120, %s121
      %p130 = scmp.eq.s32.totalorder %s26, 0
      %p131 = por %p129, %p130
      %p132 = scmp.ne.s32.totalorder %s120, %s121
      %p133 = scmp.eq.s32.totalorder %s27, 1
      %p134 = por %p132, %p133
      %p136 = scmp.ne.s32.totalorder %s121, %s135
      %p137 = scmp.eq.s32.totalorder %s27, 0
      %p138 = por %p136, %p137
      %s140 = sadd.s32 %s139, 1
      %p143 = scmp.eq.s32.totalorder %s21, 1
      %p144 = scmp.ne.s32.totalorder %s139, %s141
      %p145 = scmp.eq.s32.totalorder %s21, 0
      %p146 = por %p144, %p145
      %p147 = scmp.ne.s32.totalorder %s139, %s141
      %p148 = scmp.eq.s32.totalorder %s26, 1
      %p149 = por %p147, %p148
      %p150 = scmp.ne.s32.totalorder %s141, %s142
      %p151 = scmp.eq.s32.totalorder %s26, 0
      %p152 = por %p150, %p151
      %p153 = scmp.ne.s32.totalorder %s141, %s142
      %p154 = scmp.eq.s32.totalorder %s27, 1
      %p155 = por %p153, %p154
      %p157 = scmp.ne.s32.totalorder %s142, %s156
      %p158 = scmp.eq.s32.totalorder %s27, 0
      %p159 = por %p157, %p158
      %s161 = sadd.s32 %s160, 1
      %p164 = scmp.eq.s32.totalorder %s21, 1
      %p165 = scmp.ne.s32.totalorder %s160, %s162
      %p166 = scmp.eq.s32.totalorder %s21, 0
      %p167 = por %p165, %p166
      %p168 = scmp.ne.s32.totalorder %s160, %s162
      %p169 = scmp.eq.s32.totalorder %s26, 1
      %p170 = por %p168, %p169
      %p171 = scmp.ne.s32.totalorder %s162, %s163
      %p172 = scmp.eq.s32.totalorder %s26, 0
      %p173 = por %p171, %p172
      %p174 = scmp.ne.s32.totalorder %s162, %s163
      %p175 = scmp.eq.s32.totalorder %s27, 1
      %p176 = por %p174, %p175
      %p178 = scmp.ne.s32.totalorder %s163, %s177
      %p179 = scmp.eq.s32.totalorder %s27, 0
      %p180 = por %p178, %p179
      %s181 = ssub.s32 %s21, %s28
      %p182 = scmp.eq.s32.totalorder %s181, 0
      %s184 = sadd.s32 %s183, 1
      %s185 = scalar_select %p182, %s183, %s184
      %p188 = pneg %p182
      %p189 = scmp.eq.s32.totalorder %s21, 1
      %p190 = por %p188, %p189
      %p191 = scmp.ne.s32.totalorder %s183, %s186
      %p192 = scmp.eq.s32.totalorder %s21, 0
      %p193 = por %p191, %p192
      %p194 = scmp.ne.s32.totalorder %s183, %s186
      %p195 = scmp.eq.s32.totalorder %s26, 1
      %p196 = por %p194, %p195
      %p197 = scmp.ne.s32.totalorder %s186, %s187
      %p198 = scmp.eq.s32.totalorder %s26, 0
      %p199 = por %p197, %p198
      %p200 = scmp.ne.s32.totalorder %s186, %s187
      %p201 = scmp.eq.s32.totalorder %s27, 1
      %p202 = por %p200, %p201
      %p204 = scmp.ne.s32.totalorder %s187, %s203
      %p205 = scmp.eq.s32.totalorder %s27, 0
      %p206 = por %p204, %p205
      %p207 = scmp.le.s32.totalorder 1, %s21
      %p208 = scmp.lt.s32.totalorder %s21, 3
      %p209 = pnand %p207, %p208
      %p210 = pneg %p209
      // Predicated region
      $region9: #{tpu_custom_call.1} parent=5 // pred_check
        _
      $region10: #{tpu_custom_call.1} parent=5 // pred_check_branch
        %212 = sbr.rel (%p209) target = $region12
      $region11: #{tpu_custom_call.1} parent=5 // pred_region
        %s213 = ssub.s32 %s21, 1
        // Predicated region
        $region13: #{tpu_custom_call.1} parent=11 // pred_check
          %p214 = pneg %p68
        $region14: #{tpu_custom_call.1} parent=11 // pred_check_branch
          %216 = sbr.rel (%p214) target = $region16
        $region15: #{tpu_custom_call.1} parent=11 // pred_region
          %s218 = ssub.s32 1024, 1024
          %219 = vsyncadd [#allocation7], %s218
          %s220 = sshll.u32 [#allocation6], 4
          %s221 = int_to_ptr.vmem [resolvable:$true] %s220
          %226 = dma.hbm_to_vmem [thread:$0]  %s1, 1024, %s221, [#allocation7], 64, 64, 4
        $region16: #{tpu_custom_call.1} parent=11 // pred_fallthru
          _
        // Predicated region
        $region17: #{tpu_custom_call.1} parent=11 // pred_check
          %p227 = pneg %p89
        $region18: #{tpu_custom_call.1} parent=11 // pred_check_branch
          %229 = sbr.rel (%p227) target = $region20
        $region19: #{tpu_custom_call.1} parent=11 // pred_region
          _
        $region20: #{tpu_custom_call.1} parent=11 // pred_fallthru
          _
        // Predicated region
        $region21: #{tpu_custom_call.1} parent=11 // pred_check
          %p230 = pneg %p110
        $region22: #{tpu_custom_call.1} parent=11 // pred_check_branch
          %232 = sbr.rel (%p230) target = $region24
        $region23: #{tpu_custom_call.1} parent=11 // pred_region
          %s234 = ssub.s32 9216, 9216
          %235 = vsyncadd [#allocation7], %s234
          %s236 = sshll.u32 [#allocation8], 4
          %s237 = int_to_ptr.vmem [resolvable:$true] %s236
          %242 = dma.hbm_to_vmem [thread:$0]  %s3, 9216, %s237, [#allocation7], 64, 64, 4
        $region24: #{tpu_custom_call.1} parent=11 // pred_fallthru
          _
        // Predicated region
        $region25: #{tpu_custom_call.1} parent=11 // pred_check
          %p243 = pneg %p131
        $region26: #{tpu_custom_call.1} parent=11 // pred_check_branch
          %245 = sbr.rel (%p243) target = $region28
        $region27: #{tpu_custom_call.1} parent=11 // pred_region
          _
        $region28: #{tpu_custom_call.1} parent=11 // pred_fallthru
          _
        // Predicated region
        $region29: #{tpu_custom_call.1} parent=11 // pred_check
          %p246 = pneg %p152
        $region30: #{tpu_custom_call.1} parent=11 // pred_check_branch
          %248 = sbr.rel (%p246) target = $region32
        $region31: #{tpu_custom_call.1} parent=11 // pred_region
          %s250 = ssub.s32 2048, 2048
          %251 = vsyncadd [#allocation10], %s250
          %s252 = sshll.u32 [#allocation9], 4
          %s253 = int_to_ptr.vmem [resolvable:$true] %s252
          %258 = dma.hbm_to_vmem [thread:$0]  %s5, 2048, %s253, [#allocation10], 64, 64, 4
        $region32: #{tpu_custom_call.1} parent=11 // pred_fallthru
          _
        // Predicated region
        $region33: #{tpu_custom_call.1} parent=11 // pred_check
          %p259 = pneg %p173
        $region34: #{tpu_custom_call.1} parent=11 // pred_check_branch
          %261 = sbr.rel (%p259) target = $region36
        $region35: #{tpu_custom_call.1} parent=11 // pred_region
          _
        $region36: #{tpu_custom_call.1} parent=11 // pred_fallthru
          _
      $region12: #{tpu_custom_call.1} parent=5 // pred_fallthru
        _
      %p262 = scmp.lt.s32.totalorder %s21, 2
      // Predicated region
      $region37: #{tpu_custom_call.1} parent=5 // pred_check
        %p263 = pneg %p262
      $region38: #{tpu_custom_call.1} parent=5 // pred_check_branch
        %265 = sbr.rel (%p263) target = $region40
      $region39: #{tpu_custom_call.1} parent=5 // pred_region
        // Predicated region
        $region41: #{tpu_custom_call.1} parent=39 // pred_check
          %p266 = pneg %p41
        $region42: #{tpu_custom_call.1} parent=39 // pred_check_branch
          %268 = sbr.rel (%p266) target = $region44
        $region43: #{tpu_custom_call.1} parent=39 // pred_region
          %s269 = sand.u32 %s31, 1
          %s270 = scalar_lea.sflag [#allocation4], %s269
          %s271 = sand.u32 %s31, 1
          %s272 = smul.addr %s271, 64
          %s273 = scalar_lea.vmem [#allocation3], %s272
          %s275 = ssub.s32 1024, 1024
          %276 = vsyncadd %s270, %s275
          %s277 = smul.addr %s21, 8
          %s278 = smul.addr %s277, 128
          %s279 = scalar_lea.hbm %s0, %s278
          %s280 = sshll.u32 %s273, 4
          %s281 = int_to_ptr.vmem [resolvable:$true] %s280
          %286 = dma.hbm_to_vmem [thread:$0]  %s279, 1024, %s281, %s270, 128, 128, 8
        $region44: #{tpu_custom_call.1} parent=39 // pred_fallthru
          _
      $region40: #{tpu_custom_call.1} parent=5 // pred_fallthru
        _
      %p287 = scmp.le.s32.totalorder 1, %s21
      %p288 = scmp.lt.s32.totalorder %s21, 3
      %p289 = pnand %p287, %p288
      %p290 = pneg %p289
      // Predicated region
      $region45: #{tpu_custom_call.1} parent=5 // pred_check
        _
      $region46: #{tpu_custom_call.1} parent=5 // pred_check_branch
        %292 = sbr.rel (%p289) target = $region48
      $region47: #{tpu_custom_call.1} parent=5 // pred_region
        %s293 = ssub.s32 %s21, 1
        %s294 = sand.u32 %s34, 1
        %s295 = scalar_lea.sflag [#allocation4], %s294
        %s296 = sand.u32 %s34, 1
        %s297 = smul.addr %s296, 64
        %s298 = scalar_lea.vmem [#allocation3], %s297
        // Predicated region
        $region49: #{tpu_custom_call.1} parent=47 // pred_check
          %p299 = pneg %p47
        $region50: #{tpu_custom_call.1} parent=47 // pred_check_branch
          %301 = sbr.rel (%p299) target = $region52
        $region51: #{tpu_custom_call.1} parent=47 // pred_region
          %302 = dma.done %s295, 1024
        $region52: #{tpu_custom_call.1} parent=47 // pred_fallthru
          _
        // Predicated region
        $region53: #{tpu_custom_call.1} parent=47 // pred_check
          %p303 = pneg %p68
        $region54: #{tpu_custom_call.1} parent=47 // pred_check_branch
          %305 = sbr.rel (%p303) target = $region56
        $region55: #{tpu_custom_call.1} parent=47 // pred_region
          %306 = dma.done [#allocation7], 1024
        $region56: #{tpu_custom_call.1} parent=47 // pred_fallthru
          _
        // Predicated region
        $region57: #{tpu_custom_call.1} parent=47 // pred_check
          %p307 = pneg %p110
        $region58: #{tpu_custom_call.1} parent=47 // pred_check_branch
          %309 = sbr.rel (%p307) target = $region60
        $region59: #{tpu_custom_call.1} parent=47 // pred_region
          %310 = dma.done [#allocation7], 9216
        $region60: #{tpu_custom_call.1} parent=47 // pred_fallthru
          _
        // Predicated region
        $region61: #{tpu_custom_call.1} parent=47 // pred_check
          %p311 = pneg %p152
        $region62: #{tpu_custom_call.1} parent=47 // pred_check_branch
          %313 = sbr.rel (%p311) target = $region64
        $region63: #{tpu_custom_call.1} parent=47 // pred_region
          %314 = dma.done [#allocation10], 2048
        $region64: #{tpu_custom_call.1} parent=47 // pred_fallthru
          _
        %s315 = sand.u32 %s34, 1
        %s316 = scalar_lea.sflag [#allocation4], %s315
        %s317 = sand.u32 %s34, 1
        %s318 = smul.addr %s317, 64
        %s319 = scalar_lea.vmem [#allocation3], %s318
        %p320 = pneg %p47
        %p321 = pneg %p44
        %p322 = pneg %p68
        %p323 = pneg %p65
        %p324 = pneg %p89
        %p325 = pneg %p86
        %p326 = pneg %p110
        %p327 = pneg %p107
        %p328 = pneg %p131
        %p329 = pneg %p128
        %p330 = pneg %p152
        %p331 = pneg %p149
        %p332 = pneg %p173
        %p333 = pneg %p170
        %p334 = pneg %p199
        %p335 = pneg %p196
        %s336 = sand.u32 %s186, 1
        %s337 = scalar_lea.sflag [#allocation5], %s336
        %s338 = sand.u32 %s186, 1
        %s339 = smul.addr %s338, 64
        %s340 = scalar_lea.vmem [#allocation11], %s339
        %v342 = vld [vmem:[%s298] sm:$0xff]
        %v343 = vld [vmem:[%s298 + $0x8] sm:$0xff]
        %v344 = vld [vmem:[%s298 + $0x10] sm:$0xff]
        %v345 = vld [vmem:[%s298 + $0x18] sm:$0xff]
        %v346 = vld [vmem:[%s298 + $0x20] sm:$0xff]
        %v347 = vld [vmem:[%s298 + $0x28] sm:$0xff]
        %v348 = vld [vmem:[%s298 + $0x30] sm:$0xff]
        %v349 = vld [vmem:[%s298 + $0x38] sm:$0xff]
        %v350 = vpack.c.bf16 %v343, %v342
        %v351 = vpack.c.bf16 %v345, %v344
        %v352 = vpack.c.bf16 %v347, %v346
        %v353 = vpack.c.bf16 %v349, %v348
        %v354 = vld [vmem:[#allocation6] sm:$0xf]
        %v355 = vld [vmem:[#allocation6 + $0x4] sm:$0xf]
        %v356 = vld [vmem:[#allocation6 + $0x8] sm:$0xf]
        %v357 = vld [vmem:[#allocation6 + $0xc] sm:$0xf]
        %v358 = vld [vmem:[#allocation6 + $0x10] sm:$0xf]
        %v359 = vld [vmem:[#allocation6 + $0x14] sm:$0xf]
        %v360 = vld [vmem:[#allocation6 + $0x18] sm:$0xf]
        %v361 = vld [vmem:[#allocation6 + $0x1c] sm:$0xf]
        %v362 = vld [vmem:[#allocation6 + $0x20] sm:$0xf]
        %v363 = vld [vmem:[#allocation6 + $0x24] sm:$0xf]
        %v364 = vld [vmem:[#allocation6 + $0x28] sm:$0xf]
        %v365 = vld [vmem:[#allocation6 + $0x2c] sm:$0xf]
        %v366 = vld [vmem:[#allocation6 + $0x30] sm:$0xf]
        %v367 = vld [vmem:[#allocation6 + $0x34] sm:$0xf]
        %v368 = vld [vmem:[#allocation6 + $0x38] sm:$0xf]
        %v369 = vld [vmem:[#allocation6 + $0x3c] sm:$0xf]
        %v370 = vld [vmem:[%s2] sm:$0x1]
        %v372 = vlaneseq
        %v373 = vshrl.u32 %v372, 7
        %v374 = vsub.s32 0, %v373
        %v375 = vrot.slane %v370, %v374
        %v393 = vunpack.c.l.b16 %v354
        %v394 = vunpack.c.l.b16 %v355
        %v395 = vunpack.c.l.b16 %v356
        %v396 = vunpack.c.l.b16 %v357
        %v397 = vunpack.c.l.b16 %v358
        %v398 = vunpack.c.l.b16 %v359
        %v399 = vunpack.c.l.b16 %v360
        %v400 = vunpack.c.l.b16 %v361
        %v401 = vunpack.c.l.b16 %v362
        %v402 = vunpack.c.l.b16 %v363
        %v403 = vunpack.c.l.b16 %v364
        %v404 = vunpack.c.l.b16 %v365
        %v405 = vunpack.c.l.b16 %v366
        %v406 = vunpack.c.l.b16 %v367
        %v407 = vunpack.c.l.b16 %v368
        %v408 = vunpack.c.l.b16 %v369
        %v409 = vpack.c.b16 %v394, %v393
        %v410 = vpack.c.b16 %v396, %v395
        %v411 = vpack.c.b16 %v398, %v397
        %v412 = vpack.c.b16 %v400, %v399
        %v413 = vpack.c.b16 %v402, %v401
        %v414 = vpack.c.b16 %v404, %v403
        %v415 = vpack.c.b16 %v406, %v405
        %v416 = vpack.c.b16 %v408, %v407
        %425 = vmatprep.subr.bf16.mxu0 0
        %426 = vmatpush1.bf16.msra.mxu0 %v416
        %427 = vmatprep.subr.bf16.mxu0 0
        %428 = vmatpush1.bf16.msra.mxu0 %v415
        %429 = vmatprep.subr.bf16.mxu0 0
        %430 = vmatpush1.bf16.msra.mxu0 %v414
        %431 = vmatprep.subr.bf16.mxu0 0
        %432 = vmatpush1.bf16.msra.mxu0 %v413
        %433 = vmatprep.subr.bf16.mxu0 0
        %434 = vmatpush1.bf16.msra.mxu0 %v412
        %435 = vmatprep.subr.bf16.mxu0 0
        %436 = vmatpush1.bf16.msra.mxu0 %v411
        %437 = vmatprep.subr.bf16.mxu0 0
        %438 = vmatpush1.bf16.msra.mxu0 %v410
        %439 = vmatprep.subr.bf16.mxu0 0
        %440 = vmatpush1.bf16.msra.mxu0 %v409
        %441 = vmatprep.subr.bf16.mxu0 0
        %442 = vmatpush2.bf16.msra.mxu0 0
        %443 = vmatprep.subr.bf16.mxu0 0
        %444 = vmatpush2.bf16.msra.mxu0 0
        %445 = vmatprep.subr.bf16.mxu0 0
        %446 = vmatpush2.bf16.msra.mxu0 0
        %447 = vmatprep.subr.bf16.mxu0 0
        %448 = vmatpush2.bf16.msra.mxu0 0
        %449 = vmatprep.subr.bf16.mxu0 0
        %450 = vmatpush2.bf16.msra.mxu0 0
        %451 = vmatprep.subr.bf16.mxu0 0
        %452 = vmatpush2.bf16.msra.mxu0 0
        %453 = vmatprep.subr.bf16.mxu0 0
        %454 = vmatpush2.bf16.msra.mxu0 0
        %455 = vmatprep.subr.bf16.mxu0 0
        %456 = vmatpush2.bf16.msra.mxu0 0
        %457 = vmatprep.mubr.bf16.mxu0 0
        %458 = vmatmul.mubr.bf16.gmra.mxu0 %v350
        %v459 = vpop.f32.mrf.mxu0
        %v460 = vadd.f32 %v375, %v459
        %v461 = vpop.f32.mrf.mxu0
        %v462 = vpop.f32.mrf.mxu0
        %v463 = vadd.f32 %v375, %v462
        %v464 = vpop.f32.mrf.mxu0
        %465 = vmatprep.mubr.bf16.mxu0 0
        %466 = vmatmul.mubr.bf16.gmra.mxu0 %v351
        %v467 = vpop.f32.mrf.mxu0
        %v468 = vadd.f32 %v375, %v467
        %v469 = vpop.f32.mrf.mxu0
        %v470 = vpop.f32.mrf.mxu0
        %v471 = vadd.f32 %v375, %v470
        %v472 = vpop.f32.mrf.mxu0
        %473 = vmatprep.mubr.bf16.mxu0 0
        %474 = vmatmul.mubr.bf16.gmra.mxu0 %v352
        %v475 = vpop.f32.mrf.mxu0
        %v476 = vadd.f32 %v375, %v475
        %v477 = vpop.f32.mrf.mxu0
        %v478 = vpop.f32.mrf.mxu0
        %v479 = vadd.f32 %v375, %v478
        %v480 = vpop.f32.mrf.mxu0
        %481 = vmatprep.mubr.bf16.mxu0 0
        %482 = vmatmul.mubr.bf16.gmra.mxu0 %v353
        %v483 = vpop.f32.mrf.mxu0
        %v484 = vadd.f32 %v375, %v483
        %v485 = vpop.f32.mrf.mxu0
        %v486 = vpop.f32.mrf.mxu0
        %v487 = vadd.f32 %v375, %v486
        %v488 = vpop.f32.mrf.mxu0
        %489 = vdwg.mxu0
        %v490 = vmax.f32 %v460, 0.0
        %v491 = vmax.f32 %v463, 0.0
        %v492 = vmax.f32 %v468, 0.0
        %v493 = vmax.f32 %v471, 0.0
        %v494 = vmax.f32 %v476, 0.0
        %v495 = vmax.f32 %v479, 0.0
        %v496 = vmax.f32 %v484, 0.0
        %v497 = vmax.f32 %v487, 0.0
        %498 = vst [vmem:[#allocation2] sm:$0xff] 0.0
        %499 = vst [vmem:[#allocation2 + $0x8] sm:$0xf] 0.0
        %500 = vst [vmem:[#allocation2 + $0x10] sm:$0xff] 0.0
        %501 = vst [vmem:[#allocation2 + $0x18] sm:$0xf] 0.0
        %502 = vst [vmem:[#allocation2 + $0x20] sm:$0xff] 0.0
        %503 = vst [vmem:[#allocation2 + $0x28] sm:$0xf] 0.0
        %504 = vst [vmem:[#allocation2 + $0x30] sm:$0xff] 0.0
        %505 = vst [vmem:[#allocation2 + $0x38] sm:$0xf] 0.0
        %506 = vst [vmem:[#allocation2 + $0x40] sm:$0xff] 0.0
        %507 = vst [vmem:[#allocation2 + $0x48] sm:$0xf] 0.0
        %508 = vst [vmem:[#allocation2 + $0x50] sm:$0xff] 0.0
        %509 = vst [vmem:[#allocation2 + $0x58] sm:$0xf] 0.0
        %510 = vst [vmem:[#allocation2 + $0x60] sm:$0xff] 0.0
        %511 = vst [vmem:[#allocation2 + $0x68] sm:$0xf] 0.0
        %512 = vst [vmem:[#allocation2 + $0x70] sm:$0xff] 0.0
        %513 = vst [vmem:[#allocation2 + $0x78] sm:$0xf] 0.0
        %514 = vst [vmem:[#allocation2 + $0x80] sm:$0xff] 0.0
        %515 = vst [vmem:[#allocation2 + $0x88] sm:$0xf] 0.0
        %516 = vst [vmem:[#allocation2 + $0x90] sm:$0xff] 0.0
        %517 = vst [vmem:[#allocation2 + $0x98] sm:$0xf] 0.0
        %518 = vst [vmem:[#allocation2 + $0xa0] sm:$0xff] 0.0
        %519 = vst [vmem:[#allocation2 + $0xa8] sm:$0xf] 0.0
        %520 = vst [vmem:[#allocation2 + $0xb0] sm:$0xff] 0.0
        %521 = vst [vmem:[#allocation2 + $0xb8] sm:$0xf] 0.0
        %s522 = scalar_lea.vmem [#allocation2], 32
        %523 = vst [vmem:[%s522 + $0x2] sm:$0xff] %v490
        %524 = vst [vmem:[%s522 + $0x12] sm:$0xff] %v491
        %525 = vst [vmem:[%s522 + $0x22] sm:$0xff] %v492
        %526 = vst [vmem:[%s522 + $0x32] sm:$0xff] %v493
        %527 = vst [vmem:[%s522 + $0x42] sm:$0xff] %v494
        %528 = vst [vmem:[%s522 + $0x52] sm:$0xff] %v495
        %529 = vst [vmem:[%s522 + $0x62] sm:$0xff] %v496
        %530 = vst [vmem:[%s522 + $0x72] sm:$0xff] %v497
        %v531 = vld [vmem:[#allocation2] sm:$0xff]
        %v532 = vld [vmem:[#allocation2 + $0x8] sm:$0xf]
        %v533 = vld [vmem:[#allocation2 + $0x10] sm:$0xff]
        %v534 = vld [vmem:[#allocation2 + $0x18] sm:$0xf]
        %v535 = vld [vmem:[#allocation2 + $0x20] sm:$0xff]
        %v536 = vld [vmem:[#allocation2 + $0x28] sm:$0xf]
        %v537 = vld [vmem:[#allocation2 + $0x30] sm:$0xff]
        %v538 = vld [vmem:[#allocation2 + $0x38] sm:$0xf]
        %v539 = vld [vmem:[#allocation2 + $0x40] sm:$0xff]
        %v540 = vld [vmem:[#allocation2 + $0x48] sm:$0xf]
        %v541 = vld [vmem:[#allocation2 + $0x50] sm:$0xff]
        %v542 = vld [vmem:[#allocation2 + $0x58] sm:$0xf]
        %v543 = vld [vmem:[#allocation2 + $0x60] sm:$0xff]
        %v544 = vld [vmem:[#allocation2 + $0x68] sm:$0xf]
        %v545 = vld [vmem:[#allocation2 + $0x70] sm:$0xff]
        %v546 = vld [vmem:[#allocation2 + $0x78] sm:$0xf]
        %v547 = vpack.c.bf16 %v532, %v531
        %v548 = vpack.c.bf16 %v534, %v533
        %v549 = vpack.c.bf16 %v536, %v535
        %v550 = vpack.c.bf16 %v538, %v537
        %v551 = vpack.c.bf16 %v540, %v539
        %v552 = vpack.c.bf16 %v542, %v541
        %v553 = vpack.c.bf16 %v544, %v543
        %v554 = vpack.c.bf16 %v546, %v545
        %v555 = vld [vmem:[#allocation8] sm:$0xf]
        %v556 = vld [vmem:[#allocation8 + $0x4] sm:$0xf]
        %v557 = vld [vmem:[#allocation8 + $0x8] sm:$0xf]
        %v558 = vld [vmem:[#allocation8 + $0xc] sm:$0xf]
        %v559 = vld [vmem:[#allocation8 + $0x10] sm:$0xf]
        %v560 = vld [vmem:[#allocation8 + $0x14] sm:$0xf]
        %v561 = vld [vmem:[#allocation8 + $0x18] sm:$0xf]
        %v562 = vld [vmem:[#allocation8 + $0x1c] sm:$0xf]
        %v563 = vld [vmem:[#allocation8 + $0x20] sm:$0xf]
        %v564 = vld [vmem:[#allocation8 + $0x24] sm:$0xf]
        %v565 = vld [vmem:[#allocation8 + $0x28] sm:$0xf]
        %v566 = vld [vmem:[#allocation8 + $0x2c] sm:$0xf]
        %v567 = vld [vmem:[#allocation8 + $0x30] sm:$0xf]
        %v568 = vld [vmem:[#allocation8 + $0x34] sm:$0xf]
        %v569 = vld [vmem:[#allocation8 + $0x38] sm:$0xf]
        %v570 = vld [vmem:[#allocation8 + $0x3c] sm:$0xf]
        %v579 = vunpack.c.l.b16 %v547
        %v580 = vunpack.c.h.b16 %v547
        %v581 = vunpack.c.l.b16 %v548
        %v582 = vunpack.c.h.b16 %v548
        %v583 = vunpack.c.l.b16 %v549
        %v584 = vunpack.c.h.b16 %v549
        %v585 = vunpack.c.l.b16 %v550
        %v586 = vunpack.c.h.b16 %v550
        %v587 = vunpack.c.l.b16 %v551
        %v588 = vunpack.c.h.b16 %v551
        %v589 = vunpack.c.l.b16 %v552
        %v590 = vunpack.c.h.b16 %v552
        %v591 = vunpack.c.l.b16 %v553
        %v592 = vunpack.c.h.b16 %v553
        %v593 = vunpack.c.l.b16 %v554
        %v594 = vunpack.c.h.b16 %v554
        %v595 = vpack.c.b16 %v579, %v579
        %v596 = vpack.c.b16 %v580, %v580
        %v597 = vpack.c.b16 %v581, %v581
        %v598 = vpack.c.b16 %v582, %v582
        %v599 = vpack.c.b16 %v583, %v583
        %v600 = vpack.c.b16 %v584, %v584
        %v601 = vpack.c.b16 %v585, %v585
        %v602 = vpack.c.b16 %v586, %v586
        %v603 = vpack.c.b16 %v587, %v587
        %v604 = vpack.c.b16 %v588, %v588
        %v605 = vpack.c.b16 %v589, %v589
        %v606 = vpack.c.b16 %v590, %v590
        %v607 = vpack.c.b16 %v591, %v591
        %v608 = vpack.c.b16 %v592, %v592
        %v609 = vpack.c.b16 %v593, %v593
        %v610 = vpack.c.b16 %v594, %v594
        %vm611 = vcmask 1042432
        %vm612 = vcmask 1046532
        %vm613 = vmor %vm611, %vm612
        %v614 = vrot.slane %v595, 5
        %v615 = vrot.slane %v614, 4
        %v616 = vrot.slane %v596, 5
        %v617 = vsel %vm613, %v615, %v616
        %v618 = vrot.slane %v597, 5
        %v619 = vrot.slane %v618, 4
        %v620 = vrot.slane %v598, 5
        %v621 = vsel %vm613, %v619, %v620
        %v622 = vrot.slane %v599, 5
        %v623 = vrot.slane %v622, 4
        %v624 = vrot.slane %v600, 5
        %v625 = vsel %vm613, %v623, %v624
        %v626 = vrot.slane %v601, 5
        %v627 = vrot.slane %v626, 4
        %v628 = vrot.slane %v602, 5
        %v629 = vsel %vm613, %v627, %v628
        %v630 = vrot.slane %v603, 5
        %v631 = vrot.slane %v630, 4
        %v632 = vrot.slane %v604, 5
        %v633 = vsel %vm613, %v631, %v632
        %v634 = vrot.slane %v605, 5
        %v635 = vrot.slane %v634, 4
        %v636 = vrot.slane %v606, 5
        %v637 = vsel %vm613, %v635, %v636
        %v638 = vrot.slane %v607, 5
        %v639 = vrot.slane %v638, 4
        %v640 = vrot.slane %v608, 5
        %v641 = vsel %vm613, %v639, %v640
        %v642 = vrot.slane %v609, 5
        %v643 = vrot.slane %v642, 4
        %v644 = vrot.slane %v610, 5
        %v645 = vsel %vm613, %v643, %v644
        %s646 = scalar_lea.vmem [#allocation8], 64
        %v647 = vld [vmem:[%s646] sm:$0xf]
        %v648 = vld [vmem:[%s646 + $0x4] sm:$0xf]
        %v649 = vld [vmem:[%s646 + $0x8] sm:$0xf]
        %v650 = vld [vmem:[%s646 + $0xc] sm:$0xf]
        %v651 = vld [vmem:[%s646 + $0x10] sm:$0xf]
        %v652 = vld [vmem:[%s646 + $0x14] sm:$0xf]
        %v653 = vld [vmem:[%s646 + $0x18] sm:$0xf]
        %v654 = vld [vmem:[%s646 + $0x1c] sm:$0xf]
        %v655 = vld [vmem:[%s646 + $0x20] sm:$0xf]
        %v656 = vld [vmem:[%s646 + $0x24] sm:$0xf]
        %v657 = vld [vmem:[%s646 + $0x28] sm:$0xf]
        %v658 = vld [vmem:[%s646 + $0x2c] sm:$0xf]
        %v659 = vld [vmem:[%s646 + $0x30] sm:$0xf]
        %v660 = vld [vmem:[%s646 + $0x34] sm:$0xf]
        %v661 = vld [vmem:[%s646 + $0x38] sm:$0xf]
        %v662 = vld [vmem:[%s646 + $0x3c] sm:$0xf]
        %v663 = vunpack.c.l.b16 %v617
        %v664 = vunpack.c.l.b16 %v621
        %v665 = vunpack.c.l.b16 %v625
        %v666 = vunpack.c.l.b16 %v629
        %v667 = vunpack.c.l.b16 %v633
        %v668 = vunpack.c.l.b16 %v637
        %v669 = vunpack.c.l.b16 %v641
        %v670 = vunpack.c.l.b16 %v645
        %v671 = vpack.c.b16 %v664, %v663
        %v672 = vpack.c.b16 %v666, %v665
        %v673 = vpack.c.b16 %v668, %v667
        %v674 = vpack.c.b16 %v670, %v669
        %v695 = vunpack.c.l.b16 %v647
        %v696 = vunpack.c.l.b16 %v648
        %v697 = vunpack.c.l.b16 %v649
        %v698 = vunpack.c.l.b16 %v650
        %v699 = vunpack.c.l.b16 %v651
        %v700 = vunpack.c.l.b16 %v652
        %v701 = vunpack.c.l.b16 %v653
        %v702 = vunpack.c.l.b16 %v654
        %v703 = vunpack.c.l.b16 %v655
        %v704 = vunpack.c.l.b16 %v656
        %v705 = vunpack.c.l.b16 %v657
        %v706 = vunpack.c.l.b16 %v658
        %v707 = vunpack.c.l.b16 %v659
        %v708 = vunpack.c.l.b16 %v660
        %v709 = vunpack.c.l.b16 %v661
        %v710 = vunpack.c.l.b16 %v662
        %v711 = vpack.c.b16 %v696, %v695
        %v712 = vpack.c.b16 %v698, %v697
        %v713 = vpack.c.b16 %v700, %v699
        %v714 = vpack.c.b16 %v702, %v701
        %v715 = vpack.c.b16 %v704, %v703
        %v716 = vpack.c.b16 %v706, %v705
        %v717 = vpack.c.b16 %v708, %v707
        %v718 = vpack.c.b16 %v710, %v709
        %727 = vmatprep.subr.bf16.mxu0 0
        %728 = vmatpush1.bf16.msra.mxu0 %v718
        %729 = vmatprep.subr.bf16.mxu0 0
        %730 = vmatpush1.bf16.msra.mxu0 %v717
        %731 = vmatprep.subr.bf16.mxu0 0
        %732 = vmatpush1.bf16.msra.mxu0 %v716
        %733 = vmatprep.subr.bf16.mxu0 0
        %734 = vmatpush1.bf16.msra.mxu0 %v715
        %735 = vmatprep.subr.bf16.mxu0 0
        %736 = vmatpush1.bf16.msra.mxu0 %v714
        %737 = vmatprep.subr.bf16.mxu0 0
        %738 = vmatpush1.bf16.msra.mxu0 %v713
        %739 = vmatprep.subr.bf16.mxu0 0
        %740 = vmatpush1.bf16.msra.mxu0 %v712
        %741 = vmatprep.subr.bf16.mxu0 0
        %742 = vmatpush1.bf16.msra.mxu0 %v711
        %743 = vmatprep.subr.bf16.mxu0 0
        %744 = vmatpush2.bf16.msra.mxu0 0
        %745 = vmatprep.subr.bf16.mxu0 0
        %746 = vmatpush2.bf16.msra.mxu0 0
        %747 = vmatprep.subr.bf16.mxu0 0
        %748 = vmatpush2.bf16.msra.mxu0 0
        %749 = vmatprep.subr.bf16.mxu0 0
        %750 = vmatpush2.bf16.msra.mxu0 0
        %751 = vmatprep.subr.bf16.mxu0 0
        %752 = vmatpush2.bf16.msra.mxu0 0
        %753 = vmatprep.subr.bf16.mxu0 0
        %754 = vmatpush2.bf16.msra.mxu0 0
        %755 = vmatprep.subr.bf16.mxu0 0
        %756 = vmatpush2.bf16.msra.mxu0 0
        %757 = vmatprep.subr.bf16.mxu0 0
        %758 = vmatpush2.bf16.msra.mxu0 0
        %759 = vmatprep.mubr.bf16.mxu0 0
        %760 = vmatmul.mubr.bf16.gmra.mxu0 %v671
        %v761 = vpop.f32.mrf.mxu0
        %v762 = vadd.f32 0.0, %v761
        %v763 = vpop.f32.mrf.mxu0
        %v764 = vpop.f32.mrf.mxu0
        %v765 = vadd.f32 0.0, %v764
        %v766 = vpop.f32.mrf.mxu0
        %767 = vmatprep.mubr.bf16.mxu0 0
        %768 = vmatmul.mubr.bf16.gmra.mxu0 %v672
        %v769 = vpop.f32.mrf.mxu0
        %v770 = vadd.f32 0.0, %v769
        %v771 = vpop.f32.mrf.mxu0
        %v772 = vpop.f32.mrf.mxu0
        %v773 = vadd.f32 0.0, %v772
        %v774 = vpop.f32.mrf.mxu0
        %775 = vmatprep.mubr.bf16.mxu0 0
        %776 = vmatmul.mubr.bf16.gmra.mxu0 %v673
        %v777 = vpop.f32.mrf.mxu0
        %v778 = vadd.f32 0.0, %v777
        %v779 = vpop.f32.mrf.mxu0
        %v780 = vpop.f32.mrf.mxu0
        %v781 = vadd.f32 0.0, %v780
        %v782 = vpop.f32.mrf.mxu0
        %783 = vmatprep.mubr.bf16.mxu0 0
        %784 = vmatmul.mubr.bf16.gmra.mxu0 %v674
        %v785 = vpop.f32.mrf.mxu0
        %v786 = vadd.f32 0.0, %v785
        %v787 = vpop.f32.mrf.mxu0
        %v788 = vpop.f32.mrf.mxu0
        %v789 = vadd.f32 0.0, %v788
        %v790 = vpop.f32.mrf.mxu0
        %791 = vdwg.mxu0
        %v792 = vpack.c.b16 %v581, %v579
        %v793 = vpack.c.b16 %v585, %v583
        %v794 = vpack.c.b16 %v589, %v587
        %v795 = vpack.c.b16 %v593, %v591
        %v816 = vunpack.c.l.b16 %v555
        %v817 = vunpack.c.l.b16 %v556
        %v818 = vunpack.c.l.b16 %v557
        %v819 = vunpack.c.l.b16 %v558
        %v820 = vunpack.c.l.b16 %v559
        %v821 = vunpack.c.l.b16 %v560
        %v822 = vunpack.c.l.b16 %v561
        %v823 = vunpack.c.l.b16 %v562
        %v824 = vunpack.c.l.b16 %v563
        %v825 = vunpack.c.l.b16 %v564
        %v826 = vunpack.c.l.b16 %v565
        %v827 = vunpack.c.l.b16 %v566
        %v828 = vunpack.c.l.b16 %v567
        %v829 = vunpack.c.l.b16 %v568
        %v830 = vunpack.c.l.b16 %v569
        %v831 = vunpack.c.l.b16 %v570
        %v832 = vpack.c.b16 %v817, %v816
        %v833 = vpack.c.b16 %v819, %v818
        %v834 = vpack.c.b16 %v821, %v820
        %v835 = vpack.c.b16 %v823, %v822
        %v836 = vpack.c.b16 %v825, %v824
        %v837 = vpack.c.b16 %v827, %v826
        %v838 = vpack.c.b16 %v829, %v828
        %v839 = vpack.c.b16 %v831, %v830
        %848 = vmatprep.subr.bf16.mxu0 0
        %849 = vmatpush1.bf16.msra.mxu0 %v839
        %850 = vmatprep.subr.bf16.mxu0 0
        %851 = vmatpush1.bf16.msra.mxu0 %v838
        %852 = vmatprep.subr.bf16.mxu0 0
        %853 = vmatpush1.bf16.msra.mxu0 %v837
        %854 = vmatprep.subr.bf16.mxu0 0
        %855 = vmatpush1.bf16.msra.mxu0 %v836
        %856 = vmatprep.subr.bf16.mxu0 0
        %857 = vmatpush1.bf16.msra.mxu0 %v835
        %858 = vmatprep.subr.bf16.mxu0 0
        %859 = vmatpush1.bf16.msra.mxu0 %v834
        %860 = vmatprep.subr.bf16.mxu0 0
        %861 = vmatpush1.bf16.msra.mxu0 %v833
        %862 = vmatprep.subr.bf16.mxu0 0
        %863 = vmatpush1.bf16.msra.mxu0 %v832
        %864 = vmatprep.subr.bf16.mxu0 0
        %865 = vmatpush2.bf16.msra.mxu0 0
        %866 = vmatprep.subr.bf16.mxu0 0
        %867 = vmatpush2.bf16.msra.mxu0 0
        %868 = vmatprep.subr.bf16.mxu0 0
        %869 = vmatpush2.bf16.msra.mxu0 0
        %870 = vmatprep.subr.bf16.mxu0 0
        %871 = vmatpush2.bf16.msra.mxu0 0
        %872 = vmatprep.subr.bf16.mxu0 0
        %873 = vmatpush2.bf16.msra.mxu0 0
        %874 = vmatprep.subr.bf16.mxu0 0
        %875 = vmatpush2.bf16.msra.mxu0 0
        %876 = vmatprep.subr.bf16.mxu0 0
        %877 = vmatpush2.bf16.msra.mxu0 0
        %878 = vmatprep.subr.bf16.mxu0 0
        %879 = vmatpush2.bf16.msra.mxu0 0
        %880 = vmatprep.mubr.bf16.mxu0 0
        %881 = vmatmul.mubr.bf16.gmra.mxu0 %v792
        %v882 = vpop.f32.mrf.mxu0
        %v883 = vadd.f32 %v762, %v882
        %v884 = vpop.f32.mrf.mxu0
        %v885 = vpop.f32.mrf.mxu0
        %v886 = vadd.f32 %v765, %v885
        %v887 = vpop.f32.mrf.mxu0
        %888 = vmatprep.mubr.bf16.mxu0 0
        %889 = vmatmul.mubr.bf16.gmra.mxu0 %v793
        %v890 = vpop.f32.mrf.mxu0
        %v891 = vadd.f32 %v770, %v890
        %v892 = vpop.f32.mrf.mxu0
        %v893 = vpop.f32.mrf.mxu0
        %v894 = vadd.f32 %v773, %v893
        %v895 = vpop.f32.mrf.mxu0
        %896 = vmatprep.mubr.bf16.mxu0 0
        %897 = vmatmul.mubr.bf16.gmra.mxu0 %v794
        %v898 = vpop.f32.mrf.mxu0
        %v899 = vadd.f32 %v778, %v898
        %v900 = vpop.f32.mrf.mxu0
        %v901 = vpop.f32.mrf.mxu0
        %v902 = vadd.f32 %v781, %v901
        %v903 = vpop.f32.mrf.mxu0
        %904 = vmatprep.mubr.bf16.mxu0 0
        %905 = vmatmul.mubr.bf16.gmra.mxu0 %v795
        %v906 = vpop.f32.mrf.mxu0
        %v907 = vadd.f32 %v786, %v906
        %v908 = vpop.f32.mrf.mxu0
        %v909 = vpop.f32.mrf.mxu0
        %v910 = vadd.f32 %v789, %v909
        %v911 = vpop.f32.mrf.mxu0
        %912 = vdwg.mxu0
        %vm913 = vcmask 1041408
        %vm914 = vcmask 1045508
        %vm915 = vmor %vm913, %vm914
        %v916 = vrot.slane %v595, 6
        %v917 = vrot.slane %v916, 4
        %v918 = vrot.slane %v596, 6
        %v919 = vsel %vm915, %v917, %v918
        %v920 = vrot.slane %v597, 6
        %v921 = vrot.slane %v920, 4
        %v922 = vrot.slane %v598, 6
        %v923 = vsel %vm915, %v921, %v922
        %v924 = vrot.slane %v599, 6
        %v925 = vrot.slane %v924, 4
        %v926 = vrot.slane %v600, 6
        %v927 = vsel %vm915, %v925, %v926
        %v928 = vrot.slane %v601, 6
        %v929 = vrot.slane %v928, 4
        %v930 = vrot.slane %v602, 6
        %v931 = vsel %vm915, %v929, %v930
        %v932 = vrot.slane %v603, 6
        %v933 = vrot.slane %v932, 4
        %v934 = vrot.slane %v604, 6
        %v935 = vsel %vm915, %v933, %v934
        %v936 = vrot.slane %v605, 6
        %v937 = vrot.slane %v936, 4
        %v938 = vrot.slane %v606, 6
        %v939 = vsel %vm915, %v937, %v938
        %v940 = vrot.slane %v607, 6
        %v941 = vrot.slane %v940, 4
        %v942 = vrot.slane %v608, 6
        %v943 = vsel %vm915, %v941, %v942
        %v944 = vrot.slane %v609, 6
        %v945 = vrot.slane %v944, 4
        %v946 = vrot.slane %v610, 6
        %v947 = vsel %vm915, %v945, %v946
        %s948 = scalar_lea.vmem [#allocation8], 128
        %v949 = vld [vmem:[%s948] sm:$0xf]
        %v950 = vld [vmem:[%s948 + $0x4] sm:$0xf]
        %v951 = vld [vmem:[%s948 + $0x8] sm:$0xf]
        %v952 = vld [vmem:[%s948 + $0xc] sm:$0xf]
        %v953 = vld [vmem:[%s948 + $0x10] sm:$0xf]
        %v954 = vld [vmem:[%s948 + $0x14] sm:$0xf]
        %v955 = vld [vmem:[%s948 + $0x18] sm:$0xf]
        %v956 = vld [vmem:[%s948 + $0x1c] sm:$0xf]
        %v957 = vld [vmem:[%s948 + $0x20] sm:$0xf]
        %v958 = vld [vmem:[%s948 + $0x24] sm:$0xf]
        %v959 = vld [vmem:[%s948 + $0x28] sm:$0xf]
        %v960 = vld [vmem:[%s948 + $0x2c] sm:$0xf]
        %v961 = vld [vmem:[%s948 + $0x30] sm:$0xf]
        %v962 = vld [vmem:[%s948 + $0x34] sm:$0xf]
        %v963 = vld [vmem:[%s948 + $0x38] sm:$0xf]
        %v964 = vld [vmem:[%s948 + $0x3c] sm:$0xf]
        %v965 = vunpack.c.l.b16 %v919
        %v966 = vunpack.c.l.b16 %v923
        %v967 = vunpack.c.l.b16 %v927
        %v968 = vunpack.c.l.b16 %v931
        %v969 = vunpack.c.l.b16 %v935
        %v970 = vunpack.c.l.b16 %v939
        %v971 = vunpack.c.l.b16 %v943
        %v972 = vunpack.c.l.b16 %v947
        %v973 = vpack.c.b16 %v966, %v965
        %v974 = vpack.c.b16 %v968, %v967
        %v975 = vpack.c.b16 %v970, %v969
        %v976 = vpack.c.b16 %v972, %v971
        %v997 = vunpack.c.l.b16 %v949
        %v998 = vunpack.c.l.b16 %v950
        %v999 = vunpack.c.l.b16 %v951
        %v1000 = vunpack.c.l.b16 %v952
        %v1001 = vunpack.c.l.b16 %v953
        %v1002 = vunpack.c.l.b16 %v954
        %v1003 = vunpack.c.l.b16 %v955
        %v1004 = vunpack.c.l.b16 %v956
        %v1005 = vunpack.c.l.b16 %v957
        %v1006 = vunpack.c.l.b16 %v958
        %v1007 = vunpack.c.l.b16 %v959
        %v1008 = vunpack.c.l.b16 %v960
        %v1009 = vunpack.c.l.b16 %v961
        %v1010 = vunpack.c.l.b16 %v962
        %v1011 = vunpack.c.l.b16 %v963
        %v1012 = vunpack.c.l.b16 %v964
        %v1013 = vpack.c.b16 %v998, %v997
        %v1014 = vpack.c.b16 %v1000, %v999
        %v1015 = vpack.c.b16 %v1002, %v1001
        %v1016 = vpack.c.b16 %v1004, %v1003
        %v1017 = vpack.c.b16 %v1006, %v1005
        %v1018 = vpack.c.b16 %v1008, %v1007
        %v1019 = vpack.c.b16 %v1010, %v1009
        %v1020 = vpack.c.b16 %v1012, %v1011
        %1029 = vmatprep.subr.bf16.mxu0 0
        %1030 = vmatpush1.bf16.msra.mxu0 %v1020
        %1031 = vmatprep.subr.bf16.mxu0 0
        %1032 = vmatpush1.bf16.msra.mxu0 %v1019
        %1033 = vmatprep.subr.bf16.mxu0 0
        %1034 = vmatpush1.bf16.msra.mxu0 %v1018
        %1035 = vmatprep.subr.bf16.mxu0 0
        %1036 = vmatpush1.bf16.msra.mxu0 %v1017
        %1037 = vmatprep.subr.bf16.mxu0 0
        %1038 = vmatpush1.bf16.msra.mxu0 %v1016
        %1039 = vmatprep.subr.bf16.mxu0 0
        %1040 = vmatpush1.bf16.msra.mxu0 %v1015
        %1041 = vmatprep.subr.bf16.mxu0 0
        %1042 = vmatpush1.bf16.msra.mxu0 %v1014
        %1043 = vmatprep.subr.bf16.mxu0 0
        %1044 = vmatpush1.bf16.msra.mxu0 %v1013
        %1045 = vmatprep.subr.bf16.mxu0 0
        %1046 = vmatpush2.bf16.msra.mxu0 0
        %1047 = vmatprep.subr.bf16.mxu0 0
        %1048 = vmatpush2.bf16.msra.mxu0 0
        %1049 = vmatprep.subr.bf16.mxu0 0
        %1050 = vmatpush2.bf16.msra.mxu0 0
        %1051 = vmatprep.subr.bf16.mxu0 0
        %1052 = vmatpush2.bf16.msra.mxu0 0
        %1053 = vmatprep.subr.bf16.mxu0 0
        %1054 = vmatpush2.bf16.msra.mxu0 0
        %1055 = vmatprep.subr.bf16.mxu0 0
        %1056 = vmatpush2.bf16.msra.mxu0 0
        %1057 = vmatprep.subr.bf16.mxu0 0
        %1058 = vmatpush2.bf16.msra.mxu0 0
        %1059 = vmatprep.subr.bf16.mxu0 0
        %1060 = vmatpush2.bf16.msra.mxu0 0
        %1061 = vmatprep.mubr.bf16.mxu0 0
        %1062 = vmatmul.mubr.bf16.gmra.mxu0 %v973
        %v1063 = vpop.f32.mrf.mxu0
        %v1064 = vadd.f32 0.0, %v1063
        %v1065 = vpop.f32.mrf.mxu0
        %v1066 = vpop.f32.mrf.mxu0
        %v1067 = vadd.f32 0.0, %v1066
        %v1068 = vpop.f32.mrf.mxu0
        %1069 = vmatprep.mubr.bf16.mxu0 0
        %1070 = vmatmul.mubr.bf16.gmra.mxu0 %v974
        %v1071 = vpop.f32.mrf.mxu0
        %v1072 = vadd.f32 0.0, %v1071
        %v1073 = vpop.f32.mrf.mxu0
        %v1074 = vpop.f32.mrf.mxu0
        %v1075 = vadd.f32 0.0, %v1074
        %v1076 = vpop.f32.mrf.mxu0
        %1077 = vmatprep.mubr.bf16.mxu0 0
        %1078 = vmatmul.mubr.bf16.gmra.mxu0 %v975
        %v1079 = vpop.f32.mrf.mxu0
        %v1080 = vadd.f32 0.0, %v1079
        %v1081 = vpop.f32.mrf.mxu0
        %v1082 = vpop.f32.mrf.mxu0
        %v1083 = vadd.f32 0.0, %v1082
        %v1084 = vpop.f32.mrf.mxu0
        %1085 = vmatprep.mubr.bf16.mxu0 0
        %1086 = vmatmul.mubr.bf16.gmra.mxu0 %v976
        %v1087 = vpop.f32.mrf.mxu0
        %v1088 = vadd.f32 0.0, %v1087
        %v1089 = vpop.f32.mrf.mxu0
        %v1090 = vpop.f32.mrf.mxu0
        %v1091 = vadd.f32 0.0, %v1090
        %v1092 = vpop.f32.mrf.mxu0
        %1093 = vdwg.mxu0
        %v1094 = vadd.f32 %v883, %v1064
        %v1095 = vadd.f32 %v886, %v1067
        %v1096 = vadd.f32 %v891, %v1072
        %v1097 = vadd.f32 %v894, %v1075
        %v1098 = vadd.f32 %v899, %v1080
        %v1099 = vadd.f32 %v902, %v1083
        %v1100 = vadd.f32 %v907, %v1088
        %v1101 = vadd.f32 %v910, %v1091
        %v1102 = vld [vmem:[%s522] sm:$0xff]
        %v1103 = vld [vmem:[%s522 + $0x8] sm:$0xf]
        %v1104 = vld [vmem:[%s522 + $0x10] sm:$0xff]
        %v1105 = vld [vmem:[%s522 + $0x18] sm:$0xf]
        %v1106 = vld [vmem:[%s522 + $0x20] sm:$0xff]
        %v1107 = vld [vmem:[%s522 + $0x28] sm:$0xf]
        %v1108 = vld [vmem:[%s522 + $0x30] sm:$0xff]
        %v1109 = vld [vmem:[%s522 + $0x38] sm:$0xf]
        %v1110 = vld [vmem:[%s522 + $0x40] sm:$0xff]
        %v1111 = vld [vmem:[%s522 + $0x48] sm:$0xf]
        %v1112 = vld [vmem:[%s522 + $0x50] sm:$0xff]
        %v1113 = vld [vmem:[%s522 + $0x58] sm:$0xf]
        %v1114 = vld [vmem:[%s522 + $0x60] sm:$0xff]
        %v1115 = vld [vmem:[%s522 + $0x68] sm:$0xf]
        %v1116 = vld [vmem:[%s522 + $0x70] sm:$0xff]
        %v1117 = vld [vmem:[%s522 + $0x78] sm:$0xf]
        %v1118 = vpack.c.bf16 %v1103, %v1102
        %v1119 = vpack.c.bf16 %v1105, %v1104
        %v1120 = vpack.c.bf16 %v1107, %v1106
        %v1121 = vpack.c.bf16 %v1109, %v1108
        %v1122 = vpack.c.bf16 %v1111, %v1110
        %v1123 = vpack.c.bf16 %v1113, %v1112
        %v1124 = vpack.c.bf16 %v1115, %v1114
        %v1125 = vpack.c.bf16 %v1117, %v1116
        %s1126 = scalar_lea.vmem [#allocation8], 192
        %v1127 = vld [vmem:[%s1126] sm:$0xf]
        %v1128 = vld [vmem:[%s1126 + $0x4] sm:$0xf]
        %v1129 = vld [vmem:[%s1126 + $0x8] sm:$0xf]
        %v1130 = vld [vmem:[%s1126 + $0xc] sm:$0xf]
        %v1131 = vld [vmem:[%s1126 + $0x10] sm:$0xf]
        %v1132 = vld [vmem:[%s1126 + $0x14] sm:$0xf]
        %v1133 = vld [vmem:[%s1126 + $0x18] sm:$0xf]
        %v1134 = vld [vmem:[%s1126 + $0x1c] sm:$0xf]
        %v1135 = vld [vmem:[%s1126 + $0x20] sm:$0xf]
        %v1136 = vld [vmem:[%s1126 + $0x24] sm:$0xf]
        %v1137 = vld [vmem:[%s1126 + $0x28] sm:$0xf]
        %v1138 = vld [vmem:[%s1126 + $0x2c] sm:$0xf]
        %v1139 = vld [vmem:[%s1126 + $0x30] sm:$0xf]
        %v1140 = vld [vmem:[%s1126 + $0x34] sm:$0xf]
        %v1141 = vld [vmem:[%s1126 + $0x38] sm:$0xf]
        %v1142 = vld [vmem:[%s1126 + $0x3c] sm:$0xf]
        %v1151 = vunpack.c.l.b16 %v1118
        %v1152 = vunpack.c.l.b16 %v1119
        %v1153 = vunpack.c.l.b16 %v1120
        %v1154 = vunpack.c.l.b16 %v1121
        %v1155 = vunpack.c.l.b16 %v1122
        %v1156 = vunpack.c.l.b16 %v1123
        %v1157 = vunpack.c.l.b16 %v1124
        %v1158 = vunpack.c.l.b16 %v1125
        %v1159 = vpack.c.b16 %v1152, %v1151
        %v1160 = vpack.c.b16 %v1154, %v1153
        %v1161 = vpack.c.b16 %v1156, %v1155
        %v1162 = vpack.c.b16 %v1158, %v1157
        %v1183 = vunpack.c.l.b16 %v1127
        %v1184 = vunpack.c.l.b16 %v1128
        %v1185 = vunpack.c.l.b16 %v1129
        %v1186 = vunpack.c.l.b16 %v1130
        %v1187 = vunpack.c.l.b16 %v1131
        %v1188 = vunpack.c.l.b16 %v1132
        %v1189 = vunpack.c.l.b16 %v1133
        %v1190 = vunpack.c.l.b16 %v1134
        %v1191 = vunpack.c.l.b16 %v1135
        %v1192 = vunpack.c.l.b16 %v1136
        %v1193 = vunpack.c.l.b16 %v1137
        %v1194 = vunpack.c.l.b16 %v1138
        %v1195 = vunpack.c.l.b16 %v1139
        %v1196 = vunpack.c.l.b16 %v1140
        %v1197 = vunpack.c.l.b16 %v1141
        %v1198 = vunpack.c.l.b16 %v1142
        %v1199 = vpack.c.b16 %v1184, %v1183
        %v1200 = vpack.c.b16 %v1186, %v1185
        %v1201 = vpack.c.b16 %v1188, %v1187
        %v1202 = vpack.c.b16 %v1190, %v1189
        %v1203 = vpack.c.b16 %v1192, %v1191
        %v1204 = vpack.c.b16 %v1194, %v1193
        %v1205 = vpack.c.b16 %v1196, %v1195
        %v1206 = vpack.c.b16 %v1198, %v1197
        %1215 = vmatprep.subr.bf16.mxu0 0
        %1216 = vmatpush1.bf16.msra.mxu0 %v1206
        %1217 = vmatprep.subr.bf16.mxu0 0
        %1218 = vmatpush1.bf16.msra.mxu0 %v1205
        %1219 = vmatprep.subr.bf16.mxu0 0
        %1220 = vmatpush1.bf16.msra.mxu0 %v1204
        %1221 = vmatprep.subr.bf16.mxu0 0
        %1222 = vmatpush1.bf16.msra.mxu0 %v1203
        %1223 = vmatprep.subr.bf16.mxu0 0
        %1224 = vmatpush1.bf16.msra.mxu0 %v1202
        %1225 = vmatprep.subr.bf16.mxu0 0
        %1226 = vmatpush1.bf16.msra.mxu0 %v1201
        %1227 = vmatprep.subr.bf16.mxu0 0
        %1228 = vmatpush1.bf16.msra.mxu0 %v1200
        %1229 = vmatprep.subr.bf16.mxu0 0
        %1230 = vmatpush1.bf16.msra.mxu0 %v1199
        %1231 = vmatprep.subr.bf16.mxu0 0
        %1232 = vmatpush2.bf16.msra.mxu0 0
        %1233 = vmatprep.subr.bf16.mxu0 0
        %1234 = vmatpush2.bf16.msra.mxu0 0
        %1235 = vmatprep.subr.bf16.mxu0 0
        %1236 = vmatpush2.bf16.msra.mxu0 0
        %1237 = vmatprep.subr.bf16.mxu0 0
        %1238 = vmatpush2.bf16.msra.mxu0 0
        %1239 = vmatprep.subr.bf16.mxu0 0
        %1240 = vmatpush2.bf16.msra.mxu0 0
        %1241 = vmatprep.subr.bf16.mxu0 0
        %1242 = vmatpush2.bf16.msra.mxu0 0
        %1243 = vmatprep.subr.bf16.mxu0 0
        %1244 = vmatpush2.bf16.msra.mxu0 0
        %1245 = vmatprep.subr.bf16.mxu0 0
        %1246 = vmatpush2.bf16.msra.mxu0 0
        %1247 = vmatprep.mubr.bf16.mxu0 0
        %1248 = vmatmul.mubr.bf16.gmra.mxu0 %v1159
        %v1249 = vpop.f32.mrf.mxu0
        %v1250 = vadd.f32 0.0, %v1249
        %v1251 = vpop.f32.mrf.mxu0
        %v1252 = vpop.f32.mrf.mxu0
        %v1253 = vadd.f32 0.0, %v1252
        %v1254 = vpop.f32.mrf.mxu0
        %1255 = vmatprep.mubr.bf16.mxu0 0
        %1256 = vmatmul.mubr.bf16.gmra.mxu0 %v1160
        %v1257 = vpop.f32.mrf.mxu0
        %v1258 = vadd.f32 0.0, %v1257
        %v1259 = vpop.f32.mrf.mxu0
        %v1260 = vpop.f32.mrf.mxu0
        %v1261 = vadd.f32 0.0, %v1260
        %v1262 = vpop.f32.mrf.mxu0
        %1263 = vmatprep.mubr.bf16.mxu0 0
        %1264 = vmatmul.mubr.bf16.gmra.mxu0 %v1161
        %v1265 = vpop.f32.mrf.mxu0
        %v1266 = vadd.f32 0.0, %v1265
        %v1267 = vpop.f32.mrf.mxu0
        %v1268 = vpop.f32.mrf.mxu0
        %v1269 = vadd.f32 0.0, %v1268
        %v1270 = vpop.f32.mrf.mxu0
        %1271 = vmatprep.mubr.bf16.mxu0 0
        %1272 = vmatmul.mubr.bf16.gmra.mxu0 %v1162
        %v1273 = vpop.f32.mrf.mxu0
        %v1274 = vadd.f32 0.0, %v1273
        %v1275 = vpop.f32.mrf.mxu0
        %v1276 = vpop.f32.mrf.mxu0
        %v1277 = vadd.f32 0.0, %v1276
        %v1278 = vpop.f32.mrf.mxu0
        %1279 = vdwg.mxu0
        %v1280 = vadd.f32 %v1094, %v1250
        %v1281 = vadd.f32 %v1095, %v1253
        %v1282 = vadd.f32 %v1096, %v1258
        %v1283 = vadd.f32 %v1097, %v1261
        %v1284 = vadd.f32 %v1098, %v1266
        %v1285 = vadd.f32 %v1099, %v1269
        %v1286 = vadd.f32 %v1100, %v1274
        %v1287 = vadd.f32 %v1101, %v1277
        %v1288 = vunpack.c.h.b16 %v1118
        %v1289 = vunpack.c.h.b16 %v1119
        %v1290 = vunpack.c.h.b16 %v1120
        %v1291 = vunpack.c.h.b16 %v1121
        %v1292 = vunpack.c.h.b16 %v1122
        %v1293 = vunpack.c.h.b16 %v1123
        %v1294 = vunpack.c.h.b16 %v1124
        %v1295 = vunpack.c.h.b16 %v1125
        %v1296 = vpack.c.b16 %v1151, %v1151
        %v1297 = vpack.c.b16 %v1288, %v1288
        %v1298 = vpack.c.b16 %v1152, %v1152
        %v1299 = vpack.c.b16 %v1289, %v1289
        %v1300 = vpack.c.b16 %v1153, %v1153
        %v1301 = vpack.c.b16 %v1290, %v1290
        %v1302 = vpack.c.b16 %v1154, %v1154
        %v1303 = vpack.c.b16 %v1291, %v1291
        %v1304 = vpack.c.b16 %v1155, %v1155
        %v1305 = vpack.c.b16 %v1292, %v1292
        %v1306 = vpack.c.b16 %v1156, %v1156
        %v1307 = vpack.c.b16 %v1293, %v1293
        %v1308 = vpack.c.b16 %v1157, %v1157
        %v1309 = vpack.c.b16 %v1294, %v1294
        %v1310 = vpack.c.b16 %v1158, %v1158
        %v1311 = vpack.c.b16 %v1295, %v1295
        %v1312 = vrot.slane %v1296, 5
        %v1313 = vrot.slane %v1312, 4
        %v1314 = vrot.slane %v1297, 5
        %v1315 = vsel %vm613, %v1313, %v1314
        %v1316 = vrot.slane %v1298, 5
        %v1317 = vrot.slane %v1316, 4
        %v1318 = vrot.slane %v1299, 5
        %v1319 = vsel %vm613, %v1317, %v1318
        %v1320 = vrot.slane %v1300, 5
        %v1321 = vrot.slane %v1320, 4
        %v1322 = vrot.slane %v1301, 5
        %v1323 = vsel %vm613, %v1321, %v1322
        %v1324 = vrot.slane %v1302, 5
        %v1325 = vrot.slane %v1324, 4
        %v1326 = vrot.slane %v1303, 5
        %v1327 = vsel %vm613, %v1325, %v1326
        %v1328 = vrot.slane %v1304, 5
        %v1329 = vrot.slane %v1328, 4
        %v1330 = vrot.slane %v1305, 5
        %v1331 = vsel %vm613, %v1329, %v1330
        %v1332 = vrot.slane %v1306, 5
        %v1333 = vrot.slane %v1332, 4
        %v1334 = vrot.slane %v1307, 5
        %v1335 = vsel %vm613, %v1333, %v1334
        %v1336 = vrot.slane %v1308, 5
        %v1337 = vrot.slane %v1336, 4
        %v1338 = vrot.slane %v1309, 5
        %v1339 = vsel %vm613, %v1337, %v1338
        %v1340 = vrot.slane %v1310, 5
        %v1341 = vrot.slane %v1340, 4
        %v1342 = vrot.slane %v1311, 5
        %v1343 = vsel %vm613, %v1341, %v1342
        %s1344 = scalar_lea.vmem [#allocation8], 256
        %v1345 = vld [vmem:[%s1344] sm:$0xf]
        %v1346 = vld [vmem:[%s1344 + $0x4] sm:$0xf]
        %v1347 = vld [vmem:[%s1344 + $0x8] sm:$0xf]
        %v1348 = vld [vmem:[%s1344 + $0xc] sm:$0xf]
        %v1349 = vld [vmem:[%s1344 + $0x10] sm:$0xf]
        %v1350 = vld [vmem:[%s1344 + $0x14] sm:$0xf]
        %v1351 = vld [vmem:[%s1344 + $0x18] sm:$0xf]
        %v1352 = vld [vmem:[%s1344 + $0x1c] sm:$0xf]
        %v1353 = vld [vmem:[%s1344 + $0x20] sm:$0xf]
        %v1354 = vld [vmem:[%s1344 + $0x24] sm:$0xf]
        %v1355 = vld [vmem:[%s1344 + $0x28] sm:$0xf]
        %v1356 = vld [vmem:[%s1344 + $0x2c] sm:$0xf]
        %v1357 = vld [vmem:[%s1344 + $0x30] sm:$0xf]
        %v1358 = vld [vmem:[%s1344 + $0x34] sm:$0xf]
        %v1359 = vld [vmem:[%s1344 + $0x38] sm:$0xf]
        %v1360 = vld [vmem:[%s1344 + $0x3c] sm:$0xf]
        %v1361 = vunpack.c.l.b16 %v1315
        %v1362 = vunpack.c.l.b16 %v1319
        %v1363 = vunpack.c.l.b16 %v1323
        %v1364 = vunpack.c.l.b16 %v1327
        %v1365 = vunpack.c.l.b16 %v1331
        %v1366 = vunpack.c.l.b16 %v1335
        %v1367 = vunpack.c.l.b16 %v1339
        %v1368 = vunpack.c.l.b16 %v1343
        %v1369 = vpack.c.b16 %v1362, %v1361
        %v1370 = vpack.c.b16 %v1364, %v1363
        %v1371 = vpack.c.b16 %v1366, %v1365
        %v1372 = vpack.c.b16 %v1368, %v1367
        %v1393 = vunpack.c.l.b16 %v1345
        %v1394 = vunpack.c.l.b16 %v1346
        %v1395 = vunpack.c.l.b16 %v1347
        %v1396 = vunpack.c.l.b16 %v1348
        %v1397 = vunpack.c.l.b16 %v1349
        %v1398 = vunpack.c.l.b16 %v1350
        %v1399 = vunpack.c.l.b16 %v1351
        %v1400 = vunpack.c.l.b16 %v1352
        %v1401 = vunpack.c.l.b16 %v1353
        %v1402 = vunpack.c.l.b16 %v1354
        %v1403 = vunpack.c.l.b16 %v1355
        %v1404 = vunpack.c.l.b16 %v1356
        %v1405 = vunpack.c.l.b16 %v1357
        %v1406 = vunpack.c.l.b16 %v1358
        %v1407 = vunpack.c.l.b16 %v1359
        %v1408 = vunpack.c.l.b16 %v1360
        %v1409 = vpack.c.b16 %v1394, %v1393
        %v1410 = vpack.c.b16 %v1396, %v1395
        %v1411 = vpack.c.b16 %v1398, %v1397
        %v1412 = vpack.c.b16 %v1400, %v1399
        %v1413 = vpack.c.b16 %v1402, %v1401
        %v1414 = vpack.c.b16 %v1404, %v1403
        %v1415 = vpack.c.b16 %v1406, %v1405
        %v1416 = vpack.c.b16 %v1408, %v1407
        %1425 = vmatprep.subr.bf16.mxu0 0
        %1426 = vmatpush1.bf16.msra.mxu0 %v1416
        %1427 = vmatprep.subr.bf16.mxu0 0
        %1428 = vmatpush1.bf16.msra.mxu0 %v1415
        %1429 = vmatprep.subr.bf16.mxu0 0
        %1430 = vmatpush1.bf16.msra.mxu0 %v1414
        %1431 = vmatprep.subr.bf16.mxu0 0
        %1432 = vmatpush1.bf16.msra.mxu0 %v1413
        %1433 = vmatprep.subr.bf16.mxu0 0
        %1434 = vmatpush1.bf16.msra.mxu0 %v1412
        %1435 = vmatprep.subr.bf16.mxu0 0
        %1436 = vmatpush1.bf16.msra.mxu0 %v1411
        %1437 = vmatprep.subr.bf16.mxu0 0
        %1438 = vmatpush1.bf16.msra.mxu0 %v1410
        %1439 = vmatprep.subr.bf16.mxu0 0
        %1440 = vmatpush1.bf16.msra.mxu0 %v1409
        %1441 = vmatprep.subr.bf16.mxu0 0
        %1442 = vmatpush2.bf16.msra.mxu0 0
        %1443 = vmatprep.subr.bf16.mxu0 0
        %1444 = vmatpush2.bf16.msra.mxu0 0
        %1445 = vmatprep.subr.bf16.mxu0 0
        %1446 = vmatpush2.bf16.msra.mxu0 0
        %1447 = vmatprep.subr.bf16.mxu0 0
        %1448 = vmatpush2.bf16.msra.mxu0 0
        %1449 = vmatprep.subr.bf16.mxu0 0
        %1450 = vmatpush2.bf16.msra.mxu0 0
        %1451 = vmatprep.subr.bf16.mxu0 0
        %1452 = vmatpush2.bf16.msra.mxu0 0
        %1453 = vmatprep.subr.bf16.mxu0 0
        %1454 = vmatpush2.bf16.msra.mxu0 0
        %1455 = vmatprep.subr.bf16.mxu0 0
        %1456 = vmatpush2.bf16.msra.mxu0 0
        %1457 = vmatprep.mubr.bf16.mxu0 0
        %1458 = vmatmul.mubr.bf16.gmra.mxu0 %v1369
        %v1459 = vpop.f32.mrf.mxu0
        %v1460 = vadd.f32 0.0, %v1459
        %v1461 = vpop.f32.mrf.mxu0
        %v1462 = vpop.f32.mrf.mxu0
        %v1463 = vadd.f32 0.0, %v1462
        %v1464 = vpop.f32.mrf.mxu0
        %1465 = vmatprep.mubr.bf16.mxu0 0
        %1466 = vmatmul.mubr.bf16.gmra.mxu0 %v1370
        %v1467 = vpop.f32.mrf.mxu0
        %v1468 = vadd.f32 0.0, %v1467
        %v1469 = vpop.f32.mrf.mxu0
        %v1470 = vpop.f32.mrf.mxu0
        %v1471 = vadd.f32 0.0, %v1470
        %v1472 = vpop.f32.mrf.mxu0
        %1473 = vmatprep.mubr.bf16.mxu0 0
        %1474 = vmatmul.mubr.bf16.gmra.mxu0 %v1371
        %v1475 = vpop.f32.mrf.mxu0
        %v1476 = vadd.f32 0.0, %v1475
        %v1477 = vpop.f32.mrf.mxu0
        %v1478 = vpop.f32.mrf.mxu0
        %v1479 = vadd.f32 0.0, %v1478
        %v1480 = vpop.f32.mrf.mxu0
        %1481 = vmatprep.mubr.bf16.mxu0 0
        %1482 = vmatmul.mubr.bf16.gmra.mxu0 %v1372
        %v1483 = vpop.f32.mrf.mxu0
        %v1484 = vadd.f32 0.0, %v1483
        %v1485 = vpop.f32.mrf.mxu0
        %v1486 = vpop.f32.mrf.mxu0
        %v1487 = vadd.f32 0.0, %v1486
        %v1488 = vpop.f32.mrf.mxu0
        %1489 = vdwg.mxu0
        %v1490 = vadd.f32 %v1280, %v1460
        %v1491 = vadd.f32 %v1281, %v1463
        %v1492 = vadd.f32 %v1282, %v1468
        %v1493 = vadd.f32 %v1283, %v1471
        %v1494 = vadd.f32 %v1284, %v1476
        %v1495 = vadd.f32 %v1285, %v1479
        %v1496 = vadd.f32 %v1286, %v1484
        %v1497 = vadd.f32 %v1287, %v1487
        %v1498 = vrot.slane %v1296, 6
        %v1499 = vrot.slane %v1498, 4
        %v1500 = vrot.slane %v1297, 6
        %v1501 = vsel %vm915, %v1499, %v1500
        %v1502 = vrot.slane %v1298, 6
        %v1503 = vrot.slane %v1502, 4
        %v1504 = vrot.slane %v1299, 6
        %v1505 = vsel %vm915, %v1503, %v1504
        %v1506 = vrot.slane %v1300, 6
        %v1507 = vrot.slane %v1506, 4
        %v1508 = vrot.slane %v1301, 6
        %v1509 = vsel %vm915, %v1507, %v1508
        %v1510 = vrot.slane %v1302, 6
        %v1511 = vrot.slane %v1510, 4
        %v1512 = vrot.slane %v1303, 6
        %v1513 = vsel %vm915, %v1511, %v1512
        %v1514 = vrot.slane %v1304, 6
        %v1515 = vrot.slane %v1514, 4
        %v1516 = vrot.slane %v1305, 6
        %v1517 = vsel %vm915, %v1515, %v1516
        %v1518 = vrot.slane %v1306, 6
        %v1519 = vrot.slane %v1518, 4
        %v1520 = vrot.slane %v1307, 6
        %v1521 = vsel %vm915, %v1519, %v1520
        %v1522 = vrot.slane %v1308, 6
        %v1523 = vrot.slane %v1522, 4
        %v1524 = vrot.slane %v1309, 6
        %v1525 = vsel %vm915, %v1523, %v1524
        %v1526 = vrot.slane %v1310, 6
        %v1527 = vrot.slane %v1526, 4
        %v1528 = vrot.slane %v1311, 6
        %v1529 = vsel %vm915, %v1527, %v1528
        %s1530 = scalar_lea.vmem [#allocation8], 320
        %v1531 = vld [vmem:[%s1530] sm:$0xf]
        %v1532 = vld [vmem:[%s1530 + $0x4] sm:$0xf]
        %v1533 = vld [vmem:[%s1530 + $0x8] sm:$0xf]
        %v1534 = vld [vmem:[%s1530 + $0xc] sm:$0xf]
        %v1535 = vld [vmem:[%s1530 + $0x10] sm:$0xf]
        %v1536 = vld [vmem:[%s1530 + $0x14] sm:$0xf]
        %v1537 = vld [vmem:[%s1530 + $0x18] sm:$0xf]
        %v1538 = vld [vmem:[%s1530 + $0x1c] sm:$0xf]
        %v1539 = vld [vmem:[%s1530 + $0x20] sm:$0xf]
        %v1540 = vld [vmem:[%s1530 + $0x24] sm:$0xf]
        %v1541 = vld [vmem:[%s1530 + $0x28] sm:$0xf]
        %v1542 = vld [vmem:[%s1530 + $0x2c] sm:$0xf]
        %v1543 = vld [vmem:[%s1530 + $0x30] sm:$0xf]
        %v1544 = vld [vmem:[%s1530 + $0x34] sm:$0xf]
        %v1545 = vld [vmem:[%s1530 + $0x38] sm:$0xf]
        %v1546 = vld [vmem:[%s1530 + $0x3c] sm:$0xf]
        %v1547 = vunpack.c.l.b16 %v1501
        %v1548 = vunpack.c.l.b16 %v1505
        %v1549 = vunpack.c.l.b16 %v1509
        %v1550 = vunpack.c.l.b16 %v1513
        %v1551 = vunpack.c.l.b16 %v1517
        %v1552 = vunpack.c.l.b16 %v1521
        %v1553 = vunpack.c.l.b16 %v1525
        %v1554 = vunpack.c.l.b16 %v1529
        %v1555 = vpack.c.b16 %v1548, %v1547
        %v1556 = vpack.c.b16 %v1550, %v1549
        %v1557 = vpack.c.b16 %v1552, %v1551
        %v1558 = vpack.c.b16 %v1554, %v1553
        %v1579 = vunpack.c.l.b16 %v1531
        %v1580 = vunpack.c.l.b16 %v1532
        %v1581 = vunpack.c.l.b16 %v1533
        %v1582 = vunpack.c.l.b16 %v1534
        %v1583 = vunpack.c.l.b16 %v1535
        %v1584 = vunpack.c.l.b16 %v1536
        %v1585 = vunpack.c.l.b16 %v1537
        %v1586 = vunpack.c.l.b16 %v1538
        %v1587 = vunpack.c.l.b16 %v1539
        %v1588 = vunpack.c.l.b16 %v1540
        %v1589 = vunpack.c.l.b16 %v1541
        %v1590 = vunpack.c.l.b16 %v1542
        %v1591 = vunpack.c.l.b16 %v1543
        %v1592 = vunpack.c.l.b16 %v1544
        %v1593 = vunpack.c.l.b16 %v1545
        %v1594 = vunpack.c.l.b16 %v1546
        %v1595 = vpack.c.b16 %v1580, %v1579
        %v1596 = vpack.c.b16 %v1582, %v1581
        %v1597 = vpack.c.b16 %v1584, %v1583
        %v1598 = vpack.c.b16 %v1586, %v1585
        %v1599 = vpack.c.b16 %v1588, %v1587
        %v1600 = vpack.c.b16 %v1590, %v1589
        %v1601 = vpack.c.b16 %v1592, %v1591
        %v1602 = vpack.c.b16 %v1594, %v1593
        %1611 = vmatprep.subr.bf16.mxu0 0
        %1612 = vmatpush1.bf16.msra.mxu0 %v1602
        %1613 = vmatprep.subr.bf16.mxu0 0
        %1614 = vmatpush1.bf16.msra.mxu0 %v1601
        %1615 = vmatprep.subr.bf16.mxu0 0
        %1616 = vmatpush1.bf16.msra.mxu0 %v1600
        %1617 = vmatprep.subr.bf16.mxu0 0
        %1618 = vmatpush1.bf16.msra.mxu0 %v1599
        %1619 = vmatprep.subr.bf16.mxu0 0
        %1620 = vmatpush1.bf16.msra.mxu0 %v1598
        %1621 = vmatprep.subr.bf16.mxu0 0
        %1622 = vmatpush1.bf16.msra.mxu0 %v1597
        %1623 = vmatprep.subr.bf16.mxu0 0
        %1624 = vmatpush1.bf16.msra.mxu0 %v1596
        %1625 = vmatprep.subr.bf16.mxu0 0
        %1626 = vmatpush1.bf16.msra.mxu0 %v1595
        %1627 = vmatprep.subr.bf16.mxu0 0
        %1628 = vmatpush2.bf16.msra.mxu0 0
        %1629 = vmatprep.subr.bf16.mxu0 0
        %1630 = vmatpush2.bf16.msra.mxu0 0
        %1631 = vmatprep.subr.bf16.mxu0 0
        %1632 = vmatpush2.bf16.msra.mxu0 0
        %1633 = vmatprep.subr.bf16.mxu0 0
        %1634 = vmatpush2.bf16.msra.mxu0 0
        %1635 = vmatprep.subr.bf16.mxu0 0
        %1636 = vmatpush2.bf16.msra.mxu0 0
        %1637 = vmatprep.subr.bf16.mxu0 0
        %1638 = vmatpush2.bf16.msra.mxu0 0
        %1639 = vmatprep.subr.bf16.mxu0 0
        %1640 = vmatpush2.bf16.msra.mxu0 0
        %1641 = vmatprep.subr.bf16.mxu0 0
        %1642 = vmatpush2.bf16.msra.mxu0 0
        %1643 = vmatprep.mubr.bf16.mxu0 0
        %1644 = vmatmul.mubr.bf16.gmra.mxu0 %v1555
        %v1645 = vpop.f32.mrf.mxu0
        %v1646 = vadd.f32 0.0, %v1645
        %v1647 = vpop.f32.mrf.mxu0
        %v1648 = vpop.f32.mrf.mxu0
        %v1649 = vadd.f32 0.0, %v1648
        %v1650 = vpop.f32.mrf.mxu0
        %1651 = vmatprep.mubr.bf16.mxu0 0
        %1652 = vmatmul.mubr.bf16.gmra.mxu0 %v1556
        %v1653 = vpop.f32.mrf.mxu0
        %v1654 = vadd.f32 0.0, %v1653
        %v1655 = vpop.f32.mrf.mxu0
        %v1656 = vpop.f32.mrf.mxu0
        %v1657 = vadd.f32 0.0, %v1656
        %v1658 = vpop.f32.mrf.mxu0
        %1659 = vmatprep.mubr.bf16.mxu0 0
        %1660 = vmatmul.mubr.bf16.gmra.mxu0 %v1557
        %v1661 = vpop.f32.mrf.mxu0
        %v1662 = vadd.f32 0.0, %v1661
        %v1663 = vpop.f32.mrf.mxu0
        %v1664 = vpop.f32.mrf.mxu0
        %v1665 = vadd.f32 0.0, %v1664
        %v1666 = vpop.f32.mrf.mxu0
        %1667 = vmatprep.mubr.bf16.mxu0 0
        %1668 = vmatmul.mubr.bf16.gmra.mxu0 %v1558
        %v1669 = vpop.f32.mrf.mxu0
        %v1670 = vadd.f32 0.0, %v1669
        %v1671 = vpop.f32.mrf.mxu0
        %v1672 = vpop.f32.mrf.mxu0
        %v1673 = vadd.f32 0.0, %v1672
        %v1674 = vpop.f32.mrf.mxu0
        %1675 = vdwg.mxu0
        %v1676 = vadd.f32 %v1490, %v1646
        %v1677 = vadd.f32 %v1491, %v1649
        %v1678 = vadd.f32 %v1492, %v1654
        %v1679 = vadd.f32 %v1493, %v1657
        %v1680 = vadd.f32 %v1494, %v1662
        %v1681 = vadd.f32 %v1495, %v1665
        %v1682 = vadd.f32 %v1496, %v1670
        %v1683 = vadd.f32 %v1497, %v1673
        %s1684 = scalar_lea.vmem [#allocation2], 64
        %v1685 = vld [vmem:[%s1684] sm:$0xff]
        %v1686 = vld [vmem:[%s1684 + $0x8] sm:$0xf]
        %v1687 = vld [vmem:[%s1684 + $0x10] sm:$0xff]
        %v1688 = vld [vmem:[%s1684 + $0x18] sm:$0xf]
        %v1689 = vld [vmem:[%s1684 + $0x20] sm:$0xff]
        %v1690 = vld [vmem:[%s1684 + $0x28] sm:$0xf]
        %v1691 = vld [vmem:[%s1684 + $0x30] sm:$0xff]
        %v1692 = vld [vmem:[%s1684 + $0x38] sm:$0xf]
        %v1693 = vld [vmem:[%s1684 + $0x40] sm:$0xff]
        %v1694 = vld [vmem:[%s1684 + $0x48] sm:$0xf]
        %v1695 = vld [vmem:[%s1684 + $0x50] sm:$0xff]
        %v1696 = vld [vmem:[%s1684 + $0x58] sm:$0xf]
        %v1697 = vld [vmem:[%s1684 + $0x60] sm:$0xff]
        %v1698 = vld [vmem:[%s1684 + $0x68] sm:$0xf]
        %v1699 = vld [vmem:[%s1684 + $0x70] sm:$0xff]
        %v1700 = vld [vmem:[%s1684 + $0x78] sm:$0xf]
        %v1701 = vpack.c.bf16 %v1686, %v1685
        %v1702 = vpack.c.bf16 %v1688, %v1687
        %v1703 = vpack.c.bf16 %v1690, %v1689
        %v1704 = vpack.c.bf16 %v1692, %v1691
        %v1705 = vpack.c.bf16 %v1694, %v1693
        %v1706 = vpack.c.bf16 %v1696, %v1695
        %v1707 = vpack.c.bf16 %v1698, %v1697
        %v1708 = vpack.c.bf16 %v1700, %v1699
        %s1709 = scalar_lea.vmem [#allocation8], 384
        %v1710 = vld [vmem:[%s1709] sm:$0xf]
        %v1711 = vld [vmem:[%s1709 + $0x4] sm:$0xf]
        %v1712 = vld [vmem:[%s1709 + $0x8] sm:$0xf]
        %v1713 = vld [vmem:[%s1709 + $0xc] sm:$0xf]
        %v1714 = vld [vmem:[%s1709 + $0x10] sm:$0xf]
        %v1715 = vld [vmem:[%s1709 + $0x14] sm:$0xf]
        %v1716 = vld [vmem:[%s1709 + $0x18] sm:$0xf]
        %v1717 = vld [vmem:[%s1709 + $0x1c] sm:$0xf]
        %v1718 = vld [vmem:[%s1709 + $0x20] sm:$0xf]
        %v1719 = vld [vmem:[%s1709 + $0x24] sm:$0xf]
        %v1720 = vld [vmem:[%s1709 + $0x28] sm:$0xf]
        %v1721 = vld [vmem:[%s1709 + $0x2c] sm:$0xf]
        %v1722 = vld [vmem:[%s1709 + $0x30] sm:$0xf]
        %v1723 = vld [vmem:[%s1709 + $0x34] sm:$0xf]
        %v1724 = vld [vmem:[%s1709 + $0x38] sm:$0xf]
        %v1725 = vld [vmem:[%s1709 + $0x3c] sm:$0xf]
        %v1734 = vunpack.c.l.b16 %v1701
        %v1735 = vunpack.c.l.b16 %v1702
        %v1736 = vunpack.c.l.b16 %v1703
        %v1737 = vunpack.c.l.b16 %v1704
        %v1738 = vunpack.c.l.b16 %v1705
        %v1739 = vunpack.c.l.b16 %v1706
        %v1740 = vunpack.c.l.b16 %v1707
        %v1741 = vunpack.c.l.b16 %v1708
        %v1742 = vpack.c.b16 %v1735, %v1734
        %v1743 = vpack.c.b16 %v1737, %v1736
        %v1744 = vpack.c.b16 %v1739, %v1738
        %v1745 = vpack.c.b16 %v1741, %v1740
        %v1766 = vunpack.c.l.b16 %v1710
        %v1767 = vunpack.c.l.b16 %v1711
        %v1768 = vunpack.c.l.b16 %v1712
        %v1769 = vunpack.c.l.b16 %v1713
        %v1770 = vunpack.c.l.b16 %v1714
        %v1771 = vunpack.c.l.b16 %v1715
        %v1772 = vunpack.c.l.b16 %v1716
        %v1773 = vunpack.c.l.b16 %v1717
        %v1774 = vunpack.c.l.b16 %v1718
        %v1775 = vunpack.c.l.b16 %v1719
        %v1776 = vunpack.c.l.b16 %v1720
        %v1777 = vunpack.c.l.b16 %v1721
        %v1778 = vunpack.c.l.b16 %v1722
        %v1779 = vunpack.c.l.b16 %v1723
        %v1780 = vunpack.c.l.b16 %v1724
        %v1781 = vunpack.c.l.b16 %v1725
        %v1782 = vpack.c.b16 %v1767, %v1766
        %v1783 = vpack.c.b16 %v1769, %v1768
        %v1784 = vpack.c.b16 %v1771, %v1770
        %v1785 = vpack.c.b16 %v1773, %v1772
        %v1786 = vpack.c.b16 %v1775, %v1774
        %v1787 = vpack.c.b16 %v1777, %v1776
        %v1788 = vpack.c.b16 %v1779, %v1778
        %v1789 = vpack.c.b16 %v1781, %v1780
        %1798 = vmatprep.subr.bf16.mxu0 0
        %1799 = vmatpush1.bf16.msra.mxu0 %v1789
        %1800 = vmatprep.subr.bf16.mxu0 0
        %1801 = vmatpush1.bf16.msra.mxu0 %v1788
        %1802 = vmatprep.subr.bf16.mxu0 0
        %1803 = vmatpush1.bf16.msra.mxu0 %v1787
        %1804 = vmatprep.subr.bf16.mxu0 0
        %1805 = vmatpush1.bf16.msra.mxu0 %v1786
        %1806 = vmatprep.subr.bf16.mxu0 0
        %1807 = vmatpush1.bf16.msra.mxu0 %v1785
        %1808 = vmatprep.subr.bf16.mxu0 0
        %1809 = vmatpush1.bf16.msra.mxu0 %v1784
        %1810 = vmatprep.subr.bf16.mxu0 0
        %1811 = vmatpush1.bf16.msra.mxu0 %v1783
        %1812 = vmatprep.subr.bf16.mxu0 0
        %1813 = vmatpush1.bf16.msra.mxu0 %v1782
        %1814 = vmatprep.subr.bf16.mxu0 0
        %1815 = vmatpush2.bf16.msra.mxu0 0
        %1816 = vmatprep.subr.bf16.mxu0 0
        %1817 = vmatpush2.bf16.msra.mxu0 0
        %1818 = vmatprep.subr.bf16.mxu0 0
        %1819 = vmatpush2.bf16.msra.mxu0 0
        %1820 = vmatprep.subr.bf16.mxu0 0
        %1821 = vmatpush2.bf16.msra.mxu0 0
        %1822 = vmatprep.subr.bf16.mxu0 0
        %1823 = vmatpush2.bf16.msra.mxu0 0
        %1824 = vmatprep.subr.bf16.mxu0 0
        %1825 = vmatpush2.bf16.msra.mxu0 0
        %1826 = vmatprep.subr.bf16.mxu0 0
        %1827 = vmatpush2.bf16.msra.mxu0 0
        %1828 = vmatprep.subr.bf16.mxu0 0
        %1829 = vmatpush2.bf16.msra.mxu0 0
        %1830 = vmatprep.mubr.bf16.mxu0 0
        %1831 = vmatmul.mubr.bf16.gmra.mxu0 %v1742
        %v1832 = vpop.f32.mrf.mxu0
        %v1833 = vadd.f32 0.0, %v1832
        %v1834 = vpop.f32.mrf.mxu0
        %v1835 = vpop.f32.mrf.mxu0
        %v1836 = vadd.f32 0.0, %v1835
        %v1837 = vpop.f32.mrf.mxu0
        %1838 = vmatprep.mubr.bf16.mxu0 0
        %1839 = vmatmul.mubr.bf16.gmra.mxu0 %v1743
        %v1840 = vpop.f32.mrf.mxu0
        %v1841 = vadd.f32 0.0, %v1840
        %v1842 = vpop.f32.mrf.mxu0
        %v1843 = vpop.f32.mrf.mxu0
        %v1844 = vadd.f32 0.0, %v1843
        %v1845 = vpop.f32.mrf.mxu0
        %1846 = vmatprep.mubr.bf16.mxu0 0
        %1847 = vmatmul.mubr.bf16.gmra.mxu0 %v1744
        %v1848 = vpop.f32.mrf.mxu0
        %v1849 = vadd.f32 0.0, %v1848
        %v1850 = vpop.f32.mrf.mxu0
        %v1851 = vpop.f32.mrf.mxu0
        %v1852 = vadd.f32 0.0, %v1851
        %v1853 = vpop.f32.mrf.mxu0
        %1854 = vmatprep.mubr.bf16.mxu0 0
        %1855 = vmatmul.mubr.bf16.gmra.mxu0 %v1745
        %v1856 = vpop.f32.mrf.mxu0
        %v1857 = vadd.f32 0.0, %v1856
        %v1858 = vpop.f32.mrf.mxu0
        %v1859 = vpop.f32.mrf.mxu0
        %v1860 = vadd.f32 0.0, %v1859
        %v1861 = vpop.f32.mrf.mxu0
        %1862 = vdwg.mxu0
        %v1863 = vadd.f32 %v1676, %v1833
        %v1864 = vadd.f32 %v1677, %v1836
        %v1865 = vadd.f32 %v1678, %v1841
        %v1866 = vadd.f32 %v1679, %v1844
        %v1867 = vadd.f32 %v1680, %v1849
        %v1868 = vadd.f32 %v1681, %v1852
        %v1869 = vadd.f32 %v1682, %v1857
        %v1870 = vadd.f32 %v1683, %v1860
        %v1871 = vunpack.c.h.b16 %v1701
        %v1872 = vunpack.c.h.b16 %v1702
        %v1873 = vunpack.c.h.b16 %v1703
        %v1874 = vunpack.c.h.b16 %v1704
        %v1875 = vunpack.c.h.b16 %v1705
        %v1876 = vunpack.c.h.b16 %v1706
        %v1877 = vunpack.c.h.b16 %v1707
        %v1878 = vunpack.c.h.b16 %v1708
        %v1879 = vpack.c.b16 %v1734, %v1734
        %v1880 = vpack.c.b16 %v1871, %v1871
        %v1881 = vpack.c.b16 %v1735, %v1735
        %v1882 = vpack.c.b16 %v1872, %v1872
        %v1883 = vpack.c.b16 %v1736, %v1736
        %v1884 = vpack.c.b16 %v1873, %v1873
        %v1885 = vpack.c.b16 %v1737, %v1737
        %v1886 = vpack.c.b16 %v1874, %v1874
        %v1887 = vpack.c.b16 %v1738, %v1738
        %v1888 = vpack.c.b16 %v1875, %v1875
        %v1889 = vpack.c.b16 %v1739, %v1739
        %v1890 = vpack.c.b16 %v1876, %v1876
        %v1891 = vpack.c.b16 %v1740, %v1740
        %v1892 = vpack.c.b16 %v1877, %v1877
        %v1893 = vpack.c.b16 %v1741, %v1741
        %v1894 = vpack.c.b16 %v1878, %v1878
        %v1895 = vrot.slane %v1879, 5
        %v1896 = vrot.slane %v1895, 4
        %v1897 = vrot.slane %v1880, 5
        %v1898 = vsel %vm613, %v1896, %v1897
        %v1899 = vrot.slane %v1881, 5
        %v1900 = vrot.slane %v1899, 4
        %v1901 = vrot.slane %v1882, 5
        %v1902 = vsel %vm613, %v1900, %v1901
        %v1903 = vrot.slane %v1883, 5
        %v1904 = vrot.slane %v1903, 4
        %v1905 = vrot.slane %v1884, 5
        %v1906 = vsel %vm613, %v1904, %v1905
        %v1907 = vrot.slane %v1885, 5
        %v1908 = vrot.slane %v1907, 4
        %v1909 = vrot.slane %v1886, 5
        %v1910 = vsel %vm613, %v1908, %v1909
        %v1911 = vrot.slane %v1887, 5
        %v1912 = vrot.slane %v1911, 4
        %v1913 = vrot.slane %v1888, 5
        %v1914 = vsel %vm613, %v1912, %v1913
        %v1915 = vrot.slane %v1889, 5
        %v1916 = vrot.slane %v1915, 4
        %v1917 = vrot.slane %v1890, 5
        %v1918 = vsel %vm613, %v1916, %v1917
        %v1919 = vrot.slane %v1891, 5
        %v1920 = vrot.slane %v1919, 4
        %v1921 = vrot.slane %v1892, 5
        %v1922 = vsel %vm613, %v1920, %v1921
        %v1923 = vrot.slane %v1893, 5
        %v1924 = vrot.slane %v1923, 4
        %v1925 = vrot.slane %v1894, 5
        %v1926 = vsel %vm613, %v1924, %v1925
        %s1927 = scalar_lea.vmem [#allocation8], 448
        %v1928 = vld [vmem:[%s1927] sm:$0xf]
        %v1929 = vld [vmem:[%s1927 + $0x4] sm:$0xf]
        %v1930 = vld [vmem:[%s1927 + $0x8] sm:$0xf]
        %v1931 = vld [vmem:[%s1927 + $0xc] sm:$0xf]
        %v1932 = vld [vmem:[%s1927 + $0x10] sm:$0xf]
        %v1933 = vld [vmem:[%s1927 + $0x14] sm:$0xf]
        %v1934 = vld [vmem:[%s1927 + $0x18] sm:$0xf]
        %v1935 = vld [vmem:[%s1927 + $0x1c] sm:$0xf]
        %v1936 = vld [vmem:[%s1927 + $0x20] sm:$0xf]
        %v1937 = vld [vmem:[%s1927 + $0x24] sm:$0xf]
        %v1938 = vld [vmem:[%s1927 + $0x28] sm:$0xf]
        %v1939 = vld [vmem:[%s1927 + $0x2c] sm:$0xf]
        %v1940 = vld [vmem:[%s1927 + $0x30] sm:$0xf]
        %v1941 = vld [vmem:[%s1927 + $0x34] sm:$0xf]
        %v1942 = vld [vmem:[%s1927 + $0x38] sm:$0xf]
        %v1943 = vld [vmem:[%s1927 + $0x3c] sm:$0xf]
        %v1944 = vunpack.c.l.b16 %v1898
        %v1945 = vunpack.c.l.b16 %v1902
        %v1946 = vunpack.c.l.b16 %v1906
        %v1947 = vunpack.c.l.b16 %v1910
        %v1948 = vunpack.c.l.b16 %v1914
        %v1949 = vunpack.c.l.b16 %v1918
        %v1950 = vunpack.c.l.b16 %v1922
        %v1951 = vunpack.c.l.b16 %v1926
        %v1952 = vpack.c.b16 %v1945, %v1944
        %v1953 = vpack.c.b16 %v1947, %v1946
        %v1954 = vpack.c.b16 %v1949, %v1948
        %v1955 = vpack.c.b16 %v1951, %v1950
        %v1976 = vunpack.c.l.b16 %v1928
        %v1977 = vunpack.c.l.b16 %v1929
        %v1978 = vunpack.c.l.b16 %v1930
        %v1979 = vunpack.c.l.b16 %v1931
        %v1980 = vunpack.c.l.b16 %v1932
        %v1981 = vunpack.c.l.b16 %v1933
        %v1982 = vunpack.c.l.b16 %v1934
        %v1983 = vunpack.c.l.b16 %v1935
        %v1984 = vunpack.c.l.b16 %v1936
        %v1985 = vunpack.c.l.b16 %v1937
        %v1986 = vunpack.c.l.b16 %v1938
        %v1987 = vunpack.c.l.b16 %v1939
        %v1988 = vunpack.c.l.b16 %v1940
        %v1989 = vunpack.c.l.b16 %v1941
        %v1990 = vunpack.c.l.b16 %v1942
        %v1991 = vunpack.c.l.b16 %v1943
        %v1992 = vpack.c.b16 %v1977, %v1976
        %v1993 = vpack.c.b16 %v1979, %v1978
        %v1994 = vpack.c.b16 %v1981, %v1980
        %v1995 = vpack.c.b16 %v1983, %v1982
        %v1996 = vpack.c.b16 %v1985, %v1984
        %v1997 = vpack.c.b16 %v1987, %v1986
        %v1998 = vpack.c.b16 %v1989, %v1988
        %v1999 = vpack.c.b16 %v1991, %v1990
        %2008 = vmatprep.subr.bf16.mxu0 0
        %2009 = vmatpush1.bf16.msra.mxu0 %v1999
        %2010 = vmatprep.subr.bf16.mxu0 0
        %2011 = vmatpush1.bf16.msra.mxu0 %v1998
        %2012 = vmatprep.subr.bf16.mxu0 0
        %2013 = vmatpush1.bf16.msra.mxu0 %v1997
        %2014 = vmatprep.subr.bf16.mxu0 0
        %2015 = vmatpush1.bf16.msra.mxu0 %v1996
        %2016 = vmatprep.subr.bf16.mxu0 0
        %2017 = vmatpush1.bf16.msra.mxu0 %v1995
        %2018 = vmatprep.subr.bf16.mxu0 0
        %2019 = vmatpush1.bf16.msra.mxu0 %v1994
        %2020 = vmatprep.subr.bf16.mxu0 0
        %2021 = vmatpush1.bf16.msra.mxu0 %v1993
        %2022 = vmatprep.subr.bf16.mxu0 0
        %2023 = vmatpush1.bf16.msra.mxu0 %v1992
        %2024 = vmatprep.subr.bf16.mxu0 0
        %2025 = vmatpush2.bf16.msra.mxu0 0
        %2026 = vmatprep.subr.bf16.mxu0 0
        %2027 = vmatpush2.bf16.msra.mxu0 0
        %2028 = vmatprep.subr.bf16.mxu0 0
        %2029 = vmatpush2.bf16.msra.mxu0 0
        %2030 = vmatprep.subr.bf16.mxu0 0
        %2031 = vmatpush2.bf16.msra.mxu0 0
        %2032 = vmatprep.subr.bf16.mxu0 0
        %2033 = vmatpush2.bf16.msra.mxu0 0
        %2034 = vmatprep.subr.bf16.mxu0 0
        %2035 = vmatpush2.bf16.msra.mxu0 0
        %2036 = vmatprep.subr.bf16.mxu0 0
        %2037 = vmatpush2.bf16.msra.mxu0 0
        %2038 = vmatprep.subr.bf16.mxu0 0
        %2039 = vmatpush2.bf16.msra.mxu0 0
        %2040 = vmatprep.mubr.bf16.mxu0 0
        %2041 = vmatmul.mubr.bf16.gmra.mxu0 %v1952
        %v2042 = vpop.f32.mrf.mxu0
        %v2043 = vadd.f32 0.0, %v2042
        %v2044 = vpop.f32.mrf.mxu0
        %v2045 = vpop.f32.mrf.mxu0
        %v2046 = vadd.f32 0.0, %v2045
        %v2047 = vpop.f32.mrf.mxu0
        %2048 = vmatprep.mubr.bf16.mxu0 0
        %2049 = vmatmul.mubr.bf16.gmra.mxu0 %v1953
        %v2050 = vpop.f32.mrf.mxu0
        %v2051 = vadd.f32 0.0, %v2050
        %v2052 = vpop.f32.mrf.mxu0
        %v2053 = vpop.f32.mrf.mxu0
        %v2054 = vadd.f32 0.0, %v2053
        %v2055 = vpop.f32.mrf.mxu0
        %2056 = vmatprep.mubr.bf16.mxu0 0
        %2057 = vmatmul.mubr.bf16.gmra.mxu0 %v1954
        %v2058 = vpop.f32.mrf.mxu0
        %v2059 = vadd.f32 0.0, %v2058
        %v2060 = vpop.f32.mrf.mxu0
        %v2061 = vpop.f32.mrf.mxu0
        %v2062 = vadd.f32 0.0, %v2061
        %v2063 = vpop.f32.mrf.mxu0
        %2064 = vmatprep.mubr.bf16.mxu0 0
        %2065 = vmatmul.mubr.bf16.gmra.mxu0 %v1955
        %v2066 = vpop.f32.mrf.mxu0
        %v2067 = vadd.f32 0.0, %v2066
        %v2068 = vpop.f32.mrf.mxu0
        %v2069 = vpop.f32.mrf.mxu0
        %v2070 = vadd.f32 0.0, %v2069
        %v2071 = vpop.f32.mrf.mxu0
        %2072 = vdwg.mxu0
        %v2073 = vadd.f32 %v1863, %v2043
        %v2074 = vadd.f32 %v1864, %v2046
        %v2075 = vadd.f32 %v1865, %v2051
        %v2076 = vadd.f32 %v1866, %v2054
        %v2077 = vadd.f32 %v1867, %v2059
        %v2078 = vadd.f32 %v1868, %v2062
        %v2079 = vadd.f32 %v1869, %v2067
        %v2080 = vadd.f32 %v1870, %v2070
        %v2081 = vrot.slane %v1879, 6
        %v2082 = vrot.slane %v2081, 4
        %v2083 = vrot.slane %v1880, 6
        %v2084 = vsel %vm915, %v2082, %v2083
        %v2085 = vrot.slane %v1881, 6
        %v2086 = vrot.slane %v2085, 4
        %v2087 = vrot.slane %v1882, 6
        %v2088 = vsel %vm915, %v2086, %v2087
        %v2089 = vrot.slane %v1883, 6
        %v2090 = vrot.slane %v2089, 4
        %v2091 = vrot.slane %v1884, 6
        %v2092 = vsel %vm915, %v2090, %v2091
        %v2093 = vrot.slane %v1885, 6
        %v2094 = vrot.slane %v2093, 4
        %v2095 = vrot.slane %v1886, 6
        %v2096 = vsel %vm915, %v2094, %v2095
        %v2097 = vrot.slane %v1887, 6
        %v2098 = vrot.slane %v2097, 4
        %v2099 = vrot.slane %v1888, 6
        %v2100 = vsel %vm915, %v2098, %v2099
        %v2101 = vrot.slane %v1889, 6
        %v2102 = vrot.slane %v2101, 4
        %v2103 = vrot.slane %v1890, 6
        %v2104 = vsel %vm915, %v2102, %v2103
        %v2105 = vrot.slane %v1891, 6
        %v2106 = vrot.slane %v2105, 4
        %v2107 = vrot.slane %v1892, 6
        %v2108 = vsel %vm915, %v2106, %v2107
        %v2109 = vrot.slane %v1893, 6
        %v2110 = vrot.slane %v2109, 4
        %v2111 = vrot.slane %v1894, 6
        %v2112 = vsel %vm915, %v2110, %v2111
        %s2113 = scalar_lea.vmem [#allocation8], 512
        %v2114 = vld [vmem:[%s2113] sm:$0xf]
        %v2115 = vld [vmem:[%s2113 + $0x4] sm:$0xf]
        %v2116 = vld [vmem:[%s2113 + $0x8] sm:$0xf]
        %v2117 = vld [vmem:[%s2113 + $0xc] sm:$0xf]
        %v2118 = vld [vmem:[%s2113 + $0x10] sm:$0xf]
        %v2119 = vld [vmem:[%s2113 + $0x14] sm:$0xf]
        %v2120 = vld [vmem:[%s2113 + $0x18] sm:$0xf]
        %v2121 = vld [vmem:[%s2113 + $0x1c] sm:$0xf]
        %v2122 = vld [vmem:[%s2113 + $0x20] sm:$0xf]
        %v2123 = vld [vmem:[%s2113 + $0x24] sm:$0xf]
        %v2124 = vld [vmem:[%s2113 + $0x28] sm:$0xf]
        %v2125 = vld [vmem:[%s2113 + $0x2c] sm:$0xf]
        %v2126 = vld [vmem:[%s2113 + $0x30] sm:$0xf]
        %v2127 = vld [vmem:[%s2113 + $0x34] sm:$0xf]
        %v2128 = vld [vmem:[%s2113 + $0x38] sm:$0xf]
        %v2129 = vld [vmem:[%s2113 + $0x3c] sm:$0xf]
        %v2130 = vunpack.c.l.b16 %v2084
        %v2131 = vunpack.c.l.b16 %v2088
        %v2132 = vunpack.c.l.b16 %v2092
        %v2133 = vunpack.c.l.b16 %v2096
        %v2134 = vunpack.c.l.b16 %v2100
        %v2135 = vunpack.c.l.b16 %v2104
        %v2136 = vunpack.c.l.b16 %v2108
        %v2137 = vunpack.c.l.b16 %v2112
        %v2138 = vpack.c.b16 %v2131, %v2130
        %v2139 = vpack.c.b16 %v2133, %v2132
        %v2140 = vpack.c.b16 %v2135, %v2134
        %v2141 = vpack.c.b16 %v2137, %v2136
        %v2162 = vunpack.c.l.b16 %v2114
        %v2163 = vunpack.c.l.b16 %v2115
        %v2164 = vunpack.c.l.b16 %v2116
        %v2165 = vunpack.c.l.b16 %v2117
        %v2166 = vunpack.c.l.b16 %v2118
        %v2167 = vunpack.c.l.b16 %v2119
        %v2168 = vunpack.c.l.b16 %v2120
        %v2169 = vunpack.c.l.b16 %v2121
        %v2170 = vunpack.c.l.b16 %v2122
        %v2171 = vunpack.c.l.b16 %v2123
        %v2172 = vunpack.c.l.b16 %v2124
        %v2173 = vunpack.c.l.b16 %v2125
        %v2174 = vunpack.c.l.b16 %v2126
        %v2175 = vunpack.c.l.b16 %v2127
        %v2176 = vunpack.c.l.b16 %v2128
        %v2177 = vunpack.c.l.b16 %v2129
        %v2178 = vpack.c.b16 %v2163, %v2162
        %v2179 = vpack.c.b16 %v2165, %v2164
        %v2180 = vpack.c.b16 %v2167, %v2166
        %v2181 = vpack.c.b16 %v2169, %v2168
        %v2182 = vpack.c.b16 %v2171, %v2170
        %v2183 = vpack.c.b16 %v2173, %v2172
        %v2184 = vpack.c.b16 %v2175, %v2174
        %v2185 = vpack.c.b16 %v2177, %v2176
        %2194 = vmatprep.subr.bf16.mxu0 0
        %2195 = vmatpush1.bf16.msra.mxu0 %v2185
        %2196 = vmatprep.subr.bf16.mxu0 0
        %2197 = vmatpush1.bf16.msra.mxu0 %v2184
        %2198 = vmatprep.subr.bf16.mxu0 0
        %2199 = vmatpush1.bf16.msra.mxu0 %v2183
        %2200 = vmatprep.subr.bf16.mxu0 0
        %2201 = vmatpush1.bf16.msra.mxu0 %v2182
        %2202 = vmatprep.subr.bf16.mxu0 0
        %2203 = vmatpush1.bf16.msra.mxu0 %v2181
        %2204 = vmatprep.subr.bf16.mxu0 0
        %2205 = vmatpush1.bf16.msra.mxu0 %v2180
        %2206 = vmatprep.subr.bf16.mxu0 0
        %2207 = vmatpush1.bf16.msra.mxu0 %v2179
        %2208 = vmatprep.subr.bf16.mxu0 0
        %2209 = vmatpush1.bf16.msra.mxu0 %v2178
        %2210 = vmatprep.subr.bf16.mxu0 0
        %2211 = vmatpush2.bf16.msra.mxu0 0
        %2212 = vmatprep.subr.bf16.mxu0 0
        %2213 = vmatpush2.bf16.msra.mxu0 0
        %2214 = vmatprep.subr.bf16.mxu0 0
        %2215 = vmatpush2.bf16.msra.mxu0 0
        %2216 = vmatprep.subr.bf16.mxu0 0
        %2217 = vmatpush2.bf16.msra.mxu0 0
        %2218 = vmatprep.subr.bf16.mxu0 0
        %2219 = vmatpush2.bf16.msra.mxu0 0
        %2220 = vmatprep.subr.bf16.mxu0 0
        %2221 = vmatpush2.bf16.msra.mxu0 0
        %2222 = vmatprep.subr.bf16.mxu0 0
        %2223 = vmatpush2.bf16.msra.mxu0 0
        %2224 = vmatprep.subr.bf16.mxu0 0
        %2225 = vmatpush2.bf16.msra.mxu0 0
        %2226 = vmatprep.mubr.bf16.mxu0 0
        %2227 = vmatmul.mubr.bf16.gmra.mxu0 %v2138
        %v2228 = vpop.f32.mrf.mxu0
        %v2229 = vadd.f32 0.0, %v2228
        %v2230 = vpop.f32.mrf.mxu0
        %v2231 = vpop.f32.mrf.mxu0
        %v2232 = vadd.f32 0.0, %v2231
        %v2233 = vpop.f32.mrf.mxu0
        %2234 = vmatprep.mubr.bf16.mxu0 0
        %2235 = vmatmul.mubr.bf16.gmra.mxu0 %v2139
        %v2236 = vpop.f32.mrf.mxu0
        %v2237 = vadd.f32 0.0, %v2236
        %v2238 = vpop.f32.mrf.mxu0
        %v2239 = vpop.f32.mrf.mxu0
        %v2240 = vadd.f32 0.0, %v2239
        %v2241 = vpop.f32.mrf.mxu0
        %2242 = vmatprep.mubr.bf16.mxu0 0
        %2243 = vmatmul.mubr.bf16.gmra.mxu0 %v2140
        %v2244 = vpop.f32.mrf.mxu0
        %v2245 = vadd.f32 0.0, %v2244
        %v2246 = vpop.f32.mrf.mxu0
        %v2247 = vpop.f32.mrf.mxu0
        %v2248 = vadd.f32 0.0, %v2247
        %v2249 = vpop.f32.mrf.mxu0
        %2250 = vmatprep.mubr.bf16.mxu0 0
        %2251 = vmatmul.mubr.bf16.gmra.mxu0 %v2141
        %v2252 = vpop.f32.mrf.mxu0
        %v2253 = vadd.f32 0.0, %v2252
        %v2254 = vpop.f32.mrf.mxu0
        %v2255 = vpop.f32.mrf.mxu0
        %v2256 = vadd.f32 0.0, %v2255
        %v2257 = vpop.f32.mrf.mxu0
        %2258 = vdwg.mxu0
        %v2259 = vadd.f32 %v2073, %v2229
        %v2260 = vadd.f32 %v2074, %v2232
        %v2261 = vadd.f32 %v2075, %v2237
        %v2262 = vadd.f32 %v2076, %v2240
        %v2263 = vadd.f32 %v2077, %v2245
        %v2264 = vadd.f32 %v2078, %v2248
        %v2265 = vadd.f32 %v2079, %v2253
        %v2266 = vadd.f32 %v2080, %v2256
        %v2267 = vld [vmem:[%s4] sm:$0x1]
        %v2269 = vlaneseq
        %v2270 = vshrl.u32 %v2269, 7
        %v2271 = vsub.s32 0, %v2270
        %v2272 = vrot.slane %v2267, %v2271
        %v2274 = vadd.f32 %v2259, %v2272
        %v2275 = vadd.f32 %v2260, %v2272
        %v2276 = vadd.f32 %v2261, %v2272
        %v2277 = vadd.f32 %v2262, %v2272
        %v2278 = vadd.f32 %v2263, %v2272
        %v2279 = vadd.f32 %v2264, %v2272
        %v2280 = vadd.f32 %v2265, %v2272
        %v2281 = vadd.f32 %v2266, %v2272
        %v2282 = vmax.f32 %v2274, 0.0
        %v2283 = vmax.f32 %v2275, 0.0
        %v2284 = vmax.f32 %v2276, 0.0
        %v2285 = vmax.f32 %v2277, 0.0
        %v2286 = vmax.f32 %v2278, 0.0
        %v2287 = vmax.f32 %v2279, 0.0
        %v2288 = vmax.f32 %v2280, 0.0
        %v2289 = vmax.f32 %v2281, 0.0
        %v2290 = vpack.c.bf16 %v2283, %v2282
        %v2291 = vpack.c.bf16 %v2285, %v2284
        %v2292 = vpack.c.bf16 %v2287, %v2286
        %v2293 = vpack.c.bf16 %v2289, %v2288
        %v2294 = vld [vmem:[#allocation9] sm:$0xf]
        %v2295 = vld [vmem:[#allocation9 + $0x4] sm:$0xf]
        %v2296 = vld [vmem:[#allocation9 + $0x8] sm:$0xf]
        %v2297 = vld [vmem:[#allocation9 + $0xc] sm:$0xf]
        %v2298 = vld [vmem:[#allocation9 + $0x10] sm:$0xf]
        %v2299 = vld [vmem:[#allocation9 + $0x14] sm:$0xf]
        %v2300 = vld [vmem:[#allocation9 + $0x18] sm:$0xf]
        %v2301 = vld [vmem:[#allocation9 + $0x1c] sm:$0xf]
        %v2302 = vld [vmem:[#allocation9 + $0x20] sm:$0xf]
        %v2303 = vld [vmem:[#allocation9 + $0x24] sm:$0xf]
        %v2304 = vld [vmem:[#allocation9 + $0x28] sm:$0xf]
        %v2305 = vld [vmem:[#allocation9 + $0x2c] sm:$0xf]
        %v2306 = vld [vmem:[#allocation9 + $0x30] sm:$0xf]
        %v2307 = vld [vmem:[#allocation9 + $0x34] sm:$0xf]
        %v2308 = vld [vmem:[#allocation9 + $0x38] sm:$0xf]
        %v2309 = vld [vmem:[#allocation9 + $0x3c] sm:$0xf]
        %v2310 = vld [vmem:[#allocation9 + $0x40] sm:$0xf]
        %v2311 = vld [vmem:[#allocation9 + $0x44] sm:$0xf]
        %v2312 = vld [vmem:[#allocation9 + $0x48] sm:$0xf]
        %v2313 = vld [vmem:[#allocation9 + $0x4c] sm:$0xf]
        %v2314 = vld [vmem:[#allocation9 + $0x50] sm:$0xf]
        %v2315 = vld [vmem:[#allocation9 + $0x54] sm:$0xf]
        %v2316 = vld [vmem:[#allocation9 + $0x58] sm:$0xf]
        %v2317 = vld [vmem:[#allocation9 + $0x5c] sm:$0xf]
        %v2318 = vld [vmem:[#allocation9 + $0x60] sm:$0xf]
        %v2319 = vld [vmem:[#allocation9 + $0x64] sm:$0xf]
        %v2320 = vld [vmem:[#allocation9 + $0x68] sm:$0xf]
        %v2321 = vld [vmem:[#allocation9 + $0x6c] sm:$0xf]
        %v2322 = vld [vmem:[#allocation9 + $0x70] sm:$0xf]
        %v2323 = vld [vmem:[#allocation9 + $0x74] sm:$0xf]
        %v2324 = vld [vmem:[#allocation9 + $0x78] sm:$0xf]
        %v2325 = vld [vmem:[#allocation9 + $0x7c] sm:$0xf]
        %v2326 = vld [vmem:[%s6] sm:$0x1]
        %v2328 = vlaneseq
        %v2329 = vshrl.u32 %v2328, 7
        %v2330 = vsub.s32 0, %v2329
        %v2331 = vrot.slane %v2326, %v2330
        %v2365 = vunpack.c.l.b16 %v2294
        %v2366 = vunpack.c.l.b16 %v2295
        %v2367 = vunpack.c.l.b16 %v2296
        %v2368 = vunpack.c.l.b16 %v2297
        %v2369 = vunpack.c.l.b16 %v2298
        %v2370 = vunpack.c.l.b16 %v2299
        %v2371 = vunpack.c.l.b16 %v2300
        %v2372 = vunpack.c.l.b16 %v2301
        %v2373 = vunpack.c.l.b16 %v2302
        %v2374 = vunpack.c.l.b16 %v2303
        %v2375 = vunpack.c.l.b16 %v2304
        %v2376 = vunpack.c.l.b16 %v2305
        %v2377 = vunpack.c.l.b16 %v2306
        %v2378 = vunpack.c.l.b16 %v2307
        %v2379 = vunpack.c.l.b16 %v2308
        %v2380 = vunpack.c.l.b16 %v2309
        %v2381 = vunpack.c.l.b16 %v2310
        %v2382 = vunpack.c.l.b16 %v2311
        %v2383 = vunpack.c.l.b16 %v2312
        %v2384 = vunpack.c.l.b16 %v2313
        %v2385 = vunpack.c.l.b16 %v2314
        %v2386 = vunpack.c.l.b16 %v2315
        %v2387 = vunpack.c.l.b16 %v2316
        %v2388 = vunpack.c.l.b16 %v2317
        %v2389 = vunpack.c.l.b16 %v2318
        %v2390 = vunpack.c.l.b16 %v2319
        %v2391 = vunpack.c.l.b16 %v2320
        %v2392 = vunpack.c.l.b16 %v2321
        %v2393 = vunpack.c.l.b16 %v2322
        %v2394 = vunpack.c.l.b16 %v2323
        %v2395 = vunpack.c.l.b16 %v2324
        %v2396 = vunpack.c.l.b16 %v2325
        %v2397 = vpack.c.b16 %v2366, %v2365
        %v2398 = vpack.c.b16 %v2368, %v2367
        %v2399 = vpack.c.b16 %v2370, %v2369
        %v2400 = vpack.c.b16 %v2372, %v2371
        %v2401 = vpack.c.b16 %v2374, %v2373
        %v2402 = vpack.c.b16 %v2376, %v2375
        %v2403 = vpack.c.b16 %v2378, %v2377
        %v2404 = vpack.c.b16 %v2380, %v2379
        %v2405 = vpack.c.b16 %v2382, %v2381
        %v2406 = vpack.c.b16 %v2384, %v2383
        %v2407 = vpack.c.b16 %v2386, %v2385
        %v2408 = vpack.c.b16 %v2388, %v2387
        %v2409 = vpack.c.b16 %v2390, %v2389
        %v2410 = vpack.c.b16 %v2392, %v2391
        %v2411 = vpack.c.b16 %v2394, %v2393
        %v2412 = vpack.c.b16 %v2396, %v2395
        %2429 = vmatprep.subr.bf16.mxu0 0
        %2430 = vmatpush1.bf16.msra.mxu0 %v2404
        %2431 = vmatprep.subr.bf16.mxu0 0
        %2432 = vmatpush1.bf16.msra.mxu0 %v2403
        %2433 = vmatprep.subr.bf16.mxu0 0
        %2434 = vmatpush1.bf16.msra.mxu0 %v2402
        %2435 = vmatprep.subr.bf16.mxu0 0
        %2436 = vmatpush1.bf16.msra.mxu0 %v2401
        %2437 = vmatprep.subr.bf16.mxu0 0
        %2438 = vmatpush1.bf16.msra.mxu0 %v2400
        %2439 = vmatprep.subr.bf16.mxu0 0
        %2440 = vmatpush1.bf16.msra.mxu0 %v2399
        %2441 = vmatprep.subr.bf16.mxu0 0
        %2442 = vmatpush1.bf16.msra.mxu0 %v2398
        %2443 = vmatprep.subr.bf16.mxu0 0
        %2444 = vmatpush1.bf16.msra.mxu0 %v2397
        %2445 = vmatprep.subr.bf16.mxu0 0
        %2446 = vmatpush2.bf16.msra.mxu0 %v2412
        %2447 = vmatprep.subr.bf16.mxu0 0
        %2448 = vmatpush2.bf16.msra.mxu0 %v2411
        %2449 = vmatprep.subr.bf16.mxu0 0
        %2450 = vmatpush2.bf16.msra.mxu0 %v2410
        %2451 = vmatprep.subr.bf16.mxu0 0
        %2452 = vmatpush2.bf16.msra.mxu0 %v2409
        %2453 = vmatprep.subr.bf16.mxu0 0
        %2454 = vmatpush2.bf16.msra.mxu0 %v2408
        %2455 = vmatprep.subr.bf16.mxu0 0
        %2456 = vmatpush2.bf16.msra.mxu0 %v2407
        %2457 = vmatprep.subr.bf16.mxu0 0
        %2458 = vmatpush2.bf16.msra.mxu0 %v2406
        %2459 = vmatprep.subr.bf16.mxu0 0
        %2460 = vmatpush2.bf16.msra.mxu0 %v2405
        %2461 = vmatprep.mubr.bf16.mxu0 %v350
        %2462 = vmatmul.mubr.bf16.gmra.mxu0 %v2290
        %v2463 = vpop.f32.mrf.mxu0
        %v2464 = vadd.f32 %v2331, %v2463
        %v2465 = vpop.f32.mrf.mxu0
        %v2466 = vpop.f32.mrf.mxu0
        %v2467 = vadd.f32 %v2331, %v2466
        %v2468 = vpop.f32.mrf.mxu0
        %2469 = vmatprep.mubr.bf16.mxu0 %v351
        %2470 = vmatmul.mubr.bf16.gmra.mxu0 %v2291
        %v2471 = vpop.f32.mrf.mxu0
        %v2472 = vadd.f32 %v2331, %v2471
        %v2473 = vpop.f32.mrf.mxu0
        %v2474 = vpop.f32.mrf.mxu0
        %v2475 = vadd.f32 %v2331, %v2474
        %v2476 = vpop.f32.mrf.mxu0
        %2477 = vmatprep.mubr.bf16.mxu0 %v352
        %2478 = vmatmul.mubr.bf16.gmra.mxu0 %v2292
        %v2479 = vpop.f32.mrf.mxu0
        %v2480 = vadd.f32 %v2331, %v2479
        %v2481 = vpop.f32.mrf.mxu0
        %v2482 = vpop.f32.mrf.mxu0
        %v2483 = vadd.f32 %v2331, %v2482
        %v2484 = vpop.f32.mrf.mxu0
        %2485 = vmatprep.mubr.bf16.mxu0 %v353
        %2486 = vmatmul.mubr.bf16.gmra.mxu0 %v2293
        %v2487 = vpop.f32.mrf.mxu0
        %v2488 = vadd.f32 %v2331, %v2487
        %v2489 = vpop.f32.mrf.mxu0
        %v2490 = vpop.f32.mrf.mxu0
        %v2491 = vadd.f32 %v2331, %v2490
        %v2492 = vpop.f32.mrf.mxu0
        %2493 = vdwg.mxu0
        %v2494 = vmax.f32 %v2464, 0.0
        %v2495 = vmax.f32 %v2467, 0.0
        %v2496 = vmax.f32 %v2472, 0.0
        %v2497 = vmax.f32 %v2475, 0.0
        %v2498 = vmax.f32 %v2480, 0.0
        %v2499 = vmax.f32 %v2483, 0.0
        %v2500 = vmax.f32 %v2488, 0.0
        %v2501 = vmax.f32 %v2491, 0.0
        %2502 = vst [vmem:[%s340] sm:$0xff] %v2494
        %2503 = vst [vmem:[%s340 + $0x8] sm:$0xff] %v2495
        %2504 = vst [vmem:[%s340 + $0x10] sm:$0xff] %v2496
        %2505 = vst [vmem:[%s340 + $0x18] sm:$0xff] %v2497
        %2506 = vst [vmem:[%s340 + $0x20] sm:$0xff] %v2498
        %2507 = vst [vmem:[%s340 + $0x28] sm:$0xff] %v2499
        %2508 = vst [vmem:[%s340 + $0x30] sm:$0xff] %v2500
        %2509 = vst [vmem:[%s340 + $0x38] sm:$0xff] %v2501
        %s2510 = sand.u32 %s186, 1
        %s2511 = scalar_lea.sflag [#allocation5], %s2510
        %s2512 = sand.u32 %s186, 1
        %s2513 = smul.addr %s2512, 64
        %s2514 = scalar_lea.vmem [#allocation11], %s2513
        // Predicated region
        $region65: #{tpu_custom_call.1} parent=47 // pred_check
          %p2515 = pneg %p196
        $region66: #{tpu_custom_call.1} parent=47 // pred_check_branch
          %2517 = sbr.rel (%p2515) target = $region68
        $region67: #{tpu_custom_call.1} parent=47 // pred_region
          %s2519 = ssub.s32 1024, 1024
          %2520 = vsyncadd %s2511, %s2519
          %s2521 = smul.addr %s26, 8
          %s2522 = smul.addr %s2521, 128
          %s2523 = scalar_lea.hbm %s7, %s2522
          %s2524 = sshll.u32 %s2514, 4
          %s2525 = int_to_ptr.vmem [resolvable:$true] %s2524
          %2530 = dma.vmem_to_hbm [thread:$0]  %s2525, 1024, %s2523, %s2511, 128, 128, 8
        $region68: #{tpu_custom_call.1} parent=47 // pred_fallthru
          _
      $region48: #{tpu_custom_call.1} parent=5 // pred_fallthru
        _
      %p2531 = scmp.le.s32.totalorder 2, %s21
      // Predicated region
      $region69: #{tpu_custom_call.1} parent=5 // pred_check
        %p2532 = pneg %p2531
      $region70: #{tpu_custom_call.1} parent=5 // pred_check_branch
        %2534 = sbr.rel (%p2532) target = $region72
      $region71: #{tpu_custom_call.1} parent=5 // pred_region
        %s2535 = ssub.s32 %s21, 2
        // Predicated region
        $region73: #{tpu_custom_call.1} parent=71 // pred_check
          %p2536 = pneg %p202
        $region74: #{tpu_custom_call.1} parent=71 // pred_check_branch
          %2538 = sbr.rel (%p2536) target = $region76
        $region75: #{tpu_custom_call.1} parent=71 // pred_region
          %s2539 = sand.u32 %s187, 1
          %s2540 = scalar_lea.sflag [#allocation5], %s2539
          %s2541 = sand.u32 %s187, 1
          %s2542 = smul.addr %s2541, 64
          %s2543 = scalar_lea.vmem [#allocation11], %s2542
          %2544 = dma.done %s2540, 1024
        $region76: #{tpu_custom_call.1} parent=71 // pred_fallthru
          _
      $region72: #{tpu_custom_call.1} parent=5 // pred_fallthru
        _
    $region6: #{tpu_custom_call.1} parent=1 // loop_footer
      %s25 = sadd.s32 1, %s21
    $region7: #{tpu_custom_call.1} parent=1 // loop_footer_branch
      %20 = sbr.rel target = $region3
    $region8: #{tpu_custom_call.1} parent=1 // loop_exit
      _
    %2545 = vsyncpa [#allocation4], 1
    %s2546 = scalar_lea.sflag [#allocation4], 1
    %2547 = vsyncpa %s2546, 1
    %2548 = vsyncpa [#allocation7], 1
    %2549 = vsyncpa [#allocation10], 1
    %2550 = vsyncpa [#allocation5], 1
    %s2551 = scalar_lea.sflag [#allocation5], 1
    %2552 = vsyncpa %s2551, 1

</llo_original>
